<compile_context>
chip_gen: v5e
topology: v5e:2x2
jax: 0.10.0
libtpu: 0.0.40
codegen_flags: <defaults>
</compile_context>

<pallas_src>
import math
import functools

import jax
import jax.numpy as jnp
from jax.experimental import pallas as pl
from jax.experimental.pallas import tpu as pltpu

NEG_INF = float("-inf")


# ----------------------------- tiling helpers ------------------------------

def _row_tile(m, cap=256):
    """Multiple-of-8 row tile <= cap that yields >=2 grid steps (v7x megacore)
    whenever m is large enough; full extent for tiny m."""
    if m <= 8:
        return m
    return min(cap, max(8, ((m // 2) // 8) * 8))


# --------------------------- in-kernel attention ----------------------------

def _mha_heads(q, k, v, bias, scale, n_head, d_head):
    """Per-head softmax attention on VMEM values.

    q: (Sq, D) f32, k/v: (Sk, D) f32, bias: (Sq, Sk) or (1, Sk) additive f32
    (or None).  Returns a lane-dense (Sq, D) f32 context (heads concatenated
    on the lane axis).  f32 softmax statistics, bf16 MXU inputs.
    """
    outs = []
    for h in range(n_head):
        sl = slice(h * d_head, (h + 1) * d_head)
        qh = q[:, sl].astype(jnp.bfloat16)
        kh = k[:, sl].astype(jnp.bfloat16)
        vh = v[:, sl].astype(jnp.bfloat16)
        # scores = qh @ kh.T  (contract last dims; no explicit transpose)
        s = jax.lax.dot_general(
            qh, kh, (((1,), (1,)), ((), ())),
            preferred_element_type=jnp.float32) * scale
        if bias is not None:
            s = s + bias
        # NOTE: like nn.MultiheadAttention, a fully masked row (all -inf)
        # would produce NaN; not reachable with causal + this padding.
        m = jnp.max(s, axis=-1, keepdims=True)
        p = jnp.exp(s - m)
        denom = jnp.sum(p, axis=-1, keepdims=True)
        o = jnp.dot(p.astype(jnp.bfloat16), vh,
                    preferred_element_type=jnp.float32)
        outs.append(o * pl.reciprocal(denom, approx=True))   # EUP divide
    return jnp.concatenate(outs, axis=-1)                    # (Sq, D)


def _ln(z, gamma, beta, eps):
    mean = jnp.mean(z, axis=-1, keepdims=True)
    var = jnp.mean(jnp.square(z - mean), axis=-1, keepdims=True)
    return (z - mean) * jax.lax.rsqrt(var + eps) * gamma + beta


# ----------------------------- fused kernels -------------------------------

def _self_attn_ln_kernel(*refs, n_head, d_head, scale, eps, causal, has_pad):
    """LayerNorm(x + SelfAttention(x)) for one batch element."""
    if has_pad:
        (x_ref, wqkv_ref, bqkv_ref, wo_ref, bo_ref, g_ref, be_ref,
         pad_ref, o_ref) = refs
    else:
        (x_ref, wqkv_ref, bqkv_ref, wo_ref, bo_ref, g_ref, be_ref,
         o_ref) = refs

    x = x_ref[0]                                        # (S, D) f32
    S, D = x.shape

    qkv = jnp.dot(x.astype(jnp.bfloat16), wqkv_ref[...],
                  preferred_element_type=jnp.float32) + bqkv_ref[...]
    q = qkv[:, :D]
    k = qkv[:, D:2 * D]
    v = qkv[:, 2 * D:]

    bias = None
    if causal:
        rows = jax.lax.broadcasted_iota(jnp.int32, (S, S), 0)
        cols = jax.lax.broadcasted_iota(jnp.int32, (S, S), 1)
        bias = jnp.where(rows >= cols, 0.0, NEG_INF).astype(jnp.float32)
    if has_pad:
        pad = pad_ref[0]                                # (1, S), additive
        bias = pad if bias is None else bias + pad

    attn = _mha_heads(q, k, v, bias, scale, n_head, d_head)       # (S, D)
    ctx = jnp.dot(attn.astype(jnp.bfloat16), wo_ref[...],
                  preferred_element_type=jnp.float32) + bo_ref[...]
    z = x + ctx                                         # residual (f32)
    o_ref[0] = _ln(z, g_ref[...], be_ref[...], eps).astype(o_ref.dtype)


def _cross_attn_ln_kernel(x_ref, mem_ref, wq_ref, bq_ref, wkv_ref, bkv_ref,
                          wo_ref, bo_ref, g_ref, be_ref, o_ref,
                          *, n_head, d_head, scale, eps):
    """LayerNorm(x + CrossAttention(x, memory)) for one batch element."""
    x = x_ref[0]                                        # (St, D) f32
    mem = mem_ref[0]                                    # (Ss, D) f32
    D = x.shape[-1]

    q = jnp.dot(x.astype(jnp.bfloat16), wq_ref[...],
                preferred_element_type=jnp.float32) + bq_ref[...]
    kv = jnp.dot(mem.astype(jnp.bfloat16), wkv_ref[...],
                 preferred_element_type=jnp.float32) + bkv_ref[...]
    k = kv[:, :D]
    v = kv[:, D:]

    attn = _mha_heads(q, k, v, None, scale, n_head, d_head)
    ctx = jnp.dot(attn.astype(jnp.bfloat16), wo_ref[...],
                  preferred_element_type=jnp.float32) + bo_ref[...]
    z = x + ctx
    o_ref[0] = _ln(z, g_ref[...], be_ref[...], eps).astype(o_ref.dtype)


def _ffn_ln_kernel(x_ref, w1_ref, b1_ref, w2_ref, b2_ref, g_ref, be_ref, o_ref,
                   *, eps):
    """LayerNorm(x + relu(x@w1+b1)@w2 + b2); the (tm, dff) intermediate never
    leaves VMEM."""
    x = x_ref[...]                                      # (tm, D) f32
    h = jnp.dot(x.astype(jnp.bfloat16), w1_ref[...],
                preferred_element_type=jnp.float32) + b1_ref[...]
    h = jnp.maximum(h, 0.0)
    y = jnp.dot(h.astype(jnp.bfloat16), w2_ref[...],
                preferred_element_type=jnp.float32) + b2_ref[...]
    z = x + y
    o_ref[...] = _ln(z, g_ref[...], be_ref[...], eps).astype(o_ref.dtype)


def _layernorm_kernel(x_ref, g_ref, b_ref, o_ref, *, eps):
    o_ref[...] = _ln(x_ref[...], g_ref[...], b_ref[...], eps).astype(o_ref.dtype)


def _linear_kernel(x_ref, w_ref, b_ref, o_ref):
    y = jnp.dot(x_ref[...].astype(jnp.bfloat16), w_ref[...],
                preferred_element_type=jnp.float32) + b_ref[...]
    o_ref[...] = y.astype(o_ref.dtype)


# ----------------------------- kernel wrappers ------------------------------

def fused_self_attn_ln(x, p, ln_p, n_head, *, causal, pad_bias, eps=1e-5):
    """x: (B, S, D); pad_bias: (B, 1, S) additive f32 key-padding bias or None."""
    B, S, D = x.shape
    d_head = D // n_head
    scale = 1.0 / math.sqrt(d_head)
    in_specs = [
        pl.BlockSpec((1, S, D), lambda b: (b, 0, 0)),
        pl.BlockSpec((D, 3 * D), lambda b: (0, 0)),
        pl.BlockSpec((1, 3 * D), lambda b: (0, 0)),
        pl.BlockSpec((D, D), lambda b: (0, 0)),
        pl.BlockSpec((1, D), lambda b: (0, 0)),
        pl.BlockSpec((1, D), lambda b: (0, 0)),
        pl.BlockSpec((1, D), lambda b: (0, 0)),
    ]
    args = [x, p["w_qkv"], p["b_qkv"], p["wo"], p["bo"], ln_p["w"], ln_p["b"]]
    has_pad = pad_bias is not None
    if has_pad:
        in_specs.append(pl.BlockSpec((1, 1, S), lambda b: (b, 0, 0)))
        args.append(pad_bias)
    return pl.pallas_call(
        functools.partial(_self_attn_ln_kernel, n_head=n_head, d_head=d_head,
                          scale=scale, eps=eps, causal=causal, has_pad=has_pad),
        out_shape=jax.ShapeDtypeStruct((B, S, D), jnp.float32),
        grid=(B,),
        in_specs=in_specs,
        out_specs=pl.BlockSpec((1, S, D), lambda b: (b, 0, 0)),
        compiler_params=pltpu.CompilerParams(dimension_semantics=("parallel",)),
    )(*args)


def fused_cross_attn_ln(x, mem, p, ln_p, n_head, eps=1e-5):
    B, St, D = x.shape
    Ss = mem.shape[1]
    d_head = D // n_head
    scale = 1.0 / math.sqrt(d_head)
    return pl.pallas_call(
        functools.partial(_cross_attn_ln_kernel, n_head=n_head, d_head=d_head,
                          scale=scale, eps=eps),
        out_shape=jax.ShapeDtypeStruct((B, St, D), jnp.float32),
        grid=(B,),
        in_specs=[
            pl.BlockSpec((1, St, D), lambda b: (b, 0, 0)),
            pl.BlockSpec((1, Ss, D), lambda b: (b, 0, 0)),
            pl.BlockSpec((D, D), lambda b: (0, 0)),
            pl.BlockSpec((1, D), lambda b: (0, 0)),
            pl.BlockSpec((D, 2 * D), lambda b: (0, 0)),
            pl.BlockSpec((1, 2 * D), lambda b: (0, 0)),
            pl.BlockSpec((D, D), lambda b: (0, 0)),
            pl.BlockSpec((1, D), lambda b: (0, 0)),
            pl.BlockSpec((1, D), lambda b: (0, 0)),
            pl.BlockSpec((1, D), lambda b: (0, 0)),
        ],
        out_specs=pl.BlockSpec((1, St, D), lambda b: (b, 0, 0)),
        compiler_params=pltpu.CompilerParams(dimension_semantics=("parallel",)),
    )(x, mem, p["wq"], p["bq"], p["w_kv"], p["b_kv"], p["wo"], p["bo"],
      ln_p["w"], ln_p["b"])


def fused_ffn_ln(x, w1, b1, w2, b2, gamma, beta, eps=1e-5):
    B, S, D = x.shape
    M = B * S
    F = w1.shape[1]
    x2 = x.reshape(M, D)
    tm = _row_tile(M)
    grid = (pl.cdiv(M, tm),)
    # TODO(synk): for realistic d_model/dff, tile the F axis with an inner
    # accumulation loop and set vmem_limit_bytes (v7x has 64 MiB VMEM,
    # v5e's default scoped limit is 16 MiB); trivial at D=32, F=2048.
    out = pl.pallas_call(
        functools.partial(_ffn_ln_kernel, eps=eps),
        out_shape=jax.ShapeDtypeStruct((M, D), jnp.float32),
        grid=grid,
        in_specs=[
            pl.BlockSpec((tm, D), lambda i: (i, 0)),
            pl.BlockSpec((D, F), lambda i: (0, 0)),
            pl.BlockSpec((1, F), lambda i: (0, 0)),
            pl.BlockSpec((F, D), lambda i: (0, 0)),
            pl.BlockSpec((1, D), lambda i: (0, 0)),
            pl.BlockSpec((1, D), lambda i: (0, 0)),
            pl.BlockSpec((1, D), lambda i: (0, 0)),
        ],
        out_specs=pl.BlockSpec((tm, D), lambda i: (i, 0)),
        compiler_params=pltpu.CompilerParams(dimension_semantics=("parallel",)),
    )(x2, w1, b1, w2, b2, gamma, beta)
    return out.reshape(B, S, D)


def pallas_layernorm(x, gamma, beta, eps=1e-5):
    """LayerNorm over the last axis.  x: (M, D); gamma/beta: (1, D)."""
    M, D = x.shape
    tm = _row_tile(M, cap=512)
    grid = (pl.cdiv(M, tm),)
    row = pl.BlockSpec((tm, D), lambda i: (i, 0))
    vec = pl.BlockSpec((1, D), lambda i: (0, 0))
    return pl.pallas_call(
        functools.partial(_layernorm_kernel, eps=eps),
        out_shape=jax.ShapeDtypeStruct((M, D), jnp.float32),
        grid=grid,
        in_specs=[row, vec, vec],
        out_specs=row,
        compiler_params=pltpu.CompilerParams(dimension_semantics=("parallel",)),
    )(x, gamma, beta)


def pallas_linear(x, w, b):
    """y = x @ w + b.  x: (M, K) f32, w: (K, N) bf16 (pre-cast), b: (1, N)."""
    M, K = x.shape
    N = w.shape[1]
    tm = _row_tile(M)
    tn = N if N <= 512 else 512
    grid = (pl.cdiv(M, tm), pl.cdiv(N, tn))
    return pl.pallas_call(
        _linear_kernel,
        out_shape=jax.ShapeDtypeStruct((M, N), jnp.float32),
        grid=grid,
        in_specs=[
            pl.BlockSpec((tm, K), lambda i, j: (i, 0)),
            pl.BlockSpec((K, tn), lambda i, j: (0, j)),
            pl.BlockSpec((1, tn), lambda i, j: (0, j)),
        ],
        out_specs=pl.BlockSpec((tm, tn), lambda i, j: (i, j)),
        compiler_params=pltpu.CompilerParams(
            dimension_semantics=("parallel", "parallel")),
    )(x, w, b)


# ------------------------------- model glue --------------------------------

def make_pe(max_len, d_model):
    position = jnp.arange(max_len, dtype=jnp.float32)[:, None]
    div_term = jnp.exp(
        jnp.arange(0, d_model, 2, dtype=jnp.float32)
        * (-math.log(10000.0) / d_model))
    pe = jnp.zeros((max_len, d_model), jnp.float32)
    pe = pe.at[:, 0::2].set(jnp.sin(position * div_term))
    pe = pe.at[:, 1::2].set(jnp.cos(position * div_term))
    return pe


def encoder_layer(x, p, n_head):
    x = fused_self_attn_ln(x, p["self_attn"], p["norm1"], n_head,
                           causal=False, pad_bias=None)
    return fused_ffn_ln(x, p["lin1_w"], p["lin1_b"], p["lin2_w"], p["lin2_b"],
                        p["norm2"]["w"], p["norm2"]["b"])


def decoder_layer(x, mem, p, n_head, pad_bias):
    x = fused_self_attn_ln(x, p["self_attn"], p["norm1"], n_head,
                           causal=True, pad_bias=pad_bias)
    x = fused_cross_attn_ln(x, mem, p["cross_attn"], p["norm2"], n_head)
    return fused_ffn_ln(x, p["lin1_w"], p["lin1_b"], p["lin2_w"], p["lin2_b"],
                        p["norm3"]["w"], p["norm3"]["b"])


def transformer_forward(params, src, tgt, tgt_key_padding_mask=None, *,
                        n_head, out_vocab):
    B, Ss = src.shape
    St = tgt.shape[1]
    D = params["embed"].shape[1]

    # Embedding lookup (gather stays in plain JAX glue).
    s_emb = jnp.take(params["embed"], src, axis=0)       # (B, Ss, D)
    t_emb = jnp.take(params["embed"], tgt, axis=0)       # (B, St, D)

    # PositionalEncoding (verbatim reproduction of the pe[:x.size(0)] quirk:
    # batch-first inputs slice pe by BATCH index, broadcast over sequence).
    pe = params["pe"]
    s_p = s_emb + pe[:B][:, None, :]
    t_p = t_emb + pe[:B][:, None, :]
    # TODO(synk): dropout (p=0.1) layers are run in eval mode (identity).

    # Key-padding mask -> tiny (B, 1, St) additive bias; the causal mask is
    # generated in-kernel (no (B, St, St) HBM bias).
    pad_bias = None
    if tgt_key_padding_mask is not None:
        pad_bias = jnp.where(tgt_key_padding_mask, NEG_INF, 0.0).astype(
            jnp.float32)[:, None, :]

    # Encoder stack (post-norm) + final norm.
    mem = s_p
    for lp in params["enc_layers"]:
        mem = encoder_layer(mem, lp, n_head)
    mem = pallas_layernorm(mem.reshape(B * Ss, D),
                           params["enc_norm"]["w"],
                           params["enc_norm"]["b"]).reshape(B, Ss, D)

    # Decoder stack (post-norm) + final norm.
    out = t_p
    for lp in params["dec_layers"]:
        out = decoder_layer(out, mem, lp, n_head, pad_bias)
    out2d = pallas_layernorm(out.reshape(B * St, D),
                             params["dec_norm"]["w"], params["dec_norm"]["b"])

    # Output projection (weights pre-padded to a 128-lane multiple at init).
    logits = pallas_linear(out2d, params["fc_w"], params["fc_b"])[:, :out_vocab]
    return logits.reshape(B, St, out_vocab)


# ------------------------------ parameter init ------------------------------

def init_params(key, in_vocab, out_vocab, d_model, n_head, dff, padding_idx,
                max_len=5000):
    keys = iter(jax.random.split(key, 256))

    def nrm(shape, scale=0.05):
        return scale * jax.random.normal(next(keys), shape, dtype=jnp.float32)

    def bf(x):  # pre-cast matmul weights to bf16 once (halves weight DMA)
        return x.astype(jnp.bfloat16)

    def mha_self_p():
        # fused in-projection, same semantics as nn.MultiheadAttention
        return dict(w_qkv=bf(nrm((d_model, 3 * d_model))),
                    b_qkv=nrm((1, 3 * d_model)),
                    wo=bf(nrm((d_model, d_model))),
                    bo=nrm((1, d_model)))

    def mha_cross_p():
        return dict(wq=bf(nrm((d_model, d_model))), bq=nrm((1, d_model)),
                    w_kv=bf(nrm((d_model, 2 * d_model))),
                    b_kv=nrm((1, 2 * d_model)),
                    wo=bf(nrm((d_model, d_model))), bo=nrm((1, d_model)))

    def ffn_p():
        return dict(lin1_w=bf(nrm((d_model, dff))), lin1_b=nrm((1, dff)),
                    lin2_w=bf(nrm((dff, d_model))), lin2_b=nrm((1, d_model)))

    def ln_p():
        return dict(w=jnp.ones((1, d_model), jnp.float32),
                    b=jnp.zeros((1, d_model), jnp.float32))

    enc_layers = [dict(self_attn=mha_self_p(), **ffn_p(),
                       norm1=ln_p(), norm2=ln_p()) for _ in range(3)]
    dec_layers = [dict(self_attn=mha_self_p(), cross_attn=mha_cross_p(),
                       **ffn_p(), norm1=ln_p(), norm2=ln_p(), norm3=ln_p())
                  for _ in range(3)]

    embed = jax.random.normal(next(keys), (in_vocab, d_model),
                              dtype=jnp.float32)
    embed = embed.at[padding_idx].set(0.0)   # nn.Embedding(padding_idx=...)

    # Final projection: padded ONCE at init to a lane-dense 128 multiple.
    vp = pl.cdiv(out_vocab, 128) * 128
    fc_w = nrm((d_model, out_vocab))
    fc_b = nrm((out_vocab,))
    fc_w = bf(jnp.pad(fc_w, ((0, 0), (0, vp - out_vocab))))
    fc_b = jnp.pad(fc_b, (0, vp - out_vocab)).reshape(1, vp)

    return dict(embed=embed, pe=make_pe(max_len, d_model),
                enc_layers=enc_layers, enc_norm=ln_p(),
                dec_layers=dec_layers, dec_norm=ln_p(),
                fc_w=fc_w, fc_b=fc_b)


# ----------------------------------- main -----------------------------------

if __name__ == "__main__":
    in_vocab, out_vocab = 50, 40
    d_model, n_head = 32, 4
    dff = 2048              # nn.Transformer default dim_feedforward
    padding_idx = 0
    B, S_src, S_tgt = 2, 8, 8

    root = jax.random.PRNGKey(0)
    k_param, k_src, k_tgt = jax.random.split(root, 3)

    params = init_params(k_param, in_vocab, out_vocab, d_model, n_head, dff,
                         padding_idx)

    src = jax.random.randint(k_src, (B, S_src), 2, in_vocab, dtype=jnp.int32)
    tgt = jax.random.randint(k_tgt, (B, S_tgt), 2, in_vocab, dtype=jnp.int32)
    # pad the last target position of batch element 1
    tgt_kpm = jnp.zeros((B, S_tgt), dtype=bool).at[1, S_tgt - 1].set(True)

    fwd = jax.jit(functools.partial(transformer_forward, n_head=n_head,
                                    out_vocab=out_vocab))
    out = fwd(params, src, tgt, tgt_kpm)
    out = jax.block_until_ready(out)

    assert out.shape == (B, S_tgt, out_vocab), out.shape
    assert bool(jnp.all(jnp.isfinite(out)))
    print("KERNEL_OK")
</pallas_src>

<mosaic_0001>
module attributes {stable_mosaic.version = 11 : i64} {
  func.func @_ffn_ln_kernel(%arg0: i32, %arg1: memref<8x32xf32, #tpu.memory_space<vmem>>, %arg2: memref<32x2048xbf16, #tpu.memory_space<vmem>>, %arg3: memref<1x2048xf32, #tpu.memory_space<vmem>>, %arg4: memref<2048x32xbf16, #tpu.memory_space<vmem>>, %arg5: memref<1x32xf32, #tpu.memory_space<vmem>>, %arg6: memref<1x32xf32, #tpu.memory_space<vmem>>, %arg7: memref<1x32xf32, #tpu.memory_space<vmem>>, %arg8: memref<8x32xf32, #tpu.memory_space<vmem>>) attributes {dimension_semantics = [#tpu.dimension_semantics<parallel>], iteration_bounds = array<i64: 2>, scalar_prefetch = 0 : i64, scratch_operands = 0 : i64, tpu.core_type = #tpu.core_type<tc>, window_params = [{transform_indices = @transform_0, window_bounds = array<i64: 8, 32>}, {pipeline_mode = #tpu.pipeline_mode<synchronous>, transform_indices = @transform_1, window_bounds = array<i64: 32, 2048>}, {pipeline_mode = #tpu.pipeline_mode<synchronous>, transform_indices = @transform_2, window_bounds = array<i64: 1, 2048>}, {pipeline_mode = #tpu.pipeline_mode<synchronous>, transform_indices = @transform_3, window_bounds = array<i64: 2048, 32>}, {pipeline_mode = #tpu.pipeline_mode<synchronous>, transform_indices = @transform_4, window_bounds = array<i64: 1, 32>}, {pipeline_mode = #tpu.pipeline_mode<synchronous>, transform_indices = @transform_5, window_bounds = array<i64: 1, 32>}, {pipeline_mode = #tpu.pipeline_mode<synchronous>, transform_indices = @transform_6, window_bounds = array<i64: 1, 32>}, {transform_indices = @transform_7, window_bounds = array<i64: 8, 32>}]} {
    %c0 = arith.constant 0 : index
    %c0_0 = arith.constant 0 : index
    %0 = vector.load %arg1[%c0, %c0_0] : memref<8x32xf32, #tpu.memory_space<vmem>>, vector<8x32xf32>
    %1 = arith.truncf %0 : vector<8x32xf32> to vector<8x32xbf16>
    %c0_1 = arith.constant 0 : index
    %c0_2 = arith.constant 0 : index
    %2 = vector.load %arg2[%c0_1, %c0_2] : memref<32x2048xbf16, #tpu.memory_space<vmem>>, vector<32x2048xbf16>
    %cst = arith.constant dense<0.000000e+00> : vector<8x2048xf32>
    %3 = tpu.matmul %1, %2, %cst {dimension_numbers = #tpu.dot_dimension_numbers<[1], [0], [0], [1], [0, 0, 1, 1], [], []>} : vector<8x32xbf16>, vector<32x2048xbf16>, vector<8x2048xf32> -> vector<8x2048xf32>
    %c0_3 = arith.constant 0 : index
    %c0_4 = arith.constant 0 : index
    %4 = vector.load %arg3[%c0_3, %c0_4] : memref<1x2048xf32, #tpu.memory_space<vmem>>, vector<1x2048xf32>
    %5 = vector.broadcast %4 : vector<1x2048xf32> to vector<8x2048xf32>
    %6 = arith.addf %3, %5 : vector<8x2048xf32>
    %cst_5 = arith.constant 0.000000e+00 : f32
    %7 = vector.broadcast %cst_5 : f32 to vector<8x2048xf32>
    %8 = arith.maximumf %6, %7 : vector<8x2048xf32>
    %9 = arith.truncf %8 : vector<8x2048xf32> to vector<8x2048xbf16>
    %c0_6 = arith.constant 0 : index
    %c0_7 = arith.constant 0 : index
    %10 = vector.load %arg4[%c0_6, %c0_7] : memref<2048x32xbf16, #tpu.memory_space<vmem>>, vector<2048x32xbf16>
    %cst_8 = arith.constant dense<0.000000e+00> : vector<8x32xf32>
    %11 = tpu.matmul %9, %10, %cst_8 {dimension_numbers = #tpu.dot_dimension_numbers<[1], [0], [0], [1], [0, 0, 1, 1], [], []>} : vector<8x2048xbf16>, vector<2048x32xbf16>, vector<8x32xf32> -> vector<8x32xf32>
    %c0_9 = arith.constant 0 : index
    %c0_10 = arith.constant 0 : index
    %12 = vector.load %arg5[%c0_9, %c0_10] : memref<1x32xf32, #tpu.memory_space<vmem>>, vector<1x32xf32>
    %13 = vector.broadcast %12 : vector<1x32xf32> to vector<8x32xf32>
    %14 = arith.addf %11, %13 : vector<8x32xf32>
    %15 = arith.addf %0, %14 : vector<8x32xf32>
    %c0_11 = arith.constant 0 : index
    %c0_12 = arith.constant 0 : index
    %16 = vector.load %arg6[%c0_11, %c0_12] : memref<1x32xf32, #tpu.memory_space<vmem>>, vector<1x32xf32>
    %c0_13 = arith.constant 0 : index
    %c0_14 = arith.constant 0 : index
    %17 = vector.load %arg7[%c0_13, %c0_14] : memref<1x32xf32, #tpu.memory_space<vmem>>, vector<1x32xf32>
    %cst_15 = arith.constant dense<0.000000e+00> : vector<8xf32>
    %18 = vector.multi_reduction <add>, %15, %cst_15 [1] : vector<8x32xf32> to vector<8xf32>
    %19 = vector.shape_cast %18 : vector<8xf32> to vector<8x1xf32>
    %cst_16 = arith.constant 3.200000e+01 : f32
    %20 = vector.broadcast %cst_16 : f32 to vector<8x1xf32>
    %21 = arith.divf %19, %20 : vector<8x1xf32>
    %22 = vector.broadcast %21 : vector<8x1xf32> to vector<8x32xf32>
    %23 = arith.subf %15, %22 : vector<8x32xf32>
    %24 = arith.mulf %23, %23 : vector<8x32xf32>
    %cst_17 = arith.constant dense<0.000000e+00> : vector<8xf32>
    %25 = vector.multi_reduction <add>, %24, %cst_17 [1] : vector<8x32xf32> to vector<8xf32>
    %26 = vector.shape_cast %25 : vector<8xf32> to vector<8x1xf32>
    %cst_18 = arith.constant 3.200000e+01 : f32
    %27 = vector.broadcast %cst_18 : f32 to vector<8x1xf32>
    %28 = arith.divf %26, %27 : vector<8x1xf32>
    %29 = vector.broadcast %21 : vector<8x1xf32> to vector<8x32xf32>
    %30 = arith.subf %15, %29 : vector<8x32xf32>
    %cst_19 = arith.constant 9.99999974E-6 : f32
    %31 = vector.broadcast %cst_19 : f32 to vector<8x1xf32>
    %32 = arith.addf %28, %31 : vector<8x1xf32>
    %33 = math.rsqrt %32 : vector<8x1xf32>
    %34 = vector.broadcast %33 : vector<8x1xf32> to vector<8x32xf32>
    %35 = arith.mulf %30, %34 : vector<8x32xf32>
    %36 = vector.broadcast %16 : vector<1x32xf32> to vector<8x32xf32>
    %37 = arith.mulf %35, %36 : vector<8x32xf32>
    %38 = vector.broadcast %17 : vector<1x32xf32> to vector<8x32xf32>
    %39 = arith.addf %37, %38 : vector<8x32xf32>
    %c0_20 = arith.constant 0 : index
    %c0_21 = arith.constant 0 : index
    %40 = vector.load %arg8[%c0_20, %c0_21] : memref<8x32xf32, #tpu.memory_space<vmem>>, vector<8x32xf32>
    tpu.vector_store %arg8[%c0_20, %c0_21], %39 {strides = array<i32>} : memref<8x32xf32, #tpu.memory_space<vmem>>, vector<8x32xf32>,
    return
  }
  func.func @transform_0(%arg0: i32) -> (i32, i32) {
    %c0_i32 = arith.constant 0 : i32
    %c0_i32_0 = arith.constant 0 : i32
    return %arg0, %c0_i32 : i32, i32
  }
  func.func @transform_1(%arg0: i32) -> (i32, i32) {
    %c0_i32 = arith.constant 0 : i32
    %c0_i32_0 = arith.constant 0 : i32
    %c0_i32_1 = arith.constant 0 : i32
    return %c0_i32, %c0_i32_0 : i32, i32
  }
  func.func @transform_2(%arg0: i32) -> (i32, i32) {
    %c0_i32 = arith.constant 0 : i32
    %c0_i32_0 = arith.constant 0 : i32
    %c0_i32_1 = arith.constant 0 : i32
    return %c0_i32, %c0_i32_0 : i32, i32
  }
  func.func @transform_3(%arg0: i32) -> (i32, i32) {
    %c0_i32 = arith.constant 0 : i32
    %c0_i32_0 = arith.constant 0 : i32
    %c0_i32_1 = arith.constant 0 : i32
    return %c0_i32, %c0_i32_0 : i32, i32
  }
  func.func @transform_4(%arg0: i32) -> (i32, i32) {
    %c0_i32 = arith.constant 0 : i32
    %c0_i32_0 = arith.constant 0 : i32
    %c0_i32_1 = arith.constant 0 : i32
    return %c0_i32, %c0_i32_0 : i32, i32
  }
  func.func @transform_5(%arg0: i32) -> (i32, i32) {
    %c0_i32 = arith.constant 0 : i32
    %c0_i32_0 = arith.constant 0 : i32
    %c0_i32_1 = arith.constant 0 : i32
    return %c0_i32, %c0_i32_0 : i32, i32
  }
  func.func @transform_6(%arg0: i32) -> (i32, i32) {
    %c0_i32 = arith.constant 0 : i32
    %c0_i32_0 = arith.constant 0 : i32
    %c0_i32_1 = arith.constant 0 : i32
    return %c0_i32, %c0_i32_0 : i32, i32
  }
  func.func @transform_7(%arg0: i32) -> (i32, i32) {
    %c0_i32 = arith.constant 0 : i32
    %c0_i32_0 = arith.constant 0 : i32
    return %arg0, %c0_i32 : i32, i32
  }
}

module attributes {stable_mosaic.version = 11 : i64} {
  func.func @_self_attn_ln_kernel(%arg0: i32, %arg1: memref<1x8x32xf32, #tpu.memory_space<vmem>>, %arg2: memref<32x96xbf16, #tpu.memory_space<vmem>>, %arg3: memref<1x96xf32, #tpu.memory_space<vmem>>, %arg4: memref<32x32xbf16, #tpu.memory_space<vmem>>, %arg5: memref<1x32xf32, #tpu.memory_space<vmem>>, %arg6: memref<1x32xf32, #tpu.memory_space<vmem>>, %arg7: memref<1x32xf32, #tpu.memory_space<vmem>>, %arg8: memref<1x8x32xf32, #tpu.memory_space<vmem>>) attributes {dimension_semantics = [#tpu.dimension_semantics<parallel>], iteration_bounds = array<i64: 2>, scalar_prefetch = 0 : i64, scratch_operands = 0 : i64, tpu.core_type = #tpu.core_type<tc>, window_params = [{transform_indices = @transform_0, window_bounds = array<i64: 1, 8, 32>}, {pipeline_mode = #tpu.pipeline_mode<synchronous>, transform_indices = @transform_1, window_bounds = array<i64: 32, 96>}, {pipeline_mode = #tpu.pipeline_mode<synchronous>, transform_indices = @transform_2, window_bounds = array<i64: 1, 96>}, {pipeline_mode = #tpu.pipeline_mode<synchronous>, transform_indices = @transform_3, window_bounds = array<i64: 32, 32>}, {pipeline_mode = #tpu.pipeline_mode<synchronous>, transform_indices = @transform_4, window_bounds = array<i64: 1, 32>}, {pipeline_mode = #tpu.pipeline_mode<synchronous>, transform_indices = @transform_5, window_bounds = array<i64: 1, 32>}, {pipeline_mode = #tpu.pipeline_mode<synchronous>, transform_indices = @transform_6, window_bounds = array<i64: 1, 32>}, {transform_indices = @transform_7, window_bounds = array<i64: 1, 8, 32>}]} {
    %c0 = arith.constant 0 : index
    %c0_0 = arith.constant 0 : index
    %c0_1 = arith.constant 0 : index
    %0 = vector.load %arg1[%c0, %c0_0, %c0_1] : memref<1x8x32xf32, #tpu.memory_space<vmem>>, vector<1x8x32xf32>
    %1 = vector.shape_cast %0 : vector<1x8x32xf32> to vector<8x32xf32>
    %2 = arith.truncf %1 : vector<8x32xf32> to vector<8x32xbf16>
    %c0_2 = arith.constant 0 : index
    %c0_3 = arith.constant 0 : index
    %3 = vector.load %arg2[%c0_2, %c0_3] : memref<32x96xbf16, #tpu.memory_space<vmem>>, vector<32x96xbf16>
    %cst = arith.constant dense<0.000000e+00> : vector<8x96xf32>
    %4 = tpu.matmul %2, %3, %cst {dimension_numbers = #tpu.dot_dimension_numbers<[1], [0], [0], [1], [0, 0, 1, 1], [], []>} : vector<8x32xbf16>, vector<32x96xbf16>, vector<8x96xf32> -> vector<8x96xf32>
    %c0_4 = arith.constant 0 : index
    %c0_5 = arith.constant 0 : index
    %5 = vector.load %arg3[%c0_4, %c0_5] : memref<1x96xf32, #tpu.memory_space<vmem>>, vector<1x96xf32>
    %6 = vector.broadcast %5 : vector<1x96xf32> to vector<8x96xf32>
    %7 = arith.addf %4, %6 : vector<8x96xf32>
    %8 = vector.extract_strided_slice %7 {offsets = [0, 0], sizes = [8, 32], strides = [1, 1]} : vector<8x96xf32> to vector<8x32xf32>
    %9 = vector.extract_strided_slice %7 {offsets = [0, 32], sizes = [8, 32], strides = [1, 1]} : vector<8x96xf32> to vector<8x32xf32>
    %10 = vector.extract_strided_slice %7 {offsets = [0, 64], sizes = [8, 32], strides = [1, 1]} : vector<8x96xf32> to vector<8x32xf32>
    %11 = vector.extract_strided_slice %8 {offsets = [0, 0], sizes = [8, 8], strides = [1, 1]} : vector<8x32xf32> to vector<8x8xf32>
    %12 = arith.truncf %11 : vector<8x8xf32> to vector<8x8xbf16>
    %13 = vector.extract_strided_slice %9 {offsets = [0, 0], sizes = [8, 8], strides = [1, 1]} : vector<8x32xf32> to vector<8x8xf32>
    %14 = arith.truncf %13 : vector<8x8xf32> to vector<8x8xbf16>
    %15 = vector.extract_strided_slice %10 {offsets = [0, 0], sizes = [8, 8], strides = [1, 1]} : vector<8x32xf32> to vector<8x8xf32>
    %16 = arith.truncf %15 : vector<8x8xf32> to vector<8x8xbf16>
    %cst_6 = arith.constant dense<0.000000e+00> : vector<8x8xf32>
    %17 = tpu.matmul %12, %14, %cst_6 {dimension_numbers = #tpu.dot_dimension_numbers<[1], [1], [0], [0], [0, 0, 1, 0], [], []>} : vector<8x8xbf16>, vector<8x8xbf16>, vector<8x8xf32> -> vector<8x8xf32>
    %cst_7 = arith.constant 0.353553385 : f32
    %18 = vector.broadcast %cst_7 : f32 to vector<8x8xf32>
    %19 = arith.mulf %17, %18 : vector<8x8xf32>
    %cst_8 = arith.constant dense<0xFF800000> : vector<8xf32>
    %20 = vector.multi_reduction <maximumf>, %19, %cst_8 [1] : vector<8x8xf32> to vector<8xf32>
    %21 = vector.shape_cast %20 : vector<8xf32> to vector<8x1xf32>
    %22 = vector.broadcast %21 : vector<8x1xf32> to vector<8x8xf32>
    %23 = arith.subf %19, %22 : vector<8x8xf32>
    %24 = math.exp %23 : vector<8x8xf32>
    %cst_9 = arith.constant dense<0.000000e+00> : vector<8xf32>
    %25 = vector.multi_reduction <add>, %24, %cst_9 [1] : vector<8x8xf32> to vector<8xf32>
    %26 = vector.shape_cast %25 : vector<8xf32> to vector<8x1xf32>
    %27 = arith.truncf %24 : vector<8x8xf32> to vector<8x8xbf16>
    %cst_10 = arith.constant dense<0.000000e+00> : vector<8x8xf32>
    %28 = tpu.matmul %27, %16, %cst_10 {dimension_numbers = #tpu.dot_dimension_numbers<[1], [0], [0], [1], [0, 0, 1, 1], [], []>} : vector<8x8xbf16>, vector<8x8xbf16>, vector<8x8xf32> -> vector<8x8xf32>
    %29 = tpu.reciprocal %26 {approx = true} : vector<8x1xf32> -> vector<8x1xf32>
    %30 = vector.broadcast %29 : vector<8x1xf32> to vector<8x8xf32>
    %31 = arith.mulf %28, %30 : vector<8x8xf32>
    %32 = vector.extract_strided_slice %8 {offsets = [0, 8], sizes = [8, 8], strides = [1, 1]} : vector<8x32xf32> to vector<8x8xf32>
    %33 = arith.truncf %32 : vector<8x8xf32> to vector<8x8xbf16>
    %34 = vector.extract_strided_slice %9 {offsets = [0, 8], sizes = [8, 8], strides = [1, 1]} : vector<8x32xf32> to vector<8x8xf32>
    %35 = arith.truncf %34 : vector<8x8xf32> to vector<8x8xbf16>
    %36 = vector.extract_strided_slice %10 {offsets = [0, 8], sizes = [8, 8], strides = [1, 1]} : vector<8x32xf32> to vector<8x8xf32>
    %37 = arith.truncf %36 : vector<8x8xf32> to vector<8x8xbf16>
    %cst_11 = arith.constant dense<0.000000e+00> : vector<8x8xf32>
    %38 = tpu.matmul %33, %35, %cst_11 {dimension_numbers = #tpu.dot_dimension_numbers<[1], [1], [0], [0], [0, 0, 1, 0], [], []>} : vector<8x8xbf16>, vector<8x8xbf16>, vector<8x8xf32> -> vector<8x8xf32>
    %cst_12 = arith.constant 0.353553385 : f32
    %39 = vector.broadcast %cst_12 : f32 to vector<8x8xf32>
    %40 = arith.mulf %38, %39 : vector<8x8xf32>
    %cst_13 = arith.constant dense<0xFF800000> : vector<8xf32>
    %41 = vector.multi_reduction <maximumf>, %40, %cst_13 [1] : vector<8x8xf32> to vector<8xf32>
    %42 = vector.shape_cast %41 : vector<8xf32> to vector<8x1xf32>
    %43 = vector.broadcast %42 : vector<8x1xf32> to vector<8x8xf32>
    %44 = arith.subf %40, %43 : vector<8x8xf32>
    %45 = math.exp %44 : vector<8x8xf32>
    %cst_14 = arith.constant dense<0.000000e+00> : vector<8xf32>
    %46 = vector.multi_reduction <add>, %45, %cst_14 [1] : vector<8x8xf32> to vector<8xf32>
    %47 = vector.shape_cast %46 : vector<8xf32> to vector<8x1xf32>
    %48 = arith.truncf %45 : vector<8x8xf32> to vector<8x8xbf16>
    %cst_15 = arith.constant dense<0.000000e+00> : vector<8x8xf32>
    %49 = tpu.matmul %48, %37, %cst_15 {dimension_numbers = #tpu.dot_dimension_numbers<[1], [0], [0], [1], [0, 0, 1, 1], [], []>} : vector<8x8xbf16>, vector<8x8xbf16>, vector<8x8xf32> -> vector<8x8xf32>
    %50 = tpu.reciprocal %47 {approx = true} : vector<8x1xf32> -> vector<8x1xf32>
    %51 = vector.broadcast %50 : vector<8x1xf32> to vector<8x8xf32>
    %52 = arith.mulf %49, %51 : vector<8x8xf32>
    %53 = vector.extract_strided_slice %8 {offsets = [0, 16], sizes = [8, 8], strides = [1, 1]} : vector<8x32xf32> to vector<8x8xf32>
    %54 = arith.truncf %53 : vector<8x8xf32> to vector<8x8xbf16>
    %55 = vector.extract_strided_slice %9 {offsets = [0, 16], sizes = [8, 8], strides = [1, 1]} : vector<8x32xf32> to vector<8x8xf32>
    %56 = arith.truncf %55 : vector<8x8xf32> to vector<8x8xbf16>
    %57 = vector.extract_strided_slice %10 {offsets = [0, 16], sizes = [8, 8], strides = [1, 1]} : vector<8x32xf32> to vector<8x8xf32>
    %58 = arith.truncf %57 : vector<8x8xf32> to vector<8x8xbf16>
    %cst_16 = arith.constant dense<0.000000e+00> : vector<8x8xf32>
    %59 = tpu.matmul %54, %56, %cst_16 {dimension_numbers = #tpu.dot_dimension_numbers<[1], [1], [0], [0], [0, 0, 1, 0], [], []>} : vector<8x8xbf16>, vector<8x8xbf16>, vector<8x8xf32> -> vector<8x8xf32>
    %cst_17 = arith.constant 0.353553385 : f32
    %60 = vector.broadcast %cst_17 : f32 to vector<8x8xf32>
    %61 = arith.mulf %59, %60 : vector<8x8xf32>
    %cst_18 = arith.constant dense<0xFF800000> : vector<8xf32>
    %62 = vector.multi_reduction <maximumf>, %61, %cst_18 [1] : vector<8x8xf32> to vector<8xf32>
    %63 = vector.shape_cast %62 : vector<8xf32> to vector<8x1xf32>
    %64 = vector.broadcast %63 : vector<8x1xf32> to vector<8x8xf32>
    %65 = arith.subf %61, %64 : vector<8x8xf32>
    %66 = math.exp %65 : vector<8x8xf32>
    %cst_19 = arith.constant dense<0.000000e+00> : vector<8xf32>
    %67 = vector.multi_reduction <add>, %66, %cst_19 [1] : vector<8x8xf32> to vector<8xf32>
    %68 = vector.shape_cast %67 : vector<8xf32> to vector<8x1xf32>
    %69 = arith.truncf %66 : vector<8x8xf32> to vector<8x8xbf16>
    %cst_20 = arith.constant dense<0.000000e+00> : vector<8x8xf32>
    %70 = tpu.matmul %69, %58, %cst_20 {dimension_numbers = #tpu.dot_dimension_numbers<[1], [0], [0], [1], [0, 0, 1, 1], [], []>} : vector<8x8xbf16>, vector<8x8xbf16>, vector<8x8xf32> -> vector<8x8xf32>
    %71 = tpu.reciprocal %68 {approx = true} : vector<8x1xf32> -> vector<8x1xf32>
    %72 = vector.broadcast %71 : vector<8x1xf32> to vector<8x8xf32>
    %73 = arith.mulf %70, %72 : vector<8x8xf32>
    %74 = vector.extract_strided_slice %8 {offsets = [0, 24], sizes = [8, 8], strides = [1, 1]} : vector<8x32xf32> to vector<8x8xf32>
    %75 = arith.truncf %74 : vector<8x8xf32> to vector<8x8xbf16>
    %76 = vector.extract_strided_slice %9 {offsets = [0, 24], sizes = [8, 8], strides = [1, 1]} : vector<8x32xf32> to vector<8x8xf32>
    %77 = arith.truncf %76 : vector<8x8xf32> to vector<8x8xbf16>
    %78 = vector.extract_strided_slice %10 {offsets = [0, 24], sizes = [8, 8], strides = [1, 1]} : vector<8x32xf32> to vector<8x8xf32>
    %79 = arith.truncf %78 : vector<8x8xf32> to vector<8x8xbf16>
    %cst_21 = arith.constant dense<0.000000e+00> : vector<8x8xf32>
    %80 = tpu.matmul %75, %77, %cst_21 {dimension_numbers = #tpu.dot_dimension_numbers<[1], [1], [0], [0], [0, 0, 1, 0], [], []>} : vector<8x8xbf16>, vector<8x8xbf16>, vector<8x8xf32> -> vector<8x8xf32>
    %cst_22 = arith.constant 0.353553385 : f32
    %81 = vector.broadcast %cst_22 : f32 to vector<8x8xf32>
    %82 = arith.mulf %80, %81 : vector<8x8xf32>
    %cst_23 = arith.constant dense<0xFF800000> : vector<8xf32>
    %83 = vector.multi_reduction <maximumf>, %82, %cst_23 [1] : vector<8x8xf32> to vector<8xf32>
    %84 = vector.shape_cast %83 : vector<8xf32> to vector<8x1xf32>
    %85 = vector.broadcast %84 : vector<8x1xf32> to vector<8x8xf32>
    %86 = arith.subf %82, %85 : vector<8x8xf32>
    %87 = math.exp %86 : vector<8x8xf32>
    %cst_24 = arith.constant dense<0.000000e+00> : vector<8xf32>
    %88 = vector.multi_reduction <add>, %87, %cst_24 [1] : vector<8x8xf32> to vector<8xf32>
    %89 = vector.shape_cast %88 : vector<8xf32> to vector<8x1xf32>
    %90 = arith.truncf %87 : vector<8x8xf32> to vector<8x8xbf16>
    %cst_25 = arith.constant dense<0.000000e+00> : vector<8x8xf32>
    %91 = tpu.matmul %90, %79, %cst_25 {dimension_numbers = #tpu.dot_dimension_numbers<[1], [0], [0], [1], [0, 0, 1, 1], [], []>} : vector<8x8xbf16>, vector<8x8xbf16>, vector<8x8xf32> -> vector<8x8xf32>
    %92 = tpu.reciprocal %89 {approx = true} : vector<8x1xf32> -> vector<8x1xf32>
    %93 = vector.broadcast %92 : vector<8x1xf32> to vector<8x8xf32>
    %94 = arith.mulf %91, %93 : vector<8x8xf32>
    %95 = tpu.concatenate %31, %52, %73, %94 in 1 : vector<8x8xf32>, vector<8x8xf32>, vector<8x8xf32>, vector<8x8xf32> -> vector<8x32xf32>
    %96 = arith.truncf %95 : vector<8x32xf32> to vector<8x32xbf16>
    %c0_26 = arith.constant 0 : index
    %c0_27 = arith.constant 0 : index
    %97 = vector.load %arg4[%c0_26, %c0_27] : memref<32x32xbf16, #tpu.memory_space<vmem>>, vector<32x32xbf16>
    %cst_28 = arith.constant dense<0.000000e+00> : vector<8x32xf32>
    %98 = tpu.matmul %96, %97, %cst_28 {dimension_numbers = #tpu.dot_dimension_numbers<[1], [0], [0], [1], [0, 0, 1, 1], [], []>} : vector<8x32xbf16>, vector<32x32xbf16>, vector<8x32xf32> -> vector<8x32xf32>
    %c0_29 = arith.constant 0 : index
    %c0_30 = arith.constant 0 : index
    %99 = vector.load %arg5[%c0_29, %c0_30] : memref<1x32xf32, #tpu.memory_space<vmem>>, vector<1x32xf32>
    %100 = vector.broadcast %99 : vector<1x32xf32> to vector<8x32xf32>
    %101 = arith.addf %98, %100 : vector<8x32xf32>
    %102 = arith.addf %1, %101 : vector<8x32xf32>
    %c0_31 = arith.constant 0 : index
    %c0_32 = arith.constant 0 : index
    %103 = vector.load %arg6[%c0_31, %c0_32] : memref<1x32xf32, #tpu.memory_space<vmem>>, vector<1x32xf32>
    %c0_33 = arith.constant 0 : index
    %c0_34 = arith.constant 0 : index
    %104 = vector.load %arg7[%c0_33, %c0_34] : memref<1x32xf32, #tpu.memory_space<vmem>>, vector<1x32xf32>
    %cst_35 = arith.constant dense<0.000000e+00> : vector<8xf32>
    %105 = vector.multi_reduction <add>, %102, %cst_35 [1] : vector<8x32xf32> to vector<8xf32>
    %106 = vector.shape_cast %105 : vector<8xf32> to vector<8x1xf32>
    %cst_36 = arith.constant 3.200000e+01 : f32
    %107 = vector.broadcast %cst_36 : f32 to vector<8x1xf32>
    %108 = arith.divf %106, %107 : vector<8x1xf32>
    %109 = vector.broadcast %108 : vector<8x1xf32> to vector<8x32xf32>
    %110 = arith.subf %102, %109 : vector<8x32xf32>
    %111 = arith.mulf %110, %110 : vector<8x32xf32>
    %cst_37 = arith.constant dense<0.000000e+00> : vector<8xf32>
    %112 = vector.multi_reduction <add>, %111, %cst_37 [1] : vector<8x32xf32> to vector<8xf32>
    %113 = vector.shape_cast %112 : vector<8xf32> to vector<8x1xf32>
    %cst_38 = arith.constant 3.200000e+01 : f32
    %114 = vector.broadcast %cst_38 : f32 to vector<8x1xf32>
    %115 = arith.divf %113, %114 : vector<8x1xf32>
    %116 = vector.broadcast %108 : vector<8x1xf32> to vector<8x32xf32>
    %117 = arith.subf %102, %116 : vector<8x32xf32>
    %cst_39 = arith.constant 9.99999974E-6 : f32
    %118 = vector.broadcast %cst_39 : f32 to vector<8x1xf32>
    %119 = arith.addf %115, %118 : vector<8x1xf32>
    %120 = math.rsqrt %119 : vector<8x1xf32>
    %121 = vector.broadcast %120 : vector<8x1xf32> to vector<8x32xf32>
    %122 = arith.mulf %117, %121 : vector<8x32xf32>
    %123 = vector.broadcast %103 : vector<1x32xf32> to vector<8x32xf32>
    %124 = arith.mulf %122, %123 : vector<8x32xf32>
    %125 = vector.broadcast %104 : vector<1x32xf32> to vector<8x32xf32>
    %126 = arith.addf %124, %125 : vector<8x32xf32>
    %c0_40 = arith.constant 0 : index
    %c0_41 = arith.constant 0 : index
    %c0_42 = arith.constant 0 : index
    %127 = vector.load %arg8[%c0_40, %c0_41, %c0_42] : memref<1x8x32xf32, #tpu.memory_space<vmem>>, vector<1x8x32xf32>
    %128 = vector.shape_cast %127 : vector<1x8x32xf32> to vector<8x32xf32>
    %129 = vector.shape_cast %126 : vector<8x32xf32> to vector<1x8x32xf32>
    tpu.vector_store %arg8[%c0_40, %c0_41, %c0_42], %129 {strides = array<i32>} : memref<1x8x32xf32, #tpu.memory_space<vmem>>, vector<1x8x32xf32>,
    return
  }
  func.func @transform_0(%arg0: i32) -> (i32, i32, i32) {
    %c0_i32 = arith.constant 0 : i32
    %c0_i32_0 = arith.constant 0 : i32
    %c0_i32_1 = arith.constant 0 : i32
    return %arg0, %c0_i32, %c0_i32_0 : i32, i32, i32
  }
  func.func @transform_1(%arg0: i32) -> (i32, i32) {
    %c0_i32 = arith.constant 0 : i32
    %c0_i32_0 = arith.constant 0 : i32
    %c0_i32_1 = arith.constant 0 : i32
    return %c0_i32, %c0_i32_0 : i32, i32
  }
  func.func @transform_2(%arg0: i32) -> (i32, i32) {
    %c0_i32 = arith.constant 0 : i32
    %c0_i32_0 = arith.constant 0 : i32
    %c0_i32_1 = arith.constant 0 : i32
    return %c0_i32, %c0_i32_0 : i32, i32
  }
  func.func @transform_3(%arg0: i32) -> (i32, i32) {
    %c0_i32 = arith.constant 0 : i32
    %c0_i32_0 = arith.constant 0 : i32
    %c0_i32_1 = arith.constant 0 : i32
    return %c0_i32, %c0_i32_0 : i32, i32
  }
  func.func @transform_4(%arg0: i32) -> (i32, i32) {
    %c0_i32 = arith.constant 0 : i32
    %c0_i32_0 = arith.constant 0 : i32
    %c0_i32_1 = arith.constant 0 : i32
    return %c0_i32, %c0_i32_0 : i32, i32
  }
  func.func @transform_5(%arg0: i32) -> (i32, i32) {
    %c0_i32 = arith.constant 0 : i32
    %c0_i32_0 = arith.constant 0 : i32
    %c0_i32_1 = arith.constant 0 : i32
    return %c0_i32, %c0_i32_0 : i32, i32
  }
  func.func @transform_6(%arg0: i32) -> (i32, i32) {
    %c0_i32 = arith.constant 0 : i32
    %c0_i32_0 = arith.constant 0 : i32
    %c0_i32_1 = arith.constant 0 : i32
    return %c0_i32, %c0_i32_0 : i32, i32
  }
  func.func @transform_7(%arg0: i32) -> (i32, i32, i32) {
    %c0_i32 = arith.constant 0 : i32
    %c0_i32_0 = arith.constant 0 : i32
    %c0_i32_1 = arith.constant 0 : i32
    return %arg0, %c0_i32, %c0_i32_0 : i32, i32, i32
  }
}

module attributes {stable_mosaic.version = 11 : i64} {
  func.func @_layernorm_kernel(%arg0: i32, %arg1: memref<8x32xf32, #tpu.memory_space<vmem>>, %arg2: memref<1x32xf32, #tpu.memory_space<vmem>>, %arg3: memref<1x32xf32, #tpu.memory_space<vmem>>, %arg4: memref<8x32xf32, #tpu.memory_space<vmem>>) attributes {dimension_semantics = [#tpu.dimension_semantics<parallel>], iteration_bounds = array<i64: 2>, scalar_prefetch = 0 : i64, scratch_operands = 0 : i64, tpu.core_type = #tpu.core_type<tc>, window_params = [{transform_indices = @transform_0, window_bounds = array<i64: 8, 32>}, {pipeline_mode = #tpu.pipeline_mode<synchronous>, transform_indices = @transform_1, window_bounds = array<i64: 1, 32>}, {pipeline_mode = #tpu.pipeline_mode<synchronous>, transform_indices = @transform_2, window_bounds = array<i64: 1, 32>}, {transform_indices = @transform_3, window_bounds = array<i64: 8, 32>}]} {
    %c0 = arith.constant 0 : index
    %c0_0 = arith.constant 0 : index
    %0 = vector.load %arg1[%c0, %c0_0] : memref<8x32xf32, #tpu.memory_space<vmem>>, vector<8x32xf32>
    %c0_1 = arith.constant 0 : index
    %c0_2 = arith.constant 0 : index
    %1 = vector.load %arg2[%c0_1, %c0_2] : memref<1x32xf32, #tpu.memory_space<vmem>>, vector<1x32xf32>
    %c0_3 = arith.constant 0 : index
    %c0_4 = arith.constant 0 : index
    %2 = vector.load %arg3[%c0_3, %c0_4] : memref<1x32xf32, #tpu.memory_space<vmem>>, vector<1x32xf32>
    %cst = arith.constant dense<0.000000e+00> : vector<8xf32>
    %3 = vector.multi_reduction <add>, %0, %cst [1] : vector<8x32xf32> to vector<8xf32>
    %4 = vector.shape_cast %3 : vector<8xf32> to vector<8x1xf32>
    %cst_5 = arith.constant 3.200000e+01 : f32
    %5 = vector.broadcast %cst_5 : f32 to vector<8x1xf32>
    %6 = arith.divf %4, %5 : vector<8x1xf32>
    %7 = vector.broadcast %6 : vector<8x1xf32> to vector<8x32xf32>
    %8 = arith.subf %0, %7 : vector<8x32xf32>
    %9 = arith.mulf %8, %8 : vector<8x32xf32>
    %cst_6 = arith.constant dense<0.000000e+00> : vector<8xf32>
    %10 = vector.multi_reduction <add>, %9, %cst_6 [1] : vector<8x32xf32> to vector<8xf32>
    %11 = vector.shape_cast %10 : vector<8xf32> to vector<8x1xf32>
    %cst_7 = arith.constant 3.200000e+01 : f32
    %12 = vector.broadcast %cst_7 : f32 to vector<8x1xf32>
    %13 = arith.divf %11, %12 : vector<8x1xf32>
    %14 = vector.broadcast %6 : vector<8x1xf32> to vector<8x32xf32>
    %15 = arith.subf %0, %14 : vector<8x32xf32>
    %cst_8 = arith.constant 9.99999974E-6 : f32
    %16 = vector.broadcast %cst_8 : f32 to vector<8x1xf32>
    %17 = arith.addf %13, %16 : vector<8x1xf32>
    %18 = math.rsqrt %17 : vector<8x1xf32>
    %19 = vector.broadcast %18 : vector<8x1xf32> to vector<8x32xf32>
    %20 = arith.mulf %15, %19 : vector<8x32xf32>
    %21 = vector.broadcast %1 : vector<1x32xf32> to vector<8x32xf32>
    %22 = arith.mulf %20, %21 : vector<8x32xf32>
    %23 = vector.broadcast %2 : vector<1x32xf32> to vector<8x32xf32>
    %24 = arith.addf %22, %23 : vector<8x32xf32>
    %c0_9 = arith.constant 0 : index
    %c0_10 = arith.constant 0 : index
    %25 = vector.load %arg4[%c0_9, %c0_10] : memref<8x32xf32, #tpu.memory_space<vmem>>, vector<8x32xf32>
    tpu.vector_store %arg4[%c0_9, %c0_10], %24 {strides = array<i32>} : memref<8x32xf32, #tpu.memory_space<vmem>>, vector<8x32xf32>,
    return
  }
  func.func @transform_0(%arg0: i32) -> (i32, i32) {
    %c0_i32 = arith.constant 0 : i32
    %c0_i32_0 = arith.constant 0 : i32
    return %arg0, %c0_i32 : i32, i32
  }
  func.func @transform_1(%arg0: i32) -> (i32, i32) {
    %c0_i32 = arith.constant 0 : i32
    %c0_i32_0 = arith.constant 0 : i32
    %c0_i32_1 = arith.constant 0 : i32
    return %c0_i32, %c0_i32_0 : i32, i32
  }
  func.func @transform_2(%arg0: i32) -> (i32, i32) {
    %c0_i32 = arith.constant 0 : i32
    %c0_i32_0 = arith.constant 0 : i32
    %c0_i32_1 = arith.constant 0 : i32
    return %c0_i32, %c0_i32_0 : i32, i32
  }
  func.func @transform_3(%arg0: i32) -> (i32, i32) {
    %c0_i32 = arith.constant 0 : i32
    %c0_i32_0 = arith.constant 0 : i32
    return %arg0, %c0_i32 : i32, i32
  }
}

module attributes {stable_mosaic.version = 11 : i64} {
  func.func @_self_attn_ln_kernel(%arg0: i32, %arg1: memref<1x8x32xf32, #tpu.memory_space<vmem>>, %arg2: memref<32x96xbf16, #tpu.memory_space<vmem>>, %arg3: memref<1x96xf32, #tpu.memory_space<vmem>>, %arg4: memref<32x32xbf16, #tpu.memory_space<vmem>>, %arg5: memref<1x32xf32, #tpu.memory_space<vmem>>, %arg6: memref<1x32xf32, #tpu.memory_space<vmem>>, %arg7: memref<1x32xf32, #tpu.memory_space<vmem>>, %arg8: memref<1x1x8xf32, #tpu.memory_space<vmem>>, %arg9: memref<1x8x32xf32, #tpu.memory_space<vmem>>) attributes {dimension_semantics = [#tpu.dimension_semantics<parallel>], iteration_bounds = array<i64: 2>, scalar_prefetch = 0 : i64, scratch_operands = 0 : i64, tpu.core_type = #tpu.core_type<tc>, window_params = [{transform_indices = @transform_0, window_bounds = array<i64: 1, 8, 32>}, {pipeline_mode = #tpu.pipeline_mode<synchronous>, transform_indices = @transform_1, window_bounds = array<i64: 32, 96>}, {pipeline_mode = #tpu.pipeline_mode<synchronous>, transform_indices = @transform_2, window_bounds = array<i64: 1, 96>}, {pipeline_mode = #tpu.pipeline_mode<synchronous>, transform_indices = @transform_3, window_bounds = array<i64: 32, 32>}, {pipeline_mode = #tpu.pipeline_mode<synchronous>, transform_indices = @transform_4, window_bounds = array<i64: 1, 32>}, {pipeline_mode = #tpu.pipeline_mode<synchronous>, transform_indices = @transform_5, window_bounds = array<i64: 1, 32>}, {pipeline_mode = #tpu.pipeline_mode<synchronous>, transform_indices = @transform_6, window_bounds = array<i64: 1, 32>}, {transform_indices = @transform_7, window_bounds = array<i64: 1, 1, 8>}, {transform_indices = @transform_8, window_bounds = array<i64: 1, 8, 32>}]} {
    %c0 = arith.constant 0 : index
    %c0_0 = arith.constant 0 : index
    %c0_1 = arith.constant 0 : index
    %0 = vector.load %arg1[%c0, %c0_0, %c0_1] : memref<1x8x32xf32, #tpu.memory_space<vmem>>, vector<1x8x32xf32>
    %1 = vector.shape_cast %0 : vector<1x8x32xf32> to vector<8x32xf32>
    %2 = arith.truncf %1 : vector<8x32xf32> to vector<8x32xbf16>
    %c0_2 = arith.constant 0 : index
    %c0_3 = arith.constant 0 : index
    %3 = vector.load %arg2[%c0_2, %c0_3] : memref<32x96xbf16, #tpu.memory_space<vmem>>, vector<32x96xbf16>
    %cst = arith.constant dense<0.000000e+00> : vector<8x96xf32>
    %4 = tpu.matmul %2, %3, %cst {dimension_numbers = #tpu.dot_dimension_numbers<[1], [0], [0], [1], [0, 0, 1, 1], [], []>} : vector<8x32xbf16>, vector<32x96xbf16>, vector<8x96xf32> -> vector<8x96xf32>
    %c0_4 = arith.constant 0 : index
    %c0_5 = arith.constant 0 : index
    %5 = vector.load %arg3[%c0_4, %c0_5] : memref<1x96xf32, #tpu.memory_space<vmem>>, vector<1x96xf32>
    %6 = vector.broadcast %5 : vector<1x96xf32> to vector<8x96xf32>
    %7 = arith.addf %4, %6 : vector<8x96xf32>
    %8 = vector.extract_strided_slice %7 {offsets = [0, 0], sizes = [8, 32], strides = [1, 1]} : vector<8x96xf32> to vector<8x32xf32>
    %9 = vector.extract_strided_slice %7 {offsets = [0, 32], sizes = [8, 32], strides = [1, 1]} : vector<8x96xf32> to vector<8x32xf32>
    %10 = vector.extract_strided_slice %7 {offsets = [0, 64], sizes = [8, 32], strides = [1, 1]} : vector<8x96xf32> to vector<8x32xf32>
    %11 = tpu.iota {dimensions = array<i32: 0>} : vector<8x8xi32>
    %12 = tpu.iota {dimensions = array<i32: 1>} : vector<8x8xi32>
    %13 = arith.cmpi sge, %11, %12 : vector<8x8xi32>
    %cst_6 = arith.constant 0.000000e+00 : f32
    %cst_7 = arith.constant 0xFF800000 : f32
    %14 = vector.broadcast %cst_6 : f32 to vector<8x8xf32>
    %15 = vector.broadcast %cst_7 : f32 to vector<8x8xf32>
    %16 = arith.select %13, %14, %15 : vector<8x8xi1>, vector<8x8xf32>
    %c0_8 = arith.constant 0 : index
    %c0_9 = arith.constant 0 : index
    %c0_10 = arith.constant 0 : index
    %17 = vector.load %arg8[%c0_8, %c0_9, %c0_10] : memref<1x1x8xf32, #tpu.memory_space<vmem>>, vector<1x1x8xf32>
    %18 = vector.shape_cast %17 : vector<1x1x8xf32> to vector<1x8xf32>
    %19 = vector.broadcast %18 : vector<1x8xf32> to vector<8x8xf32>
    %20 = arith.addf %16, %19 : vector<8x8xf32>
    %21 = vector.extract_strided_slice %8 {offsets = [0, 0], sizes = [8, 8], strides = [1, 1]} : vector<8x32xf32> to vector<8x8xf32>
    %22 = arith.truncf %21 : vector<8x8xf32> to vector<8x8xbf16>
    %23 = vector.extract_strided_slice %9 {offsets = [0, 0], sizes = [8, 8], strides = [1, 1]} : vector<8x32xf32> to vector<8x8xf32>
    %24 = arith.truncf %23 : vector<8x8xf32> to vector<8x8xbf16>
    %25 = vector.extract_strided_slice %10 {offsets = [0, 0], sizes = [8, 8], strides = [1, 1]} : vector<8x32xf32> to vector<8x8xf32>
    %26 = arith.truncf %25 : vector<8x8xf32> to vector<8x8xbf16>
    %cst_11 = arith.constant dense<0.000000e+00> : vector<8x8xf32>
    %27 = tpu.matmul %22, %24, %cst_11 {dimension_numbers = #tpu.dot_dimension_numbers<[1], [1], [0], [0], [0, 0, 1, 0], [], []>} : vector<8x8xbf16>, vector<8x8xbf16>, vector<8x8xf32> -> vector<8x8xf32>
    %cst_12 = arith.constant 0.353553385 : f32
    %28 = vector.broadcast %cst_12 : f32 to vector<8x8xf32>
    %29 = arith.mulf %27, %28 : vector<8x8xf32>
    %30 = arith.addf %29, %20 : vector<8x8xf32>
    %cst_13 = arith.constant dense<0xFF800000> : vector<8xf32>
    %31 = vector.multi_reduction <maximumf>, %30, %cst_13 [1] : vector<8x8xf32> to vector<8xf32>
    %32 = vector.shape_cast %31 : vector<8xf32> to vector<8x1xf32>
    %33 = vector.broadcast %32 : vector<8x1xf32> to vector<8x8xf32>
    %34 = arith.subf %30, %33 : vector<8x8xf32>
    %35 = math.exp %34 : vector<8x8xf32>
    %cst_14 = arith.constant dense<0.000000e+00> : vector<8xf32>
    %36 = vector.multi_reduction <add>, %35, %cst_14 [1] : vector<8x8xf32> to vector<8xf32>
    %37 = vector.shape_cast %36 : vector<8xf32> to vector<8x1xf32>
    %38 = arith.truncf %35 : vector<8x8xf32> to vector<8x8xbf16>
    %cst_15 = arith.constant dense<0.000000e+00> : vector<8x8xf32>
    %39 = tpu.matmul %38, %26, %cst_15 {dimension_numbers = #tpu.dot_dimension_numbers<[1], [0], [0], [1], [0, 0, 1, 1], [], []>} : vector<8x8xbf16>, vector<8x8xbf16>, vector<8x8xf32> -> vector<8x8xf32>
    %40 = tpu.reciprocal %37 {approx = true} : vector<8x1xf32> -> vector<8x1xf32>
    %41 = vector.broadcast %40 : vector<8x1xf32> to vector<8x8xf32>
    %42 = arith.mulf %39, %41 : vector<8x8xf32>
    %43 = vector.extract_strided_slice %8 {offsets = [0, 8], sizes = [8, 8], strides = [1, 1]} : vector<8x32xf32> to vector<8x8xf32>
    %44 = arith.truncf %43 : vector<8x8xf32> to vector<8x8xbf16>
    %45 = vector.extract_strided_slice %9 {offsets = [0, 8], sizes = [8, 8], strides = [1, 1]} : vector<8x32xf32> to vector<8x8xf32>
    %46 = arith.truncf %45 : vector<8x8xf32> to vector<8x8xbf16>
    %47 = vector.extract_strided_slice %10 {offsets = [0, 8], sizes = [8, 8], strides = [1, 1]} : vector<8x32xf32> to vector<8x8xf32>
    %48 = arith.truncf %47 : vector<8x8xf32> to vector<8x8xbf16>
    %cst_16 = arith.constant dense<0.000000e+00> : vector<8x8xf32>
    %49 = tpu.matmul %44, %46, %cst_16 {dimension_numbers = #tpu.dot_dimension_numbers<[1], [1], [0], [0], [0, 0, 1, 0], [], []>} : vector<8x8xbf16>, vector<8x8xbf16>, vector<8x8xf32> -> vector<8x8xf32>
    %cst_17 = arith.constant 0.353553385 : f32
    %50 = vector.broadcast %cst_17 : f32 to vector<8x8xf32>
    %51 = arith.mulf %49, %50 : vector<8x8xf32>
    %52 = arith.addf %51, %20 : vector<8x8xf32>
    %cst_18 = arith.constant dense<0xFF800000> : vector<8xf32>
    %53 = vector.multi_reduction <maximumf>, %52, %cst_18 [1] : vector<8x8xf32> to vector<8xf32>
    %54 = vector.shape_cast %53 : vector<8xf32> to vector<8x1xf32>
    %55 = vector.broadcast %54 : vector<8x1xf32> to vector<8x8xf32>
    %56 = arith.subf %52, %55 : vector<8x8xf32>
    %57 = math.exp %56 : vector<8x8xf32>
    %cst_19 = arith.constant dense<0.000000e+00> : vector<8xf32>
    %58 = vector.multi_reduction <add>, %57, %cst_19 [1] : vector<8x8xf32> to vector<8xf32>
    %59 = vector.shape_cast %58 : vector<8xf32> to vector<8x1xf32>
    %60 = arith.truncf %57 : vector<8x8xf32> to vector<8x8xbf16>
    %cst_20 = arith.constant dense<0.000000e+00> : vector<8x8xf32>
    %61 = tpu.matmul %60, %48, %cst_20 {dimension_numbers = #tpu.dot_dimension_numbers<[1], [0], [0], [1], [0, 0, 1, 1], [], []>} : vector<8x8xbf16>, vector<8x8xbf16>, vector<8x8xf32> -> vector<8x8xf32>
    %62 = tpu.reciprocal %59 {approx = true} : vector<8x1xf32> -> vector<8x1xf32>
    %63 = vector.broadcast %62 : vector<8x1xf32> to vector<8x8xf32>
    %64 = arith.mulf %61, %63 : vector<8x8xf32>
    %65 = vector.extract_strided_slice %8 {offsets = [0, 16], sizes = [8, 8], strides = [1, 1]} : vector<8x32xf32> to vector<8x8xf32>
    %66 = arith.truncf %65 : vector<8x8xf32> to vector<8x8xbf16>
    %67 = vector.extract_strided_slice %9 {offsets = [0, 16], sizes = [8, 8], strides = [1, 1]} : vector<8x32xf32> to vector<8x8xf32>
    %68 = arith.truncf %67 : vector<8x8xf32> to vector<8x8xbf16>
    %69 = vector.extract_strided_slice %10 {offsets = [0, 16], sizes = [8, 8], strides = [1, 1]} : vector<8x32xf32> to vector<8x8xf32>
    %70 = arith.truncf %69 : vector<8x8xf32> to vector<8x8xbf16>
    %cst_21 = arith.constant dense<0.000000e+00> : vector<8x8xf32>
    %71 = tpu.matmul %66, %68, %cst_21 {dimension_numbers = #tpu.dot_dimension_numbers<[1], [1], [0], [0], [0, 0, 1, 0], [], []>} : vector<8x8xbf16>, vector<8x8xbf16>, vector<8x8xf32> -> vector<8x8xf32>
    %cst_22 = arith.constant 0.353553385 : f32
    %72 = vector.broadcast %cst_22 : f32 to vector<8x8xf32>
    %73 = arith.mulf %71, %72 : vector<8x8xf32>
    %74 = arith.addf %73, %20 : vector<8x8xf32>
    %cst_23 = arith.constant dense<0xFF800000> : vector<8xf32>
    %75 = vector.multi_reduction <maximumf>, %74, %cst_23 [1] : vector<8x8xf32> to vector<8xf32>
    %76 = vector.shape_cast %75 : vector<8xf32> to vector<8x1xf32>
    %77 = vector.broadcast %76 : vector<8x1xf32> to vector<8x8xf32>
    %78 = arith.subf %74, %77 : vector<8x8xf32>
    %79 = math.exp %78 : vector<8x8xf32>
    %cst_24 = arith.constant dense<0.000000e+00> : vector<8xf32>
    %80 = vector.multi_reduction <add>, %79, %cst_24 [1] : vector<8x8xf32> to vector<8xf32>
    %81 = vector.shape_cast %80 : vector<8xf32> to vector<8x1xf32>
    %82 = arith.truncf %79 : vector<8x8xf32> to vector<8x8xbf16>
    %cst_25 = arith.constant dense<0.000000e+00> : vector<8x8xf32>
    %83 = tpu.matmul %82, %70, %cst_25 {dimension_numbers = #tpu.dot_dimension_numbers<[1], [0], [0], [1], [0, 0, 1, 1], [], []>} : vector<8x8xbf16>, vector<8x8xbf16>, vector<8x8xf32> -> vector<8x8xf32>
    %84 = tpu.reciprocal %81 {approx = true} : vector<8x1xf32> -> vector<8x1xf32>
    %85 = vector.broadcast %84 : vector<8x1xf32> to vector<8x8xf32>
    %86 = arith.mulf %83, %85 : vector<8x8xf32>
    %87 = vector.extract_strided_slice %8 {offsets = [0, 24], sizes = [8, 8], strides = [1, 1]} : vector<8x32xf32> to vector<8x8xf32>
    %88 = arith.truncf %87 : vector<8x8xf32> to vector<8x8xbf16>
    %89 = vector.extract_strided_slice %9 {offsets = [0, 24], sizes = [8, 8], strides = [1, 1]} : vector<8x32xf32> to vector<8x8xf32>
    %90 = arith.truncf %89 : vector<8x8xf32> to vector<8x8xbf16>
    %91 = vector.extract_strided_slice %10 {offsets = [0, 24], sizes = [8, 8], strides = [1, 1]} : vector<8x32xf32> to vector<8x8xf32>
    %92 = arith.truncf %91 : vector<8x8xf32> to vector<8x8xbf16>
    %cst_26 = arith.constant dense<0.000000e+00> : vector<8x8xf32>
    %93 = tpu.matmul %88, %90, %cst_26 {dimension_numbers = #tpu.dot_dimension_numbers<[1], [1], [0], [0], [0, 0, 1, 0], [], []>} : vector<8x8xbf16>, vector<8x8xbf16>, vector<8x8xf32> -> vector<8x8xf32>
    %cst_27 = arith.constant 0.353553385 : f32
    %94 = vector.broadcast %cst_27 : f32 to vector<8x8xf32>
    %95 = arith.mulf %93, %94 : vector<8x8xf32>
    %96 = arith.addf %95, %20 : vector<8x8xf32>
    %cst_28 = arith.constant dense<0xFF800000> : vector<8xf32>
    %97 = vector.multi_reduction <maximumf>, %96, %cst_28 [1] : vector<8x8xf32> to vector<8xf32>
    %98 = vector.shape_cast %97 : vector<8xf32> to vector<8x1xf32>
    %99 = vector.broadcast %98 : vector<8x1xf32> to vector<8x8xf32>
    %100 = arith.subf %96, %99 : vector<8x8xf32>
    %101 = math.exp %100 : vector<8x8xf32>
    %cst_29 = arith.constant dense<0.000000e+00> : vector<8xf32>
    %102 = vector.multi_reduction <add>, %101, %cst_29 [1] : vector<8x8xf32> to vector<8xf32>
    %103 = vector.shape_cast %102 : vector<8xf32> to vector<8x1xf32>
    %104 = arith.truncf %101 : vector<8x8xf32> to vector<8x8xbf16>
    %cst_30 = arith.constant dense<0.000000e+00> : vector<8x8xf32>
    %105 = tpu.matmul %104, %92, %cst_30 {dimension_numbers = #tpu.dot_dimension_numbers<[1], [0], [0], [1], [0, 0, 1, 1], [], []>} : vector<8x8xbf16>, vector<8x8xbf16>, vector<8x8xf32> -> vector<8x8xf32>
    %106 = tpu.reciprocal %103 {approx = true} : vector<8x1xf32> -> vector<8x1xf32>
    %107 = vector.broadcast %106 : vector<8x1xf32> to vector<8x8xf32>
    %108 = arith.mulf %105, %107 : vector<8x8xf32>
    %109 = tpu.concatenate %42, %64, %86, %108 in 1 : vector<8x8xf32>, vector<8x8xf32>, vector<8x8xf32>, vector<8x8xf32> -> vector<8x32xf32>
    %110 = arith.truncf %109 : vector<8x32xf32> to vector<8x32xbf16>
    %c0_31 = arith.constant 0 : index
    %c0_32 = arith.constant 0 : index
    %111 = vector.load %arg4[%c0_31, %c0_32] : memref<32x32xbf16, #tpu.memory_space<vmem>>, vector<32x32xbf16>
    %cst_33 = arith.constant dense<0.000000e+00> : vector<8x32xf32>
    %112 = tpu.matmul %110, %111, %cst_33 {dimension_numbers = #tpu.dot_dimension_numbers<[1], [0], [0], [1], [0, 0, 1, 1], [], []>} : vector<8x32xbf16>, vector<32x32xbf16>, vector<8x32xf32> -> vector<8x32xf32>
    %c0_34 = arith.constant 0 : index
    %c0_35 = arith.constant 0 : index
    %113 = vector.load %arg5[%c0_34, %c0_35] : memref<1x32xf32, #tpu.memory_space<vmem>>, vector<1x32xf32>
    %114 = vector.broadcast %113 : vector<1x32xf32> to vector<8x32xf32>
    %115 = arith.addf %112, %114 : vector<8x32xf32>
    %116 = arith.addf %1, %115 : vector<8x32xf32>
    %c0_36 = arith.constant 0 : index
    %c0_37 = arith.constant 0 : index
    %117 = vector.load %arg6[%c0_36, %c0_37] : memref<1x32xf32, #tpu.memory_space<vmem>>, vector<1x32xf32>
    %c0_38 = arith.constant 0 : index
    %c0_39 = arith.constant 0 : index
    %118 = vector.load %arg7[%c0_38, %c0_39] : memref<1x32xf32, #tpu.memory_space<vmem>>, vector<1x32xf32>
    %cst_40 = arith.constant dense<0.000000e+00> : vector<8xf32>
    %119 = vector.multi_reduction <add>, %116, %cst_40 [1] : vector<8x32xf32> to vector<8xf32>
    %120 = vector.shape_cast %119 : vector<8xf32> to vector<8x1xf32>
    %cst_41 = arith.constant 3.200000e+01 : f32
    %121 = vector.broadcast %cst_41 : f32 to vector<8x1xf32>
    %122 = arith.divf %120, %121 : vector<8x1xf32>
    %123 = vector.broadcast %122 : vector<8x1xf32> to vector<8x32xf32>
    %124 = arith.subf %116, %123 : vector<8x32xf32>
    %125 = arith.mulf %124, %124 : vector<8x32xf32>
    %cst_42 = arith.constant dense<0.000000e+00> : vector<8xf32>
    %126 = vector.multi_reduction <add>, %125, %cst_42 [1] : vector<8x32xf32> to vector<8xf32>
    %127 = vector.shape_cast %126 : vector<8xf32> to vector<8x1xf32>
    %cst_43 = arith.constant 3.200000e+01 : f32
    %128 = vector.broadcast %cst_43 : f32 to vector<8x1xf32>
    %129 = arith.divf %127, %128 : vector<8x1xf32>
    %130 = vector.broadcast %122 : vector<8x1xf32> to vector<8x32xf32>
    %131 = arith.subf %116, %130 : vector<8x32xf32>
    %cst_44 = arith.constant 9.99999974E-6 : f32
    %132 = vector.broadcast %cst_44 : f32 to vector<8x1xf32>
    %133 = arith.addf %129, %132 : vector<8x1xf32>
    %134 = math.rsqrt %133 : vector<8x1xf32>
    %135 = vector.broadcast %134 : vector<8x1xf32> to vector<8x32xf32>
    %136 = arith.mulf %131, %135 : vector<8x32xf32>
    %137 = vector.broadcast %117 : vector<1x32xf32> to vector<8x32xf32>
    %138 = arith.mulf %136, %137 : vector<8x32xf32>
    %139 = vector.broadcast %118 : vector<1x32xf32> to vector<8x32xf32>
    %140 = arith.addf %138, %139 : vector<8x32xf32>
    %c0_45 = arith.constant 0 : index
    %c0_46 = arith.constant 0 : index
    %c0_47 = arith.constant 0 : index
    %141 = vector.load %arg9[%c0_45, %c0_46, %c0_47] : memref<1x8x32xf32, #tpu.memory_space<vmem>>, vector<1x8x32xf32>
    %142 = vector.shape_cast %141 : vector<1x8x32xf32> to vector<8x32xf32>
    %143 = vector.shape_cast %140 : vector<8x32xf32> to vector<1x8x32xf32>
    tpu.vector_store %arg9[%c0_45, %c0_46, %c0_47], %143 {strides = array<i32>} : memref<1x8x32xf32, #tpu.memory_space<vmem>>, vector<1x8x32xf32>,
    return
  }
  func.func @transform_0(%arg0: i32) -> (i32, i32, i32) {
    %c0_i32 = arith.constant 0 : i32
    %c0_i32_0 = arith.constant 0 : i32
    %c0_i32_1 = arith.constant 0 : i32
    return %arg0, %c0_i32, %c0_i32_0 : i32, i32, i32
  }
  func.func @transform_1(%arg0: i32) -> (i32, i32) {
    %c0_i32 = arith.constant 0 : i32
    %c0_i32_0 = arith.constant 0 : i32
    %c0_i32_1 = arith.constant 0 : i32
    return %c0_i32, %c0_i32_0 : i32, i32
  }
  func.func @transform_2(%arg0: i32) -> (i32, i32) {
    %c0_i32 = arith.constant 0 : i32
    %c0_i32_0 = arith.constant 0 : i32
    %c0_i32_1 = arith.constant 0 : i32
    return %c0_i32, %c0_i32_0 : i32, i32
  }
  func.func @transform_3(%arg0: i32) -> (i32, i32) {
    %c0_i32 = arith.constant 0 : i32
    %c0_i32_0 = arith.constant 0 : i32
    %c0_i32_1 = arith.constant 0 : i32
    return %c0_i32, %c0_i32_0 : i32, i32
  }
  func.func @transform_4(%arg0: i32) -> (i32, i32) {
    %c0_i32 = arith.constant 0 : i32
    %c0_i32_0 = arith.constant 0 : i32
    %c0_i32_1 = arith.constant 0 : i32
    return %c0_i32, %c0_i32_0 : i32, i32
  }
  func.func @transform_5(%arg0: i32) -> (i32, i32) {
    %c0_i32 = arith.constant 0 : i32
    %c0_i32_0 = arith.constant 0 : i32
    %c0_i32_1 = arith.constant 0 : i32
    return %c0_i32, %c0_i32_0 : i32, i32
  }
  func.func @transform_6(%arg0: i32) -> (i32, i32) {
    %c0_i32 = arith.constant 0 : i32
    %c0_i32_0 = arith.constant 0 : i32
    %c0_i32_1 = arith.constant 0 : i32
    return %c0_i32, %c0_i32_0 : i32, i32
  }
  func.func @transform_7(%arg0: i32) -> (i32, i32, i32) {
    %c0_i32 = arith.constant 0 : i32
    %c0_i32_0 = arith.constant 0 : i32
    %c0_i32_1 = arith.constant 0 : i32
    return %arg0, %c0_i32, %c0_i32_0 : i32, i32, i32
  }
  func.func @transform_8(%arg0: i32) -> (i32, i32, i32) {
    %c0_i32 = arith.constant 0 : i32
    %c0_i32_0 = arith.constant 0 : i32
    %c0_i32_1 = arith.constant 0 : i32
    return %arg0, %c0_i32, %c0_i32_0 : i32, i32, i32
  }
}

module attributes {stable_mosaic.version = 11 : i64} {
  func.func @_cross_attn_ln_kernel(%arg0: i32, %arg1: memref<1x8x32xf32, #tpu.memory_space<vmem>>, %arg2: memref<1x8x32xf32, #tpu.memory_space<vmem>>, %arg3: memref<32x32xbf16, #tpu.memory_space<vmem>>, %arg4: memref<1x32xf32, #tpu.memory_space<vmem>>, %arg5: memref<32x64xbf16, #tpu.memory_space<vmem>>, %arg6: memref<1x64xf32, #tpu.memory_space<vmem>>, %arg7: memref<32x32xbf16, #tpu.memory_space<vmem>>, %arg8: memref<1x32xf32, #tpu.memory_space<vmem>>, %arg9: memref<1x32xf32, #tpu.memory_space<vmem>>, %arg10: memref<1x32xf32, #tpu.memory_space<vmem>>, %arg11: memref<1x8x32xf32, #tpu.memory_space<vmem>>) attributes {dimension_semantics = [#tpu.dimension_semantics<parallel>], iteration_bounds = array<i64: 2>, scalar_prefetch = 0 : i64, scratch_operands = 0 : i64, tpu.core_type = #tpu.core_type<tc>, window_params = [{transform_indices = @transform_0, window_bounds = array<i64: 1, 8, 32>}, {transform_indices = @transform_1, window_bounds = array<i64: 1, 8, 32>}, {pipeline_mode = #tpu.pipeline_mode<synchronous>, transform_indices = @transform_2, window_bounds = array<i64: 32, 32>}, {pipeline_mode = #tpu.pipeline_mode<synchronous>, transform_indices = @transform_3, window_bounds = array<i64: 1, 32>}, {pipeline_mode = #tpu.pipeline_mode<synchronous>, transform_indices = @transform_4, window_bounds = array<i64: 32, 64>}, {pipeline_mode = #tpu.pipeline_mode<synchronous>, transform_indices = @transform_5, window_bounds = array<i64: 1, 64>}, {pipeline_mode = #tpu.pipeline_mode<synchronous>, transform_indices = @transform_6, window_bounds = array<i64: 32, 32>}, {pipeline_mode = #tpu.pipeline_mode<synchronous>, transform_indices = @transform_7, window_bounds = array<i64: 1, 32>}, {pipeline_mode = #tpu.pipeline_mode<synchronous>, transform_indices = @transform_8, window_bounds = array<i64: 1, 32>}, {pipeline_mode = #tpu.pipeline_mode<synchronous>, transform_indices = @transform_9, window_bounds = array<i64: 1, 32>}, {transform_indices = @transform_10, window_bounds = array<i64: 1, 8, 32>}]} {
    %c0 = arith.constant 0 : index
    %c0_0 = arith.constant 0 : index
    %c0_1 = arith.constant 0 : index
    %0 = vector.load %arg1[%c0, %c0_0, %c0_1] : memref<1x8x32xf32, #tpu.memory_space<vmem>>, vector<1x8x32xf32>
    %1 = vector.shape_cast %0 : vector<1x8x32xf32> to vector<8x32xf32>
    %c0_2 = arith.constant 0 : index
    %c0_3 = arith.constant 0 : index
    %c0_4 = arith.constant 0 : index
    %2 = vector.load %arg2[%c0_2, %c0_3, %c0_4] : memref<1x8x32xf32, #tpu.memory_space<vmem>>, vector<1x8x32xf32>
    %3 = vector.shape_cast %2 : vector<1x8x32xf32> to vector<8x32xf32>
    %4 = arith.truncf %1 : vector<8x32xf32> to vector<8x32xbf16>
    %c0_5 = arith.constant 0 : index
    %c0_6 = arith.constant 0 : index
    %5 = vector.load %arg3[%c0_5, %c0_6] : memref<32x32xbf16, #tpu.memory_space<vmem>>, vector<32x32xbf16>
    %cst = arith.constant dense<0.000000e+00> : vector<8x32xf32>
    %6 = tpu.matmul %4, %5, %cst {dimension_numbers = #tpu.dot_dimension_numbers<[1], [0], [0], [1], [0, 0, 1, 1], [], []>} : vector<8x32xbf16>, vector<32x32xbf16>, vector<8x32xf32> -> vector<8x32xf32>
    %c0_7 = arith.constant 0 : index
    %c0_8 = arith.constant 0 : index
    %7 = vector.load %arg4[%c0_7, %c0_8] : memref<1x32xf32, #tpu.memory_space<vmem>>, vector<1x32xf32>
    %8 = vector.broadcast %7 : vector<1x32xf32> to vector<8x32xf32>
    %9 = arith.addf %6, %8 : vector<8x32xf32>
    %10 = arith.truncf %3 : vector<8x32xf32> to vector<8x32xbf16>
    %c0_9 = arith.constant 0 : index
    %c0_10 = arith.constant 0 : index
    %11 = vector.load %arg5[%c0_9, %c0_10] : memref<32x64xbf16, #tpu.memory_space<vmem>>, vector<32x64xbf16>
    %cst_11 = arith.constant dense<0.000000e+00> : vector<8x64xf32>
    %12 = tpu.matmul %10, %11, %cst_11 {dimension_numbers = #tpu.dot_dimension_numbers<[1], [0], [0], [1], [0, 0, 1, 1], [], []>} : vector<8x32xbf16>, vector<32x64xbf16>, vector<8x64xf32> -> vector<8x64xf32>
    %c0_12 = arith.constant 0 : index
    %c0_13 = arith.constant 0 : index
    %13 = vector.load %arg6[%c0_12, %c0_13] : memref<1x64xf32, #tpu.memory_space<vmem>>, vector<1x64xf32>
    %14 = vector.broadcast %13 : vector<1x64xf32> to vector<8x64xf32>
    %15 = arith.addf %12, %14 : vector<8x64xf32>
    %16 = vector.extract_strided_slice %15 {offsets = [0, 0], sizes = [8, 32], strides = [1, 1]} : vector<8x64xf32> to vector<8x32xf32>
    %17 = vector.extract_strided_slice %15 {offsets = [0, 32], sizes = [8, 32], strides = [1, 1]} : vector<8x64xf32> to vector<8x32xf32>
    %18 = vector.extract_strided_slice %9 {offsets = [0, 0], sizes = [8, 8], strides = [1, 1]} : vector<8x32xf32> to vector<8x8xf32>
    %19 = arith.truncf %18 : vector<8x8xf32> to vector<8x8xbf16>
    %20 = vector.extract_strided_slice %16 {offsets = [0, 0], sizes = [8, 8], strides = [1, 1]} : vector<8x32xf32> to vector<8x8xf32>
    %21 = arith.truncf %20 : vector<8x8xf32> to vector<8x8xbf16>
    %22 = vector.extract_strided_slice %17 {offsets = [0, 0], sizes = [8, 8], strides = [1, 1]} : vector<8x32xf32> to vector<8x8xf32>
    %23 = arith.truncf %22 : vector<8x8xf32> to vector<8x8xbf16>
    %cst_14 = arith.constant dense<0.000000e+00> : vector<8x8xf32>
    %24 = tpu.matmul %19, %21, %cst_14 {dimension_numbers = #tpu.dot_dimension_numbers<[1], [1], [0], [0], [0, 0, 1, 0], [], []>} : vector<8x8xbf16>, vector<8x8xbf16>, vector<8x8xf32> -> vector<8x8xf32>
    %cst_15 = arith.constant 0.353553385 : f32
    %25 = vector.broadcast %cst_15 : f32 to vector<8x8xf32>
    %26 = arith.mulf %24, %25 : vector<8x8xf32>
    %cst_16 = arith.constant dense<0xFF800000> : vector<8xf32>
    %27 = vector.multi_reduction <maximumf>, %26, %cst_16 [1] : vector<8x8xf32> to vector<8xf32>
    %28 = vector.shape_cast %27 : vector<8xf32> to vector<8x1xf32>
    %29 = vector.broadcast %28 : vector<8x1xf32> to vector<8x8xf32>
    %30 = arith.subf %26, %29 : vector<8x8xf32>
    %31 = math.exp %30 : vector<8x8xf32>
    %cst_17 = arith.constant dense<0.000000e+00> : vector<8xf32>
    %32 = vector.multi_reduction <add>, %31, %cst_17 [1] : vector<8x8xf32> to vector<8xf32>
    %33 = vector.shape_cast %32 : vector<8xf32> to vector<8x1xf32>
    %34 = arith.truncf %31 : vector<8x8xf32> to vector<8x8xbf16>
    %cst_18 = arith.constant dense<0.000000e+00> : vector<8x8xf32>
    %35 = tpu.matmul %34, %23, %cst_18 {dimension_numbers = #tpu.dot_dimension_numbers<[1], [0], [0], [1], [0, 0, 1, 1], [], []>} : vector<8x8xbf16>, vector<8x8xbf16>, vector<8x8xf32> -> vector<8x8xf32>
    %36 = tpu.reciprocal %33 {approx = true} : vector<8x1xf32> -> vector<8x1xf32>
    %37 = vector.broadcast %36 : vector<8x1xf32> to vector<8x8xf32>
    %38 = arith.mulf %35, %37 : vector<8x8xf32>
    %39 = vector.extract_strided_slice %9 {offsets = [0, 8], sizes = [8, 8], strides = [1, 1]} : vector<8x32xf32> to vector<8x8xf32>
    %40 = arith.truncf %39 : vector<8x8xf32> to vector<8x8xbf16>
    %41 = vector.extract_strided_slice %16 {offsets = [0, 8], sizes = [8, 8], strides = [1, 1]} : vector<8x32xf32> to vector<8x8xf32>
    %42 = arith.truncf %41 : vector<8x8xf32> to vector<8x8xbf16>
    %43 = vector.extract_strided_slice %17 {offsets = [0, 8], sizes = [8, 8], strides = [1, 1]} : vector<8x32xf32> to vector<8x8xf32>
    %44 = arith.truncf %43 : vector<8x8xf32> to vector<8x8xbf16>
    %cst_19 = arith.constant dense<0.000000e+00> : vector<8x8xf32>
    %45 = tpu.matmul %40, %42, %cst_19 {dimension_numbers = #tpu.dot_dimension_numbers<[1], [1], [0], [0], [0, 0, 1, 0], [], []>} : vector<8x8xbf16>, vector<8x8xbf16>, vector<8x8xf32> -> vector<8x8xf32>
    %cst_20 = arith.constant 0.353553385 : f32
    %46 = vector.broadcast %cst_20 : f32 to vector<8x8xf32>
    %47 = arith.mulf %45, %46 : vector<8x8xf32>
    %cst_21 = arith.constant dense<0xFF800000> : vector<8xf32>
    %48 = vector.multi_reduction <maximumf>, %47, %cst_21 [1] : vector<8x8xf32> to vector<8xf32>
    %49 = vector.shape_cast %48 : vector<8xf32> to vector<8x1xf32>
    %50 = vector.broadcast %49 : vector<8x1xf32> to vector<8x8xf32>
    %51 = arith.subf %47, %50 : vector<8x8xf32>
    %52 = math.exp %51 : vector<8x8xf32>
    %cst_22 = arith.constant dense<0.000000e+00> : vector<8xf32>
    %53 = vector.multi_reduction <add>, %52, %cst_22 [1] : vector<8x8xf32> to vector<8xf32>
    %54 = vector.shape_cast %53 : vector<8xf32> to vector<8x1xf32>
    %55 = arith.truncf %52 : vector<8x8xf32> to vector<8x8xbf16>
    %cst_23 = arith.constant dense<0.000000e+00> : vector<8x8xf32>
    %56 = tpu.matmul %55, %44, %cst_23 {dimension_numbers = #tpu.dot_dimension_numbers<[1], [0], [0], [1], [0, 0, 1, 1], [], []>} : vector<8x8xbf16>, vector<8x8xbf16>, vector<8x8xf32> -> vector<8x8xf32>
    %57 = tpu.reciprocal %54 {approx = true} : vector<8x1xf32> -> vector<8x1xf32>
    %58 = vector.broadcast %57 : vector<8x1xf32> to vector<8x8xf32>
    %59 = arith.mulf %56, %58 : vector<8x8xf32>
    %60 = vector.extract_strided_slice %9 {offsets = [0, 16], sizes = [8, 8], strides = [1, 1]} : vector<8x32xf32> to vector<8x8xf32>
    %61 = arith.truncf %60 : vector<8x8xf32> to vector<8x8xbf16>
    %62 = vector.extract_strided_slice %16 {offsets = [0, 16], sizes = [8, 8], strides = [1, 1]} : vector<8x32xf32> to vector<8x8xf32>
    %63 = arith.truncf %62 : vector<8x8xf32> to vector<8x8xbf16>
    %64 = vector.extract_strided_slice %17 {offsets = [0, 16], sizes = [8, 8], strides = [1, 1]} : vector<8x32xf32> to vector<8x8xf32>
    %65 = arith.truncf %64 : vector<8x8xf32> to vector<8x8xbf16>
    %cst_24 = arith.constant dense<0.000000e+00> : vector<8x8xf32>
    %66 = tpu.matmul %61, %63, %cst_24 {dimension_numbers = #tpu.dot_dimension_numbers<[1], [1], [0], [0], [0, 0, 1, 0], [], []>} : vector<8x8xbf16>, vector<8x8xbf16>, vector<8x8xf32> -> vector<8x8xf32>
    %cst_25 = arith.constant 0.353553385 : f32
    %67 = vector.broadcast %cst_25 : f32 to vector<8x8xf32>
    %68 = arith.mulf %66, %67 : vector<8x8xf32>
    %cst_26 = arith.constant dense<0xFF800000> : vector<8xf32>
    %69 = vector.multi_reduction <maximumf>, %68, %cst_26 [1] : vector<8x8xf32> to vector<8xf32>
    %70 = vector.shape_cast %69 : vector<8xf32> to vector<8x1xf32>
    %71 = vector.broadcast %70 : vector<8x1xf32> to vector<8x8xf32>
    %72 = arith.subf %68, %71 : vector<8x8xf32>
    %73 = math.exp %72 : vector<8x8xf32>
    %cst_27 = arith.constant dense<0.000000e+00> : vector<8xf32>
    %74 = vector.multi_reduction <add>, %73, %cst_27 [1] : vector<8x8xf32> to vector<8xf32>
    %75 = vector.shape_cast %74 : vector<8xf32> to vector<8x1xf32>
    %76 = arith.truncf %73 : vector<8x8xf32> to vector<8x8xbf16>
    %cst_28 = arith.constant dense<0.000000e+00> : vector<8x8xf32>
    %77 = tpu.matmul %76, %65, %cst_28 {dimension_numbers = #tpu.dot_dimension_numbers<[1], [0], [0], [1], [0, 0, 1, 1], [], []>} : vector<8x8xbf16>, vector<8x8xbf16>, vector<8x8xf32> -> vector<8x8xf32>
    %78 = tpu.reciprocal %75 {approx = true} : vector<8x1xf32> -> vector<8x1xf32>
    %79 = vector.broadcast %78 : vector<8x1xf32> to vector<8x8xf32>
    %80 = arith.mulf %77, %79 : vector<8x8xf32>
    %81 = vector.extract_strided_slice %9 {offsets = [0, 24], sizes = [8, 8], strides = [1, 1]} : vector<8x32xf32> to vector<8x8xf32>
    %82 = arith.truncf %81 : vector<8x8xf32> to vector<8x8xbf16>
    %83 = vector.extract_strided_slice %16 {offsets = [0, 24], sizes = [8, 8], strides = [1, 1]} : vector<8x32xf32> to vector<8x8xf32>
    %84 = arith.truncf %83 : vector<8x8xf32> to vector<8x8xbf16>
    %85 = vector.extract_strided_slice %17 {offsets = [0, 24], sizes = [8, 8], strides = [1, 1]} : vector<8x32xf32> to vector<8x8xf32>
    %86 = arith.truncf %85 : vector<8x8xf32> to vector<8x8xbf16>
    %cst_29 = arith.constant dense<0.000000e+00> : vector<8x8xf32>
    %87 = tpu.matmul %82, %84, %cst_29 {dimension_numbers = #tpu.dot_dimension_numbers<[1], [1], [0], [0], [0, 0, 1, 0], [], []>} : vector<8x8xbf16>, vector<8x8xbf16>, vector<8x8xf32> -> vector<8x8xf32>
    %cst_30 = arith.constant 0.353553385 : f32
    %88 = vector.broadcast %cst_30 : f32 to vector<8x8xf32>
    %89 = arith.mulf %87, %88 : vector<8x8xf32>
    %cst_31 = arith.constant dense<0xFF800000> : vector<8xf32>
    %90 = vector.multi_reduction <maximumf>, %89, %cst_31 [1] : vector<8x8xf32> to vector<8xf32>
    %91 = vector.shape_cast %90 : vector<8xf32> to vector<8x1xf32>
    %92 = vector.broadcast %91 : vector<8x1xf32> to vector<8x8xf32>
    %93 = arith.subf %89, %92 : vector<8x8xf32>
    %94 = math.exp %93 : vector<8x8xf32>
    %cst_32 = arith.constant dense<0.000000e+00> : vector<8xf32>
    %95 = vector.multi_reduction <add>, %94, %cst_32 [1] : vector<8x8xf32> to vector<8xf32>
    %96 = vector.shape_cast %95 : vector<8xf32> to vector<8x1xf32>
    %97 = arith.truncf %94 : vector<8x8xf32> to vector<8x8xbf16>
    %cst_33 = arith.constant dense<0.000000e+00> : vector<8x8xf32>
    %98 = tpu.matmul %97, %86, %cst_33 {dimension_numbers = #tpu.dot_dimension_numbers<[1], [0], [0], [1], [0, 0, 1, 1], [], []>} : vector<8x8xbf16>, vector<8x8xbf16>, vector<8x8xf32> -> vector<8x8xf32>
    %99 = tpu.reciprocal %96 {approx = true} : vector<8x1xf32> -> vector<8x1xf32>
    %100 = vector.broadcast %99 : vector<8x1xf32> to vector<8x8xf32>
    %101 = arith.mulf %98, %100 : vector<8x8xf32>
    %102 = tpu.concatenate %38, %59, %80, %101 in 1 : vector<8x8xf32>, vector<8x8xf32>, vector<8x8xf32>, vector<8x8xf32> -> vector<8x32xf32>
    %103 = arith.truncf %102 : vector<8x32xf32> to vector<8x32xbf16>
    %c0_34 = arith.constant 0 : index
    %c0_35 = arith.constant 0 : index
    %104 = vector.load %arg7[%c0_34, %c0_35] : memref<32x32xbf16, #tpu.memory_space<vmem>>, vector<32x32xbf16>
    %cst_36 = arith.constant dense<0.000000e+00> : vector<8x32xf32>
    %105 = tpu.matmul %103, %104, %cst_36 {dimension_numbers = #tpu.dot_dimension_numbers<[1], [0], [0], [1], [0, 0, 1, 1], [], []>} : vector<8x32xbf16>, vector<32x32xbf16>, vector<8x32xf32> -> vector<8x32xf32>
    %c0_37 = arith.constant 0 : index
    %c0_38 = arith.constant 0 : index
    %106 = vector.load %arg8[%c0_37, %c0_38] : memref<1x32xf32, #tpu.memory_space<vmem>>, vector<1x32xf32>
    %107 = vector.broadcast %106 : vector<1x32xf32> to vector<8x32xf32>
    %108 = arith.addf %105, %107 : vector<8x32xf32>
    %109 = arith.addf %1, %108 : vector<8x32xf32>
    %c0_39 = arith.constant 0 : index
    %c0_40 = arith.constant 0 : index
    %110 = vector.load %arg9[%c0_39, %c0_40] : memref<1x32xf32, #tpu.memory_space<vmem>>, vector<1x32xf32>
    %c0_41 = arith.constant 0 : index
    %c0_42 = arith.constant 0 : index
    %111 = vector.load %arg10[%c0_41, %c0_42] : memref<1x32xf32, #tpu.memory_space<vmem>>, vector<1x32xf32>
    %cst_43 = arith.constant dense<0.000000e+00> : vector<8xf32>
    %112 = vector.multi_reduction <add>, %109, %cst_43 [1] : vector<8x32xf32> to vector<8xf32>
    %113 = vector.shape_cast %112 : vector<8xf32> to vector<8x1xf32>
    %cst_44 = arith.constant 3.200000e+01 : f32
    %114 = vector.broadcast %cst_44 : f32 to vector<8x1xf32>
    %115 = arith.divf %113, %114 : vector<8x1xf32>
    %116 = vector.broadcast %115 : vector<8x1xf32> to vector<8x32xf32>
    %117 = arith.subf %109, %116 : vector<8x32xf32>
    %118 = arith.mulf %117, %117 : vector<8x32xf32>
    %cst_45 = arith.constant dense<0.000000e+00> : vector<8xf32>
    %119 = vector.multi_reduction <add>, %118, %cst_45 [1] : vector<8x32xf32> to vector<8xf32>
    %120 = vector.shape_cast %119 : vector<8xf32> to vector<8x1xf32>
    %cst_46 = arith.constant 3.200000e+01 : f32
    %121 = vector.broadcast %cst_46 : f32 to vector<8x1xf32>
    %122 = arith.divf %120, %121 : vector<8x1xf32>
    %123 = vector.broadcast %115 : vector<8x1xf32> to vector<8x32xf32>
    %124 = arith.subf %109, %123 : vector<8x32xf32>
    %cst_47 = arith.constant 9.99999974E-6 : f32
    %125 = vector.broadcast %cst_47 : f32 to vector<8x1xf32>
    %126 = arith.addf %122, %125 : vector<8x1xf32>
    %127 = math.rsqrt %126 : vector<8x1xf32>
    %128 = vector.broadcast %127 : vector<8x1xf32> to vector<8x32xf32>
    %129 = arith.mulf %124, %128 : vector<8x32xf32>
    %130 = vector.broadcast %110 : vector<1x32xf32> to vector<8x32xf32>
    %131 = arith.mulf %129, %130 : vector<8x32xf32>
    %132 = vector.broadcast %111 : vector<1x32xf32> to vector<8x32xf32>
    %133 = arith.addf %131, %132 : vector<8x32xf32>
    %c0_48 = arith.constant 0 : index
    %c0_49 = arith.constant 0 : index
    %c0_50 = arith.constant 0 : index
    %134 = vector.load %arg11[%c0_48, %c0_49, %c0_50] : memref<1x8x32xf32, #tpu.memory_space<vmem>>, vector<1x8x32xf32>
    %135 = vector.shape_cast %134 : vector<1x8x32xf32> to vector<8x32xf32>
    %136 = vector.shape_cast %133 : vector<8x32xf32> to vector<1x8x32xf32>
    tpu.vector_store %arg11[%c0_48, %c0_49, %c0_50], %136 {strides = array<i32>} : memref<1x8x32xf32, #tpu.memory_space<vmem>>, vector<1x8x32xf32>,
    return
  }
  func.func @transform_0(%arg0: i32) -> (i32, i32, i32) {
    %c0_i32 = arith.constant 0 : i32
    %c0_i32_0 = arith.constant 0 : i32
    %c0_i32_1 = arith.constant 0 : i32
    return %arg0, %c0_i32, %c0_i32_0 : i32, i32, i32
  }
  func.func @transform_1(%arg0: i32) -> (i32, i32, i32) {
    %c0_i32 = arith.constant 0 : i32
    %c0_i32_0 = arith.constant 0 : i32
    %c0_i32_1 = arith.constant 0 : i32
    return %arg0, %c0_i32, %c0_i32_0 : i32, i32, i32
  }
  func.func @transform_2(%arg0: i32) -> (i32, i32) {
    %c0_i32 = arith.constant 0 : i32
    %c0_i32_0 = arith.constant 0 : i32
    %c0_i32_1 = arith.constant 0 : i32
    return %c0_i32, %c0_i32_0 : i32, i32
  }
  func.func @transform_3(%arg0: i32) -> (i32, i32) {
    %c0_i32 = arith.constant 0 : i32
    %c0_i32_0 = arith.constant 0 : i32
    %c0_i32_1 = arith.constant 0 : i32
    return %c0_i32, %c0_i32_0 : i32, i32
  }
  func.func @transform_4(%arg0: i32) -> (i32, i32) {
    %c0_i32 = arith.constant 0 : i32
    %c0_i32_0 = arith.constant 0 : i32
    %c0_i32_1 = arith.constant 0 : i32
    return %c0_i32, %c0_i32_0 : i32, i32
  }
  func.func @transform_5(%arg0: i32) -> (i32, i32) {
    %c0_i32 = arith.constant 0 : i32
    %c0_i32_0 = arith.constant 0 : i32
    %c0_i32_1 = arith.constant 0 : i32
    return %c0_i32, %c0_i32_0 : i32, i32
  }
  func.func @transform_6(%arg0: i32) -> (i32, i32) {
    %c0_i32 = arith.constant 0 : i32
    %c0_i32_0 = arith.constant 0 : i32
    %c0_i32_1 = arith.constant 0 : i32
    return %c0_i32, %c0_i32_0 : i32, i32
  }
  func.func @transform_7(%arg0: i32) -> (i32, i32) {
    %c0_i32 = arith.constant 0 : i32
    %c0_i32_0 = arith.constant 0 : i32
    %c0_i32_1 = arith.constant 0 : i32
    return %c0_i32, %c0_i32_0 : i32, i32
  }
  func.func @transform_8(%arg0: i32) -> (i32, i32) {
    %c0_i32 = arith.constant 0 : i32
    %c0_i32_0 = arith.constant 0 : i32
    %c0_i32_1 = arith.constant 0 : i32
    return %c0_i32, %c0_i32_0 : i32, i32
  }
  func.func @transform_9(%arg0: i32) -> (i32, i32) {
    %c0_i32 = arith.constant 0 : i32
    %c0_i32_0 = arith.constant 0 : i32
    %c0_i32_1 = arith.constant 0 : i32
    return %c0_i32, %c0_i32_0 : i32, i32
  }
  func.func @transform_10(%arg0: i32) -> (i32, i32, i32) {
    %c0_i32 = arith.constant 0 : i32
    %c0_i32_0 = arith.constant 0 : i32
    %c0_i32_1 = arith.constant 0 : i32
    return %arg0, %c0_i32, %c0_i32_0 : i32, i32, i32
  }
}

module attributes {stable_mosaic.version = 11 : i64} {
  func.func @_linear_kernel(%arg0: i32, %arg1: i32, %arg2: memref<8x32xf32, #tpu.memory_space<vmem>>, %arg3: memref<32x128xbf16, #tpu.memory_space<vmem>>, %arg4: memref<1x128xf32, #tpu.memory_space<vmem>>, %arg5: memref<8x128xf32, #tpu.memory_space<vmem>>) attributes {dimension_semantics = [#tpu.dimension_semantics<parallel>, #tpu.dimension_semantics<parallel>], iteration_bounds = array<i64: 2, 1>, scalar_prefetch = 0 : i64, scratch_operands = 0 : i64, tpu.core_type = #tpu.core_type<tc>, window_params = [{transform_indices = @transform_0, window_bounds = array<i64: 8, 32>}, {transform_indices = @transform_1, window_bounds = array<i64: 32, 128>}, {transform_indices = @transform_2, window_bounds = array<i64: 1, 128>}, {transform_indices = @transform_3, window_bounds = array<i64: 8, 128>}]} {
    %c0 = arith.constant 0 : index
    %c0_0 = arith.constant 0 : index
    %0 = vector.load %arg2[%c0, %c0_0] : memref<8x32xf32, #tpu.memory_space<vmem>>, vector<8x32xf32>
    %1 = arith.truncf %0 : vector<8x32xf32> to vector<8x32xbf16>
    %c0_1 = arith.constant 0 : index
    %c0_2 = arith.constant 0 : index
    %2 = vector.load %arg3[%c0_1, %c0_2] : memref<32x128xbf16, #tpu.memory_space<vmem>>, vector<32x128xbf16>
    %cst = arith.constant dense<0.000000e+00> : vector<8x128xf32>
    %3 = tpu.matmul %1, %2, %cst {dimension_numbers = #tpu.dot_dimension_numbers<[1], [0], [0], [1], [0, 0, 1, 1], [], []>} : vector<8x32xbf16>, vector<32x128xbf16>, vector<8x128xf32> -> vector<8x128xf32>
    %c0_3 = arith.constant 0 : index
    %c0_4 = arith.constant 0 : index
    %4 = vector.load %arg4[%c0_3, %c0_4] : memref<1x128xf32, #tpu.memory_space<vmem>>, vector<1x128xf32>
    %5 = vector.broadcast %4 : vector<1x128xf32> to vector<8x128xf32>
    %6 = arith.addf %3, %5 : vector<8x128xf32>
    %c0_5 = arith.constant 0 : index
    %c0_6 = arith.constant 0 : index
    %7 = vector.load %arg5[%c0_5, %c0_6] : memref<8x128xf32, #tpu.memory_space<vmem>>, vector<8x128xf32>
    tpu.vector_store %arg5[%c0_5, %c0_6], %6 {strides = array<i32>} : memref<8x128xf32, #tpu.memory_space<vmem>>, vector<8x128xf32>,
    return
  }
  func.func @transform_0(%arg0: i32, %arg1: i32) -> (i32, i32) {
    %c0_i32 = arith.constant 0 : i32
    %c0_i32_0 = arith.constant 0 : i32
    return %arg0, %c0_i32 : i32, i32
  }
  func.func @transform_1(%arg0: i32, %arg1: i32) -> (i32, i32) {
    %c0_i32 = arith.constant 0 : i32
    %c0_i32_0 = arith.constant 0 : i32
    return %c0_i32, %arg1 : i32, i32
  }
  func.func @transform_2(%arg0: i32, %arg1: i32) -> (i32, i32) {
    %c0_i32 = arith.constant 0 : i32
    %c0_i32_0 = arith.constant 0 : i32
    return %c0_i32, %arg1 : i32, i32
  }
  func.func @transform_3(%arg0: i32, %arg1: i32) -> (i32, i32) {
    %c0_i32 = arith.constant 0 : i32
    return %arg0, %arg1 : i32, i32
  }
}

</mosaic_0001>

<llo_original>
// kernel: transformer_forward.24
$region0: #{transformer_forward.24}
  #allocation0 [shape = 'u32[]', space=smem, size = 0x4, offset = 0x4, fixed_abs, tag = 'smem constant byte address 0x4 - core index']
  #allocation1 [shape = 'u32[72,128]{1,0:T(1,128)}', space=vmem, size = 0x9000, scoped, tag = 'internal scratch']
  %s0 = inlined_call_operand.vmem [shape: f32[16,32], index: 0, kind: input, shape index: {}]
  %s1 = inlined_call_operand.vmem [shape: f32[1,32], index: 1, kind: input, shape index: {}]
  %s2 = inlined_call_operand.vmem [shape: f32[1,32], index: 2, kind: input, shape index: {}]
  %s3 = inlined_call_operand.vmem [shape: f32[16,32], index: 3, kind: output, shape index: {}]
  %s4 = sld [smem:[#allocation0]]
  $region45: #{transformer_forward.24} parent=0
    _
  %s6 = ssub.s32 1, %s4
  %s7 = scalar_select 0, %s6, %s4
  loop: start=0, step=1, limit=4
  $region2: #{transformer_forward.24} parent=0 // loop_pre_header
    _
  $region3: #{transformer_forward.24} parent=0 // loop_header
    %s9 = sphi 0, %s13
    %p10 = scmp.ge.s32.totalorder %s9, 4
    %s19 = sphi 0, %s21
    %s22 = sphi 0, %s19
    %s23 = sphi 0, %s22
    %s39 = sphi 0, %s23
    %s43 = sphi 0, %s43
    %s45 = sphi 0, %s43
    %s46 = sphi 0, %s45
    %s60 = sphi 0, %s46
    %s64 = sphi 0, %s64
    %s66 = sphi 0, %s64
    %s67 = sphi 0, %s66
    %s81 = sphi 0, %s67
    %s87 = sphi 0, %s89
    %s90 = sphi 0, %s87
    %s91 = sphi 0, %s90
    %s107 = sphi 0, %s91
  $region4: #{transformer_forward.24} parent=0 // loop_header_branch
    %12 = sbr.rel (%p10) target = $region8
  $region5: #{transformer_forward.24} parent=0 // loop_body
    %s14 = ssub.s32 %s9, 1
    %s15 = ssub.s32 %s9, 2
    %s16 = sadd.s32 %s9, 1
    %s17 = ssub.s32 %s9, %s16
    %p18 = scmp.eq.s32.totalorder %s17, 0
    %s20 = sadd.s32 %s19, 1
    %s21 = scalar_select %p18, %s19, %s20
    %p24 = pneg %p18
    %p25 = scmp.eq.s32.totalorder %s9, 1
    %p26 = por %p24, %p25
    %p27 = scmp.ne.s32.totalorder %s19, %s22
    %p28 = scmp.eq.s32.totalorder %s9, 0
    %p29 = por %p27, %p28
    %p30 = scmp.ne.s32.totalorder %s19, %s22
    %p31 = scmp.eq.s32.totalorder %s14, 1
    %p32 = por %p30, %p31
    %p33 = scmp.ne.s32.totalorder %s22, %s23
    %p34 = scmp.eq.s32.totalorder %s14, 0
    %p35 = por %p33, %p34
    %p36 = scmp.ne.s32.totalorder %s22, %s23
    %p37 = scmp.eq.s32.totalorder %s15, 1
    %p38 = por %p36, %p37
    %p40 = scmp.ne.s32.totalorder %s23, %s39
    %p41 = scmp.eq.s32.totalorder %s15, 0
    %p42 = por %p40, %p41
    %s44 = sadd.s32 %s43, 1
    %p47 = scmp.eq.s32.totalorder %s9, 1
    %p48 = scmp.ne.s32.totalorder %s43, %s45
    %p49 = scmp.eq.s32.totalorder %s9, 0
    %p50 = por %p48, %p49
    %p51 = scmp.ne.s32.totalorder %s43, %s45
    %p52 = scmp.eq.s32.totalorder %s14, 1
    %p53 = por %p51, %p52
    %p54 = scmp.ne.s32.totalorder %s45, %s46
    %p55 = scmp.eq.s32.totalorder %s14, 0
    %p56 = por %p54, %p55
    %p57 = scmp.ne.s32.totalorder %s45, %s46
    %p58 = scmp.eq.s32.totalorder %s15, 1
    %p59 = por %p57, %p58
    %p61 = scmp.ne.s32.totalorder %s46, %s60
    %p62 = scmp.eq.s32.totalorder %s15, 0
    %p63 = por %p61, %p62
    %s65 = sadd.s32 %s64, 1
    %p68 = scmp.eq.s32.totalorder %s9, 1
    %p69 = scmp.ne.s32.totalorder %s64, %s66
    %p70 = scmp.eq.s32.totalorder %s9, 0
    %p71 = por %p69, %p70
    %p72 = scmp.ne.s32.totalorder %s64, %s66
    %p73 = scmp.eq.s32.totalorder %s14, 1
    %p74 = por %p72, %p73
    %p75 = scmp.ne.s32.totalorder %s66, %s67
    %p76 = scmp.eq.s32.totalorder %s14, 0
    %p77 = por %p75, %p76
    %p78 = scmp.ne.s32.totalorder %s66, %s67
    %p79 = scmp.eq.s32.totalorder %s15, 1
    %p80 = por %p78, %p79
    %p82 = scmp.ne.s32.totalorder %s67, %s81
    %p83 = scmp.eq.s32.totalorder %s15, 0
    %p84 = por %p82, %p83
    %s85 = ssub.s32 %s9, %s16
    %p86 = scmp.eq.s32.totalorder %s85, 0
    %s88 = sadd.s32 %s87, 1
    %s89 = scalar_select %p86, %s87, %s88
    %p92 = pneg %p86
    %p93 = scmp.eq.s32.totalorder %s9, 1
    %p94 = por %p92, %p93
    %p95 = scmp.ne.s32.totalorder %s87, %s90
    %p96 = scmp.eq.s32.totalorder %s9, 0
    %p97 = por %p95, %p96
    %p98 = scmp.ne.s32.totalorder %s87, %s90
    %p99 = scmp.eq.s32.totalorder %s14, 1
    %p100 = por %p98, %p99
    %p101 = scmp.ne.s32.totalorder %s90, %s91
    %p102 = scmp.eq.s32.totalorder %s14, 0
    %p103 = por %p101, %p102
    %p104 = scmp.ne.s32.totalorder %s90, %s91
    %p105 = scmp.eq.s32.totalorder %s15, 1
    %p106 = por %p104, %p105
    %p108 = scmp.ne.s32.totalorder %s91, %s107
    %p109 = scmp.eq.s32.totalorder %s15, 0
    %p110 = por %p108, %p109
    %p111 = scmp.le.s32.totalorder 1, %s9
    %p112 = scmp.lt.s32.totalorder %s9, 3
    %p113 = pnand %p111, %p112
    %p114 = pneg %p113
    // Predicated region
    $region9: #{transformer_forward.24} parent=5 // pred_check
      _
    $region10: #{transformer_forward.24} parent=5 // pred_check_branch
      %116 = sbr.rel (%p113) target = $region12
    $region11: #{transformer_forward.24} parent=5 // pred_region
      %s117 = ssub.s32 %s9, 1
      // Predicated region
      $region13: #{transformer_forward.24} parent=11 // pred_check
        %p118 = pneg %p56
      $region14: #{transformer_forward.24} parent=11 // pred_check_branch
        %120 = sbr.rel (%p118) target = $region16
      $region15: #{transformer_forward.24} parent=11 // pred_region
        _
      $region16: #{transformer_forward.24} parent=11 // pred_fallthru
        _
      // Predicated region
      $region17: #{transformer_forward.24} parent=11 // pred_check
        %p121 = pneg %p77
      $region18: #{transformer_forward.24} parent=11 // pred_check_branch
        %123 = sbr.rel (%p121) target = $region20
      $region19: #{transformer_forward.24} parent=11 // pred_region
        _
      $region20: #{transformer_forward.24} parent=11 // pred_fallthru
        _
    $region12: #{transformer_forward.24} parent=5 // pred_fallthru
      _
    %p124 = scmp.lt.s32.totalorder %s9, 2
    // Predicated region
    $region21: #{transformer_forward.24} parent=5 // pred_check
      %p125 = pneg %p124
    $region22: #{transformer_forward.24} parent=5 // pred_check_branch
      %127 = sbr.rel (%p125) target = $region24
    $region23: #{transformer_forward.24} parent=5 // pred_region
      // Predicated region
      $region25: #{transformer_forward.24} parent=23 // pred_check
        %p128 = pneg %p29
      $region26: #{transformer_forward.24} parent=23 // pred_check_branch
        %130 = sbr.rel (%p128) target = $region28
      $region27: #{transformer_forward.24} parent=23 // pred_region
        %p131 = scmp.lt.s32.totalorder %s9, 1
        %s132 = scalar_select %p131, %s9, 1
        %s133 = smul.addr %s132, 8
        %s134 = scalar_lea.vmem %s0, %s133
      $region28: #{transformer_forward.24} parent=23 // pred_fallthru
        _
    $region24: #{transformer_forward.24} parent=5 // pred_fallthru
      _
    %p135 = scmp.le.s32.totalorder 1, %s9
    %p136 = scmp.lt.s32.totalorder %s9, 3
    %p137 = pnand %p135, %p136
    %p138 = pneg %p137
    // Predicated region
    $region29: #{transformer_forward.24} parent=5 // pred_check
      _
    $region30: #{transformer_forward.24} parent=5 // pred_check_branch
      %140 = sbr.rel (%p137) target = $region32
    $region31: #{transformer_forward.24} parent=5 // pred_region
      %s141 = ssub.s32 %s9, 1
      %p142 = scmp.lt.s32.totalorder %s14, 1
      %s143 = scalar_select %p142, %s14, 1
      %s144 = smul.addr %s143, 8
      %s145 = scalar_lea.vmem %s0, %s144
      %p146 = pneg %p35
      %p147 = pneg %p32
      %p148 = pneg %p56
      %p149 = pneg %p53
      %p150 = pneg %p77
      %p151 = pneg %p74
      %p152 = pneg %p103
      %p153 = pneg %p100
      %p154 = scmp.lt.s32.totalorder %s14, 1
      %s155 = scalar_select %p154, %s14, 1
      %s156 = smul.addr %s155, 8
      %s157 = scalar_lea.vmem %s3, %s156
      %p158 = scmp.lt.s32.totalorder %s14, 1
      %s159 = scalar_select %p158, %s14, 1
      %s160 = smul.addr %s159, 8
      %s161 = scalar_lea.vmem %s0, %s160
      %p162 = scmp.lt.s32.totalorder %s14, 1
      %s163 = scalar_select %p162, %s14, 1
      %s164 = smul.addr %s163, 8
      %s165 = scalar_lea.vmem %s3, %s164
      %v166 = vld [vmem:[%s161] sm:$0xff]
      %v167 = vld [vmem:[%s1] sm:$0x1]
      %v168 = vld [vmem:[%s2] sm:$0x1]
      %vm169 = vcmask 261120
      %v170 = vsel %vm169, %v166, 0.0
      %171 = vadd.xlane.f32.xlu0 %v170
      %v172 = vpop.xlane.xlu0 %171
      %v173 = vrcp.pop 32.0
      %v174 = vmul.f32 32.0, %v173
      %v175 = vsub.f32 1.0, %v174
      %v176 = vmul.f32 %v173, %v175
      %v177 = vadd.f32 %v173, %v176
      %vm178 = vweird.f32 %v173
      %v179 = vsel %vm178, %v173, %v177
      %v180 = vmul.f32 %v172, %v179
      %v181 = vsub.f32 %v166, %v180
      %v182 = vmul.f32 %v181, %v181
      %v183 = vsel %vm169, %v182, 0.0
      %184 = vadd.xlane.f32.xlu0 %v183
      %v185 = vpop.xlane.xlu0 %184
      %v186 = vmul.f32 %v185, %v179
      %v187 = vadd.f32 %v186, 1e-05
      %v188 = vrsqrt.pop %v187
      %v189 = vmul.f32 %v188, %v187
      %v190 = vmul.f32 %v189, %v188
      %v191 = vmul.f32 0.5, %v190
      %v192 = vsub.f32 1.5, %v191
      %v193 = vmul.f32 %v188, %v192
      %vm194 = vweird.f32 %v187
      %vm195 = vweird.f32 %v188
      %vm196 = vmor %vm194, %vm195
      %v197 = vsel %vm196, %v188, %v193
      %v198 = vmul.f32 %v181, %v197
      %v200 = vperm.slane %v167, 0
      %v202 = vmul.f32 %v198, %v200
      %v204 = vperm.slane %v168, 0
      %v206 = vadd.f32 %v202, %v204
      %207 = vst.msk [vmem:[%s165] sm:$0xff] %vm169, %v206
      %p208 = scmp.lt.s32.totalorder %s14, 1
      %s209 = scalar_select %p208, %s14, 1
      %s210 = smul.addr %s209, 8
      %s211 = scalar_lea.vmem %s3, %s210
      // Predicated region
      $region33: #{transformer_forward.24} parent=31 // pred_check
        %p212 = pneg %p100
      $region34: #{transformer_forward.24} parent=31 // pred_check_branch
        %214 = sbr.rel (%p212) target = $region36
      $region35: #{transformer_forward.24} parent=31 // pred_region
        _
      $region36: #{transformer_forward.24} parent=31 // pred_fallthru
        _
    $region32: #{transformer_forward.24} parent=5 // pred_fallthru
      _
    %p215 = scmp.le.s32.totalorder 2, %s9
    // Predicated region
    $region37: #{transformer_forward.24} parent=5 // pred_check
      %p216 = pneg %p215
    $region38: #{transformer_forward.24} parent=5 // pred_check_branch
      %218 = sbr.rel (%p216) target = $region40
    $region39: #{transformer_forward.24} parent=5 // pred_region
      %s219 = ssub.s32 %s9, 2
      // Predicated region
      $region41: #{transformer_forward.24} parent=39 // pred_check
        %p220 = pneg %p106
      $region42: #{transformer_forward.24} parent=39 // pred_check_branch
        %222 = sbr.rel (%p220) target = $region44
      $region43: #{transformer_forward.24} parent=39 // pred_region
        %p223 = scmp.lt.s32.totalorder %s15, 1
        %s224 = scalar_select %p223, %s15, 1
        %s225 = smul.addr %s224, 8
        %s226 = scalar_lea.vmem %s3, %s225
      $region44: #{transformer_forward.24} parent=39 // pred_fallthru
        _
    $region40: #{transformer_forward.24} parent=5 // pred_fallthru
      _
  $region6: #{transformer_forward.24} parent=0 // loop_footer
    %s13 = sadd.s32 1, %s9
  $region7: #{transformer_forward.24} parent=0 // loop_footer_branch
    %8 = sbr.rel target = $region3
  $region8: #{transformer_forward.24} parent=0 // loop_exit
    _

// kernel: transformer_forward.18
$region0: #{transformer_forward.18}
  #allocation0 [shape = 'u32[]', space=smem, size = 0x4, offset = 0x4, fixed_abs, tag = 'smem constant byte address 0x4 - core index']
  #allocation1 [shape = 'u32[72,128]{1,0:T(1,128)}', space=vmem, size = 0x9000, scoped, tag = 'internal scratch']
  %s0 = inlined_call_operand.vmem [shape: f32[2,8,32], index: 0, kind: input, shape index: {}]
  %s1 = inlined_call_operand.vmem [shape: bf16[32,96], index: 1, kind: input, shape index: {}]
  %s2 = inlined_call_operand.vmem [shape: f32[1,96], index: 2, kind: input, shape index: {}]
  %s3 = inlined_call_operand.vmem [shape: bf16[32,32], index: 3, kind: input, shape index: {}]
  %s4 = inlined_call_operand.vmem [shape: f32[1,32], index: 4, kind: input, shape index: {}]
  %s5 = inlined_call_operand.vmem [shape: f32[1,32], index: 5, kind: input, shape index: {}]
  %s6 = inlined_call_operand.vmem [shape: f32[1,32], index: 6, kind: input, shape index: {}]
  %s7 = inlined_call_operand.vmem [shape: f32[2,8,32], index: 7, kind: output, shape index: {}]
  %s8 = sld [smem:[#allocation0]]
  $region61: #{transformer_forward.18} parent=0
    _
  %s10 = ssub.s32 1, %s8
  %s11 = scalar_select 0, %s10, %s8
  loop: start=0, step=1, limit=4
  $region2: #{transformer_forward.18} parent=0 // loop_pre_header
    _
  $region3: #{transformer_forward.18} parent=0 // loop_header
    %s13 = sphi 0, %s17
    %p14 = scmp.ge.s32.totalorder %s13, 4
    %s23 = sphi 0, %s25
    %s26 = sphi 0, %s23
    %s27 = sphi 0, %s26
    %s43 = sphi 0, %s27
    %s47 = sphi 0, %s47
    %s49 = sphi 0, %s47
    %s50 = sphi 0, %s49
    %s64 = sphi 0, %s50
    %s68 = sphi 0, %s68
    %s70 = sphi 0, %s68
    %s71 = sphi 0, %s70
    %s85 = sphi 0, %s71
    %s89 = sphi 0, %s89
    %s91 = sphi 0, %s89
    %s92 = sphi 0, %s91
    %s106 = sphi 0, %s92
    %s110 = sphi 0, %s110
    %s112 = sphi 0, %s110
    %s113 = sphi 0, %s112
    %s127 = sphi 0, %s113
    %s131 = sphi 0, %s131
    %s133 = sphi 0, %s131
    %s134 = sphi 0, %s133
    %s148 = sphi 0, %s134
    %s152 = sphi 0, %s152
    %s154 = sphi 0, %s152
    %s155 = sphi 0, %s154
    %s169 = sphi 0, %s155
    %s175 = sphi 0, %s177
    %s178 = sphi 0, %s175
    %s179 = sphi 0, %s178
    %s195 = sphi 0, %s179
  $region4: #{transformer_forward.18} parent=0 // loop_header_branch
    %16 = sbr.rel (%p14) target = $region8
  $region5: #{transformer_forward.18} parent=0 // loop_body
    %s18 = ssub.s32 %s13, 1
    %s19 = ssub.s32 %s13, 2
    %s20 = sadd.s32 %s13, 1
    %s21 = ssub.s32 %s13, %s20
    %p22 = scmp.eq.s32.totalorder %s21, 0
    %s24 = sadd.s32 %s23, 1
    %s25 = scalar_select %p22, %s23, %s24
    %p28 = pneg %p22
    %p29 = scmp.eq.s32.totalorder %s13, 1
    %p30 = por %p28, %p29
    %p31 = scmp.ne.s32.totalorder %s23, %s26
    %p32 = scmp.eq.s32.totalorder %s13, 0
    %p33 = por %p31, %p32
    %p34 = scmp.ne.s32.totalorder %s23, %s26
    %p35 = scmp.eq.s32.totalorder %s18, 1
    %p36 = por %p34, %p35
    %p37 = scmp.ne.s32.totalorder %s26, %s27
    %p38 = scmp.eq.s32.totalorder %s18, 0
    %p39 = por %p37, %p38
    %p40 = scmp.ne.s32.totalorder %s26, %s27
    %p41 = scmp.eq.s32.totalorder %s19, 1
    %p42 = por %p40, %p41
    %p44 = scmp.ne.s32.totalorder %s27, %s43
    %p45 = scmp.eq.s32.totalorder %s19, 0
    %p46 = por %p44, %p45
    %s48 = sadd.s32 %s47, 1
    %p51 = scmp.eq.s32.totalorder %s13, 1
    %p52 = scmp.ne.s32.totalorder %s47, %s49
    %p53 = scmp.eq.s32.totalorder %s13, 0
    %p54 = por %p52, %p53
    %p55 = scmp.ne.s32.totalorder %s47, %s49
    %p56 = scmp.eq.s32.totalorder %s18, 1
    %p57 = por %p55, %p56
    %p58 = scmp.ne.s32.totalorder %s49, %s50
    %p59 = scmp.eq.s32.totalorder %s18, 0
    %p60 = por %p58, %p59
    %p61 = scmp.ne.s32.totalorder %s49, %s50
    %p62 = scmp.eq.s32.totalorder %s19, 1
    %p63 = por %p61, %p62
    %p65 = scmp.ne.s32.totalorder %s50, %s64
    %p66 = scmp.eq.s32.totalorder %s19, 0
    %p67 = por %p65, %p66
    %s69 = sadd.s32 %s68, 1
    %p72 = scmp.eq.s32.totalorder %s13, 1
    %p73 = scmp.ne.s32.totalorder %s68, %s70
    %p74 = scmp.eq.s32.totalorder %s13, 0
    %p75 = por %p73, %p74
    %p76 = scmp.ne.s32.totalorder %s68, %s70
    %p77 = scmp.eq.s32.totalorder %s18, 1
    %p78 = por %p76, %p77
    %p79 = scmp.ne.s32.totalorder %s70, %s71
    %p80 = scmp.eq.s32.totalorder %s18, 0
    %p81 = por %p79, %p80
    %p82 = scmp.ne.s32.totalorder %s70, %s71
    %p83 = scmp.eq.s32.totalorder %s19, 1
    %p84 = por %p82, %p83
    %p86 = scmp.ne.s32.totalorder %s71, %s85
    %p87 = scmp.eq.s32.totalorder %s19, 0
    %p88 = por %p86, %p87
    %s90 = sadd.s32 %s89, 1
    %p93 = scmp.eq.s32.totalorder %s13, 1
    %p94 = scmp.ne.s32.totalorder %s89, %s91
    %p95 = scmp.eq.s32.totalorder %s13, 0
    %p96 = por %p94, %p95
    %p97 = scmp.ne.s32.totalorder %s89, %s91
    %p98 = scmp.eq.s32.totalorder %s18, 1
    %p99 = por %p97, %p98
    %p100 = scmp.ne.s32.totalorder %s91, %s92
    %p101 = scmp.eq.s32.totalorder %s18, 0
    %p102 = por %p100, %p101
    %p103 = scmp.ne.s32.totalorder %s91, %s92
    %p104 = scmp.eq.s32.totalorder %s19, 1
    %p105 = por %p103, %p104
    %p107 = scmp.ne.s32.totalorder %s92, %s106
    %p108 = scmp.eq.s32.totalorder %s19, 0
    %p109 = por %p107, %p108
    %s111 = sadd.s32 %s110, 1
    %p114 = scmp.eq.s32.totalorder %s13, 1
    %p115 = scmp.ne.s32.totalorder %s110, %s112
    %p116 = scmp.eq.s32.totalorder %s13, 0
    %p117 = por %p115, %p116
    %p118 = scmp.ne.s32.totalorder %s110, %s112
    %p119 = scmp.eq.s32.totalorder %s18, 1
    %p120 = por %p118, %p119
    %p121 = scmp.ne.s32.totalorder %s112, %s113
    %p122 = scmp.eq.s32.totalorder %s18, 0
    %p123 = por %p121, %p122
    %p124 = scmp.ne.s32.totalorder %s112, %s113
    %p125 = scmp.eq.s32.totalorder %s19, 1
    %p126 = por %p124, %p125
    %p128 = scmp.ne.s32.totalorder %s113, %s127
    %p129 = scmp.eq.s32.totalorder %s19, 0
    %p130 = por %p128, %p129
    %s132 = sadd.s32 %s131, 1
    %p135 = scmp.eq.s32.totalorder %s13, 1
    %p136 = scmp.ne.s32.totalorder %s131, %s133
    %p137 = scmp.eq.s32.totalorder %s13, 0
    %p138 = por %p136, %p137
    %p139 = scmp.ne.s32.totalorder %s131, %s133
    %p140 = scmp.eq.s32.totalorder %s18, 1
    %p141 = por %p139, %p140
    %p142 = scmp.ne.s32.totalorder %s133, %s134
    %p143 = scmp.eq.s32.totalorder %s18, 0
    %p144 = por %p142, %p143
    %p145 = scmp.ne.s32.totalorder %s133, %s134
    %p146 = scmp.eq.s32.totalorder %s19, 1
    %p147 = por %p145, %p146
    %p149 = scmp.ne.s32.totalorder %s134, %s148
    %p150 = scmp.eq.s32.totalorder %s19, 0
    %p151 = por %p149, %p150
    %s153 = sadd.s32 %s152, 1
    %p156 = scmp.eq.s32.totalorder %s13, 1
    %p157 = scmp.ne.s32.totalorder %s152, %s154
    %p158 = scmp.eq.s32.totalorder %s13, 0
    %p159 = por %p157, %p158
    %p160 = scmp.ne.s32.totalorder %s152, %s154
    %p161 = scmp.eq.s32.totalorder %s18, 1
    %p162 = por %p160, %p161
    %p163 = scmp.ne.s32.totalorder %s154, %s155
    %p164 = scmp.eq.s32.totalorder %s18, 0
    %p165 = por %p163, %p164
    %p166 = scmp.ne.s32.totalorder %s154, %s155
    %p167 = scmp.eq.s32.totalorder %s19, 1
    %p168 = por %p166, %p167
    %p170 = scmp.ne.s32.totalorder %s155, %s169
    %p171 = scmp.eq.s32.totalorder %s19, 0
    %p172 = por %p170, %p171
    %s173 = ssub.s32 %s13, %s20
    %p174 = scmp.eq.s32.totalorder %s173, 0
    %s176 = sadd.s32 %s175, 1
    %s177 = scalar_select %p174, %s175, %s176
    %p180 = pneg %p174
    %p181 = scmp.eq.s32.totalorder %s13, 1
    %p182 = por %p180, %p181
    %p183 = scmp.ne.s32.totalorder %s175, %s178
    %p184 = scmp.eq.s32.totalorder %s13, 0
    %p185 = por %p183, %p184
    %p186 = scmp.ne.s32.totalorder %s175, %s178
    %p187 = scmp.eq.s32.totalorder %s18, 1
    %p188 = por %p186, %p187
    %p189 = scmp.ne.s32.totalorder %s178, %s179
    %p190 = scmp.eq.s32.totalorder %s18, 0
    %p191 = por %p189, %p190
    %p192 = scmp.ne.s32.totalorder %s178, %s179
    %p193 = scmp.eq.s32.totalorder %s19, 1
    %p194 = por %p192, %p193
    %p196 = scmp.ne.s32.totalorder %s179, %s195
    %p197 = scmp.eq.s32.totalorder %s19, 0
    %p198 = por %p196, %p197
    %p199 = scmp.le.s32.totalorder 1, %s13
    %p200 = scmp.lt.s32.totalorder %s13, 3
    %p201 = pnand %p199, %p200
    %p202 = pneg %p201
    // Predicated region
    $region9: #{transformer_forward.18} parent=5 // pred_check
      _
    $region10: #{transformer_forward.18} parent=5 // pred_check_branch
      %204 = sbr.rel (%p201) target = $region12
    $region11: #{transformer_forward.18} parent=5 // pred_region
      %s205 = ssub.s32 %s13, 1
      // Predicated region
      $region13: #{transformer_forward.18} parent=11 // pred_check
        %p206 = pneg %p60
      $region14: #{transformer_forward.18} parent=11 // pred_check_branch
        %208 = sbr.rel (%p206) target = $region16
      $region15: #{transformer_forward.18} parent=11 // pred_region
        _
      $region16: #{transformer_forward.18} parent=11 // pred_fallthru
        _
      // Predicated region
      $region17: #{transformer_forward.18} parent=11 // pred_check
        %p209 = pneg %p81
      $region18: #{transformer_forward.18} parent=11 // pred_check_branch
        %211 = sbr.rel (%p209) target = $region20
      $region19: #{transformer_forward.18} parent=11 // pred_region
        _
      $region20: #{transformer_forward.18} parent=11 // pred_fallthru
        _
      // Predicated region
      $region21: #{transformer_forward.18} parent=11 // pred_check
        %p212 = pneg %p102
      $region22: #{transformer_forward.18} parent=11 // pred_check_branch
        %214 = sbr.rel (%p212) target = $region24
      $region23: #{transformer_forward.18} parent=11 // pred_region
        _
      $region24: #{transformer_forward.18} parent=11 // pred_fallthru
        _
      // Predicated region
      $region25: #{transformer_forward.18} parent=11 // pred_check
        %p215 = pneg %p123
      $region26: #{transformer_forward.18} parent=11 // pred_check_branch
        %217 = sbr.rel (%p215) target = $region28
      $region27: #{transformer_forward.18} parent=11 // pred_region
        _
      $region28: #{transformer_forward.18} parent=11 // pred_fallthru
        _
      // Predicated region
      $region29: #{transformer_forward.18} parent=11 // pred_check
        %p218 = pneg %p144
      $region30: #{transformer_forward.18} parent=11 // pred_check_branch
        %220 = sbr.rel (%p218) target = $region32
      $region31: #{transformer_forward.18} parent=11 // pred_region
        _
      $region32: #{transformer_forward.18} parent=11 // pred_fallthru
        _
      // Predicated region
      $region33: #{transformer_forward.18} parent=11 // pred_check
        %p221 = pneg %p165
      $region34: #{transformer_forward.18} parent=11 // pred_check_branch
        %223 = sbr.rel (%p221) target = $region36
      $region35: #{transformer_forward.18} parent=11 // pred_region
        _
      $region36: #{transformer_forward.18} parent=11 // pred_fallthru
        _
    $region12: #{transformer_forward.18} parent=5 // pred_fallthru
      _
    %p224 = scmp.lt.s32.totalorder %s13, 2
    // Predicated region
    $region37: #{transformer_forward.18} parent=5 // pred_check
      %p225 = pneg %p224
    $region38: #{transformer_forward.18} parent=5 // pred_check_branch
      %227 = sbr.rel (%p225) target = $region40
    $region39: #{transformer_forward.18} parent=5 // pred_region
      // Predicated region
      $region41: #{transformer_forward.18} parent=39 // pred_check
        %p228 = pneg %p33
      $region42: #{transformer_forward.18} parent=39 // pred_check_branch
        %230 = sbr.rel (%p228) target = $region44
      $region43: #{transformer_forward.18} parent=39 // pred_region
        %p231 = scmp.lt.s32.totalorder %s13, 1
        %s232 = scalar_select %p231, %s13, 1
        %s233 = smul.addr %s232, 8
        %s234 = scalar_lea.vmem %s0, %s233
      $region44: #{transformer_forward.18} parent=39 // pred_fallthru
        _
    $region40: #{transformer_forward.18} parent=5 // pred_fallthru
      _
    %p235 = scmp.le.s32.totalorder 1, %s13
    %p236 = scmp.lt.s32.totalorder %s13, 3
    %p237 = pnand %p235, %p236
    %p238 = pneg %p237
    // Predicated region
    $region45: #{transformer_forward.18} parent=5 // pred_check
      _
    $region46: #{transformer_forward.18} parent=5 // pred_check_branch
      %240 = sbr.rel (%p237) target = $region48
    $region47: #{transformer_forward.18} parent=5 // pred_region
      %s241 = ssub.s32 %s13, 1
      %p242 = scmp.lt.s32.totalorder %s18, 1
      %s243 = scalar_select %p242, %s18, 1
      %s244 = smul.addr %s243, 8
      %s245 = scalar_lea.vmem %s0, %s244
      %p246 = pneg %p39
      %p247 = pneg %p36
      %p248 = pneg %p60
      %p249 = pneg %p57
      %p250 = pneg %p81
      %p251 = pneg %p78
      %p252 = pneg %p102
      %p253 = pneg %p99
      %p254 = pneg %p123
      %p255 = pneg %p120
      %p256 = pneg %p144
      %p257 = pneg %p141
      %p258 = pneg %p165
      %p259 = pneg %p162
      %p260 = pneg %p191
      %p261 = pneg %p188
      %p262 = scmp.lt.s32.totalorder %s18, 1
      %s263 = scalar_select %p262, %s18, 1
      %s264 = smul.addr %s263, 8
      %s265 = scalar_lea.vmem %s7, %s264
      %p266 = scmp.lt.s32.totalorder %s18, 1
      %s267 = scalar_select %p266, %s18, 1
      %s268 = smul.addr %s267, 8
      %s269 = scalar_lea.vmem %s0, %s268
      %p270 = scmp.lt.s32.totalorder %s18, 1
      %s271 = scalar_select %p270, %s18, 1
      %s272 = smul.addr %s271, 8
      %s273 = scalar_lea.vmem %s7, %s272
      %v275 = vld [vmem:[%s269] sm:$0xff]
      %v276 = vpack.c.bf16 %v275, %v275
      %v277 = vld [vmem:[%s1] sm:$0xf]
      %v278 = vld [vmem:[%s1 + $0x4] sm:$0xf]
      %v279 = vld [vmem:[%s1 + $0x8] sm:$0xf]
      %v280 = vld [vmem:[%s1 + $0xc] sm:$0xf]
      %v281 = vld [vmem:[%s2] sm:$0x1]
      %v283 = vperm.slane %v281, 0
      %v289 = vunpack.c.l.b16 %v277
      %v290 = vunpack.c.l.b16 %v278
      %v291 = vunpack.c.l.b16 %v279
      %v292 = vunpack.c.l.b16 %v280
      %v293 = vpack.c.b16 %v290, %v289
      %v294 = vpack.c.b16 %v292, %v291
      %vm297 = vcmask 261120
      %v299 = vsel %vm297, %v276, 0
      %301 = vmatpush.bf16.msra.mxu0 0
      %302 = vmatpush.bf16.msra.mxu0 0
      %303 = vmatpush.bf16.msra.mxu0 0
      %304 = vmatpush.bf16.msra.mxu0 0
      %305 = vmatpush.bf16.msra.mxu0 0
      %306 = vmatpush.bf16.msra.mxu0 0
      %307 = vmatpush.bf16.msra.mxu0 %v294
      %308 = vmatpush.bf16.msra.mxu0 %v293
      %309 = vmatmul.bf16.gmra.mxu0 %v299
      %v310 = vpop.f32.mrf.mxu0
      %v311 = vadd.f32 %v283, %v310
      %v312 = vpop.f32.mrf.mxu0
      %313 = vdwg.mxu0
      %v314 = vpack.c.bf16 %v311, %v311
      %316 = vrot.lane.b32.xlu0 %v314, 96
      %v317 = vpop.permute.xlu0 %316
      %vm318 = vcmask 64512
      %v320 = vsel %vm318, %v314, 0
      %v323 = vsel %vm318, %v317, 0
      %325 = vmatpush.bf16.xpose.msra.mxu0 0
      %326 = vmatpush.bf16.xpose.msra.mxu0 0
      %327 = vmatpush.bf16.xpose.msra.mxu0 0
      %328 = vmatpush.bf16.xpose.msra.mxu0 0
      %329 = vmatpush.bf16.xpose.msra.mxu0 0
      %330 = vmatpush.bf16.xpose.msra.mxu0 0
      %331 = vmatpush.bf16.xpose.msra.mxu0 0
      %332 = vmatpush.bf16.xpose.msra.mxu0 %v323
      %333 = vmatmul.bf16.gmra.mxu0 %v320
      %v334 = vpop.f32.mrf.mxu0
      %v335 = vadd.f32 0.0, %v334
      %v336 = vpop.f32.mrf.mxu0
      %337 = vdwg.mxu0
      %v338 = vmul.f32 %v335, 0.35355338
      %v339 = vsel %vm318, %v338, -inf
      %340 = vmax.xlane.f32.xlu0 %v339
      %v341 = vpop.xlane.xlu0 %340
      %v342 = vsub.f32 %v338, %v341
      %v343 = vmul.f32 %v342, 1.442695
      %v344 = vpow.pop %v343
      %v345 = vsel %vm318, %v344, 0.0
      %346 = vadd.xlane.f32.xlu0 %v345
      %v347 = vpop.xlane.xlu0 %346
      %v348 = vpack.c.bf16 %v344, %v344
      %349 = vrot.lane.b32.xlu0 %v314, 64
      %v350 = vpop.permute.xlu0 %349
      %v352 = vsel %vm318, %v348, 0
      %vm354 = vcmask 1043456
      %v356 = vsel %vm354, %v350, 0
      %358 = vmatpush.bf16.msra.mxu0 0
      %359 = vmatpush.bf16.msra.mxu0 0
      %360 = vmatpush.bf16.msra.mxu0 0
      %361 = vmatpush.bf16.msra.mxu0 0
      %362 = vmatpush.bf16.msra.mxu0 0
      %363 = vmatpush.bf16.msra.mxu0 0
      %364 = vmatpush.bf16.msra.mxu0 0
      %365 = vmatpush.bf16.msra.mxu0 %v356
      %366 = vmatmul.bf16.gmra.mxu0 %v352
      %v367 = vpop.f32.mrf.mxu0
      %v368 = vadd.f32 0.0, %v367
      %v369 = vpop.f32.mrf.mxu0
      %370 = vdwg.mxu0
      %v371 = vrcp.pop %v347
      %v372 = vmul.f32 %v368, %v371
      %373 = vrot.lane.b32.xlu0 %v314, 120
      %v374 = vpop.permute.xlu0 %373
      %375 = vrot.lane.b32.xlu0 %v314, 88
      %v376 = vpop.permute.xlu0 %375
      %v378 = vsel %vm318, %v374, 0
      %v381 = vsel %vm318, %v376, 0
      %383 = vmatpush.bf16.xpose.msra.mxu0 0
      %384 = vmatpush.bf16.xpose.msra.mxu0 0
      %385 = vmatpush.bf16.xpose.msra.mxu0 0
      %386 = vmatpush.bf16.xpose.msra.mxu0 0
      %387 = vmatpush.bf16.xpose.msra.mxu0 0
      %388 = vmatpush.bf16.xpose.msra.mxu0 0
      %389 = vmatpush.bf16.xpose.msra.mxu0 0
      %390 = vmatpush.bf16.xpose.msra.mxu0 %v381
      %391 = vmatmul.bf16.gmra.mxu0 %v378
      %v392 = vpop.f32.mrf.mxu0
      %v393 = vadd.f32 0.0, %v392
      %v394 = vpop.f32.mrf.mxu0
      %395 = vdwg.mxu0
      %v396 = vmul.f32 %v393, 0.35355338
      %v397 = vsel %vm318, %v396, -inf
      %398 = vmax.xlane.f32.xlu0 %v397
      %v399 = vpop.xlane.xlu0 %398
      %v400 = vsub.f32 %v396, %v399
      %v401 = vmul.f32 %v400, 1.442695
      %v402 = vpow.pop %v401
      %v403 = vsel %vm318, %v402, 0.0
      %404 = vadd.xlane.f32.xlu0 %v403
      %v405 = vpop.xlane.xlu0 %404
      %v406 = vpack.c.bf16 %v402, %v402
      %407 = vrot.lane.b32.xlu0 %v314, 56
      %v408 = vpop.permute.xlu0 %407
      %v410 = vsel %vm318, %v406, 0
      %v413 = vsel %vm354, %v408, 0
      %415 = vmatpush.bf16.msra.mxu0 0
      %416 = vmatpush.bf16.msra.mxu0 0
      %417 = vmatpush.bf16.msra.mxu0 0
      %418 = vmatpush.bf16.msra.mxu0 0
      %419 = vmatpush.bf16.msra.mxu0 0
      %420 = vmatpush.bf16.msra.mxu0 0
      %421 = vmatpush.bf16.msra.mxu0 0
      %422 = vmatpush.bf16.msra.mxu0 %v413
      %423 = vmatmul.bf16.gmra.mxu0 %v410
      %v424 = vpop.f32.mrf.mxu0
      %v425 = vadd.f32 0.0, %v424
      %v426 = vpop.f32.mrf.mxu0
      %427 = vdwg.mxu0
      %v428 = vrcp.pop %v405
      %v429 = vmul.f32 %v425, %v428
      %430 = vrot.lane.b32.xlu0 %v314, 112
      %v431 = vpop.permute.xlu0 %430
      %432 = vrot.lane.b32.xlu0 %v314, 80
      %v433 = vpop.permute.xlu0 %432
      %v435 = vsel %vm318, %v431, 0
      %v438 = vsel %vm318, %v433, 0
      %440 = vmatpush.bf16.xpose.msra.mxu0 0
      %441 = vmatpush.bf16.xpose.msra.mxu0 0
      %442 = vmatpush.bf16.xpose.msra.mxu0 0
      %443 = vmatpush.bf16.xpose.msra.mxu0 0
      %444 = vmatpush.bf16.xpose.msra.mxu0 0
      %445 = vmatpush.bf16.xpose.msra.mxu0 0
      %446 = vmatpush.bf16.xpose.msra.mxu0 0
      %447 = vmatpush.bf16.xpose.msra.mxu0 %v438
      %448 = vmatmul.bf16.gmra.mxu0 %v435
      %v449 = vpop.f32.mrf.mxu0
      %v450 = vadd.f32 0.0, %v449
      %v451 = vpop.f32.mrf.mxu0
      %452 = vdwg.mxu0
      %v453 = vmul.f32 %v450, 0.35355338
      %v454 = vsel %vm318, %v453, -inf
      %455 = vmax.xlane.f32.xlu0 %v454
      %v456 = vpop.xlane.xlu0 %455
      %v457 = vsub.f32 %v453, %v456
      %v458 = vmul.f32 %v457, 1.442695
      %v459 = vpow.pop %v458
      %v460 = vsel %vm318, %v459, 0.0
      %461 = vadd.xlane.f32.xlu0 %v460
      %v462 = vpop.xlane.xlu0 %461
      %v463 = vpack.c.bf16 %v459, %v459
      %464 = vrot.lane.b32.xlu0 %v314, 48
      %v465 = vpop.permute.xlu0 %464
      %v467 = vsel %vm318, %v463, 0
      %v470 = vsel %vm354, %v465, 0
      %472 = vmatpush.bf16.msra.mxu0 0
      %473 = vmatpush.bf16.msra.mxu0 0
      %474 = vmatpush.bf16.msra.mxu0 0
      %475 = vmatpush.bf16.msra.mxu0 0
      %476 = vmatpush.bf16.msra.mxu0 0
      %477 = vmatpush.bf16.msra.mxu0 0
      %478 = vmatpush.bf16.msra.mxu0 0
      %479 = vmatpush.bf16.msra.mxu0 %v470
      %480 = vmatmul.bf16.gmra.mxu0 %v467
      %v481 = vpop.f32.mrf.mxu0
      %v482 = vadd.f32 0.0, %v481
      %v483 = vpop.f32.mrf.mxu0
      %484 = vdwg.mxu0
      %v485 = vrcp.pop %v462
      %v486 = vmul.f32 %v482, %v485
      %487 = vrot.lane.b32.xlu0 %v314, 104
      %v488 = vpop.permute.xlu0 %487
      %489 = vrot.lane.b32.xlu0 %v314, 72
      %v490 = vpop.permute.xlu0 %489
      %v492 = vsel %vm318, %v488, 0
      %v495 = vsel %vm318, %v490, 0
      %497 = vmatpush.bf16.xpose.msra.mxu0 0
      %498 = vmatpush.bf16.xpose.msra.mxu0 0
      %499 = vmatpush.bf16.xpose.msra.mxu0 0
      %500 = vmatpush.bf16.xpose.msra.mxu0 0
      %501 = vmatpush.bf16.xpose.msra.mxu0 0
      %502 = vmatpush.bf16.xpose.msra.mxu0 0
      %503 = vmatpush.bf16.xpose.msra.mxu0 0
      %504 = vmatpush.bf16.xpose.msra.mxu0 %v495
      %505 = vmatmul.bf16.gmra.mxu0 %v492
      %v506 = vpop.f32.mrf.mxu0
      %v507 = vadd.f32 0.0, %v506
      %v508 = vpop.f32.mrf.mxu0
      %509 = vdwg.mxu0
      %v510 = vmul.f32 %v507, 0.35355338
      %v511 = vsel %vm318, %v510, -inf
      %512 = vmax.xlane.f32.xlu0 %v511
      %v513 = vpop.xlane.xlu0 %512
      %v514 = vsub.f32 %v510, %v513
      %v515 = vmul.f32 %v514, 1.442695
      %v516 = vpow.pop %v515
      %v517 = vsel %vm318, %v516, 0.0
      %518 = vadd.xlane.f32.xlu0 %v517
      %v519 = vpop.xlane.xlu0 %518
      %v520 = vpack.c.bf16 %v516, %v516
      %521 = vrot.lane.b32.xlu0 %v314, 40
      %v522 = vpop.permute.xlu0 %521
      %v524 = vsel %vm318, %v520, 0
      %v527 = vsel %vm354, %v522, 0
      %529 = vmatpush.bf16.msra.mxu0 0
      %530 = vmatpush.bf16.msra.mxu0 0
      %531 = vmatpush.bf16.msra.mxu0 0
      %532 = vmatpush.bf16.msra.mxu0 0
      %533 = vmatpush.bf16.msra.mxu0 0
      %534 = vmatpush.bf16.msra.mxu0 0
      %535 = vmatpush.bf16.msra.mxu0 0
      %536 = vmatpush.bf16.msra.mxu0 %v527
      %537 = vmatmul.bf16.gmra.mxu0 %v524
      %v538 = vpop.f32.mrf.mxu0
      %v539 = vadd.f32 0.0, %v538
      %v540 = vpop.f32.mrf.mxu0
      %541 = vdwg.mxu0
      %v542 = vrcp.pop %v519
      %v543 = vmul.f32 %v539, %v542
      %545 = vrot.lane.b32.xlu0 %v429, 8
      %v546 = vpop.permute.xlu0 %545
      %549 = vrot.lane.b32.xlu0 %v486, 16
      %v550 = vpop.permute.xlu0 %549
      %553 = vrot.lane.b32.xlu0 %v543, 24
      %v554 = vpop.permute.xlu0 %553
      %v556 = vsel %vm318, %v372, %v546
      %vm557 = vcmask 130048
      %v558 = vsel %vm557, %v556, %v550
      %vm559 = vcmask 195584
      %v560 = vsel %vm559, %v558, %v554
      %v561 = vpack.c.bf16 %v560, %v560
      %v562 = vld [vmem:[%s3] sm:$0xf]
      %v563 = vld [vmem:[%s3 + $0x4] sm:$0xf]
      %v564 = vld [vmem:[%s3 + $0x8] sm:$0xf]
      %v565 = vld [vmem:[%s3 + $0xc] sm:$0xf]
      %v566 = vld [vmem:[%s4] sm:$0x1]
      %v568 = vperm.slane %v566, 0
      %v574 = vunpack.c.l.b16 %v562
      %v575 = vunpack.c.l.b16 %v563
      %v576 = vunpack.c.l.b16 %v564
      %v577 = vunpack.c.l.b16 %v565
      %v578 = vpack.c.b16 %v575, %v574
      %v579 = vpack.c.b16 %v577, %v576
      %v583 = vsel %vm297, %v561, 0
      %585 = vmatpush.bf16.msra.mxu0 0
      %586 = vmatpush.bf16.msra.mxu0 0
      %587 = vmatpush.bf16.msra.mxu0 0
      %588 = vmatpush.bf16.msra.mxu0 0
      %589 = vmatpush.bf16.msra.mxu0 0
      %590 = vmatpush.bf16.msra.mxu0 0
      %591 = vmatpush.bf16.msra.mxu0 %v579
      %592 = vmatpush.bf16.msra.mxu0 %v578
      %593 = vmatmul.bf16.gmra.mxu0 %v583
      %v594 = vpop.f32.mrf.mxu0
      %v595 = vadd.f32 %v568, %v594
      %v596 = vpop.f32.mrf.mxu0
      %597 = vdwg.mxu0
      %v598 = vadd.f32 %v275, %v595
      %v599 = vld [vmem:[%s5] sm:$0x1]
      %v600 = vld [vmem:[%s6] sm:$0x1]
      %v601 = vsel %vm297, %v598, 0.0
      %602 = vadd.xlane.f32.xlu0 %v601
      %v603 = vpop.xlane.xlu0 %602
      %v604 = vrcp.pop 32.0
      %v605 = vmul.f32 32.0, %v604
      %v606 = vsub.f32 1.0, %v605
      %v607 = vmul.f32 %v604, %v606
      %v608 = vadd.f32 %v604, %v607
      %vm609 = vweird.f32 %v604
      %v610 = vsel %vm609, %v604, %v608
      %v611 = vmul.f32 %v603, %v610
      %v612 = vsub.f32 %v598, %v611
      %v613 = vmul.f32 %v612, %v612
      %v614 = vsel %vm297, %v613, 0.0
      %615 = vadd.xlane.f32.xlu0 %v614
      %v616 = vpop.xlane.xlu0 %615
      %v617 = vmul.f32 %v616, %v610
      %v618 = vadd.f32 %v617, 1e-05
      %v619 = vrsqrt.pop %v618
      %v620 = vmul.f32 %v619, %v618
      %v621 = vmul.f32 %v620, %v619
      %v622 = vmul.f32 0.5, %v621
      %v623 = vsub.f32 1.5, %v622
      %v624 = vmul.f32 %v619, %v623
      %vm625 = vweird.f32 %v618
      %vm626 = vweird.f32 %v619
      %vm627 = vmor %vm625, %vm626
      %v628 = vsel %vm627, %v619, %v624
      %v629 = vmul.f32 %v612, %v628
      %v631 = vperm.slane %v599, 0
      %v633 = vmul.f32 %v629, %v631
      %v635 = vperm.slane %v600, 0
      %v637 = vadd.f32 %v633, %v635
      %638 = vst.msk [vmem:[%s273] sm:$0xff] %vm297, %v637
      %p639 = scmp.lt.s32.totalorder %s18, 1
      %s640 = scalar_select %p639, %s18, 1
      %s641 = smul.addr %s640, 8
      %s642 = scalar_lea.vmem %s7, %s641
      // Predicated region
      $region49: #{transformer_forward.18} parent=47 // pred_check
        %p643 = pneg %p188
      $region50: #{transformer_forward.18} parent=47 // pred_check_branch
        %645 = sbr.rel (%p643) target = $region52
      $region51: #{transformer_forward.18} parent=47 // pred_region
        _
      $region52: #{transformer_forward.18} parent=47 // pred_fallthru
        _
    $region48: #{transformer_forward.18} parent=5 // pred_fallthru
      _
    %p646 = scmp.le.s32.totalorder 2, %s13
    // Predicated region
    $region53: #{transformer_forward.18} parent=5 // pred_check
      %p647 = pneg %p646
    $region54: #{transformer_forward.18} parent=5 // pred_check_branch
      %649 = sbr.rel (%p647) target = $region56
    $region55: #{transformer_forward.18} parent=5 // pred_region
      %s650 = ssub.s32 %s13, 2
      // Predicated region
      $region57: #{transformer_forward.18} parent=55 // pred_check
        %p651 = pneg %p194
      $region58: #{transformer_forward.18} parent=55 // pred_check_branch
        %653 = sbr.rel (%p651) target = $region60
      $region59: #{transformer_forward.18} parent=55 // pred_region
        %p654 = scmp.lt.s32.totalorder %s19, 1
        %s655 = scalar_select %p654, %s19, 1
        %s656 = smul.addr %s655, 8
        %s657 = scalar_lea.vmem %s7, %s656
      $region60: #{transformer_forward.18} parent=55 // pred_fallthru
        _
    $region56: #{transformer_forward.18} parent=5 // pred_fallthru
      _
  $region6: #{transformer_forward.18} parent=0 // loop_footer
    %s17 = sadd.s32 1, %s13
  $region7: #{transformer_forward.18} parent=0 // loop_footer_branch
    %12 = sbr.rel target = $region3
  $region8: #{transformer_forward.18} parent=0 // loop_exit
    _

// kernel: transformer_forward.25
$region0: #{transformer_forward.25}
  #allocation0 [shape = 'u32[]', space=smem, size = 0x4, offset = 0x4, fixed_abs, tag = 'smem constant byte address 0x4 - core index']
  #allocation1 [shape = 'u32[72,128]{1,0:T(1,128)}', space=vmem, size = 0x9000, scoped, tag = 'internal scratch']
  %s0 = inlined_call_operand.vmem [shape: f32[2,8,32], index: 0, kind: input, shape index: {}]
  %s1 = inlined_call_operand.vmem [shape: bf16[32,96], index: 1, kind: input, shape index: {}]
  %s2 = inlined_call_operand.vmem [shape: f32[1,96], index: 2, kind: input, shape index: {}]
  %s3 = inlined_call_operand.vmem [shape: bf16[32,32], index: 3, kind: input, shape index: {}]
  %s4 = inlined_call_operand.vmem [shape: f32[1,32], index: 4, kind: input, shape index: {}]
  %s5 = inlined_call_operand.vmem [shape: f32[1,32], index: 5, kind: input, shape index: {}]
  %s6 = inlined_call_operand.vmem [shape: f32[1,32], index: 6, kind: input, shape index: {}]
  %s7 = inlined_call_operand.vmem [shape: f32[2,1,8], index: 7, kind: input, shape index: {}]
  %s8 = inlined_call_operand.vmem [shape: f32[2,8,32], index: 8, kind: output, shape index: {}]
  %s9 = sld [smem:[#allocation0]]
  $region65: #{transformer_forward.25} parent=0
    _
  %s11 = ssub.s32 1, %s9
  %s12 = scalar_select 0, %s11, %s9
  loop: start=0, step=1, limit=4
  $region2: #{transformer_forward.25} parent=0 // loop_pre_header
    _
  $region3: #{transformer_forward.25} parent=0 // loop_header
    %s14 = sphi 0, %s18
    %p15 = scmp.ge.s32.totalorder %s14, 4
    %s24 = sphi 0, %s26
    %s27 = sphi 0, %s24
    %s28 = sphi 0, %s27
    %s44 = sphi 0, %s28
    %s48 = sphi 0, %s48
    %s50 = sphi 0, %s48
    %s51 = sphi 0, %s50
    %s65 = sphi 0, %s51
    %s69 = sphi 0, %s69
    %s71 = sphi 0, %s69
    %s72 = sphi 0, %s71
    %s86 = sphi 0, %s72
    %s90 = sphi 0, %s90
    %s92 = sphi 0, %s90
    %s93 = sphi 0, %s92
    %s107 = sphi 0, %s93
    %s111 = sphi 0, %s111
    %s113 = sphi 0, %s111
    %s114 = sphi 0, %s113
    %s128 = sphi 0, %s114
    %s132 = sphi 0, %s132
    %s134 = sphi 0, %s132
    %s135 = sphi 0, %s134
    %s149 = sphi 0, %s135
    %s153 = sphi 0, %s153
    %s155 = sphi 0, %s153
    %s156 = sphi 0, %s155
    %s170 = sphi 0, %s156
    %s176 = sphi 0, %s178
    %s179 = sphi 0, %s176
    %s180 = sphi 0, %s179
    %s196 = sphi 0, %s180
    %s202 = sphi 0, %s204
    %s205 = sphi 0, %s202
    %s206 = sphi 0, %s205
    %s222 = sphi 0, %s206
  $region4: #{transformer_forward.25} parent=0 // loop_header_branch
    %17 = sbr.rel (%p15) target = $region8
  $region5: #{transformer_forward.25} parent=0 // loop_body
    %s19 = ssub.s32 %s14, 1
    %s20 = ssub.s32 %s14, 2
    %s21 = sadd.s32 %s14, 1
    %s22 = ssub.s32 %s14, %s21
    %p23 = scmp.eq.s32.totalorder %s22, 0
    %s25 = sadd.s32 %s24, 1
    %s26 = scalar_select %p23, %s24, %s25
    %p29 = pneg %p23
    %p30 = scmp.eq.s32.totalorder %s14, 1
    %p31 = por %p29, %p30
    %p32 = scmp.ne.s32.totalorder %s24, %s27
    %p33 = scmp.eq.s32.totalorder %s14, 0
    %p34 = por %p32, %p33
    %p35 = scmp.ne.s32.totalorder %s24, %s27
    %p36 = scmp.eq.s32.totalorder %s19, 1
    %p37 = por %p35, %p36
    %p38 = scmp.ne.s32.totalorder %s27, %s28
    %p39 = scmp.eq.s32.totalorder %s19, 0
    %p40 = por %p38, %p39
    %p41 = scmp.ne.s32.totalorder %s27, %s28
    %p42 = scmp.eq.s32.totalorder %s20, 1
    %p43 = por %p41, %p42
    %p45 = scmp.ne.s32.totalorder %s28, %s44
    %p46 = scmp.eq.s32.totalorder %s20, 0
    %p47 = por %p45, %p46
    %s49 = sadd.s32 %s48, 1
    %p52 = scmp.eq.s32.totalorder %s14, 1
    %p53 = scmp.ne.s32.totalorder %s48, %s50
    %p54 = scmp.eq.s32.totalorder %s14, 0
    %p55 = por %p53, %p54
    %p56 = scmp.ne.s32.totalorder %s48, %s50
    %p57 = scmp.eq.s32.totalorder %s19, 1
    %p58 = por %p56, %p57
    %p59 = scmp.ne.s32.totalorder %s50, %s51
    %p60 = scmp.eq.s32.totalorder %s19, 0
    %p61 = por %p59, %p60
    %p62 = scmp.ne.s32.totalorder %s50, %s51
    %p63 = scmp.eq.s32.totalorder %s20, 1
    %p64 = por %p62, %p63
    %p66 = scmp.ne.s32.totalorder %s51, %s65
    %p67 = scmp.eq.s32.totalorder %s20, 0
    %p68 = por %p66, %p67
    %s70 = sadd.s32 %s69, 1
    %p73 = scmp.eq.s32.totalorder %s14, 1
    %p74 = scmp.ne.s32.totalorder %s69, %s71
    %p75 = scmp.eq.s32.totalorder %s14, 0
    %p76 = por %p74, %p75
    %p77 = scmp.ne.s32.totalorder %s69, %s71
    %p78 = scmp.eq.s32.totalorder %s19, 1
    %p79 = por %p77, %p78
    %p80 = scmp.ne.s32.totalorder %s71, %s72
    %p81 = scmp.eq.s32.totalorder %s19, 0
    %p82 = por %p80, %p81
    %p83 = scmp.ne.s32.totalorder %s71, %s72
    %p84 = scmp.eq.s32.totalorder %s20, 1
    %p85 = por %p83, %p84
    %p87 = scmp.ne.s32.totalorder %s72, %s86
    %p88 = scmp.eq.s32.totalorder %s20, 0
    %p89 = por %p87, %p88
    %s91 = sadd.s32 %s90, 1
    %p94 = scmp.eq.s32.totalorder %s14, 1
    %p95 = scmp.ne.s32.totalorder %s90, %s92
    %p96 = scmp.eq.s32.totalorder %s14, 0
    %p97 = por %p95, %p96
    %p98 = scmp.ne.s32.totalorder %s90, %s92
    %p99 = scmp.eq.s32.totalorder %s19, 1
    %p100 = por %p98, %p99
    %p101 = scmp.ne.s32.totalorder %s92, %s93
    %p102 = scmp.eq.s32.totalorder %s19, 0
    %p103 = por %p101, %p102
    %p104 = scmp.ne.s32.totalorder %s92, %s93
    %p105 = scmp.eq.s32.totalorder %s20, 1
    %p106 = por %p104, %p105
    %p108 = scmp.ne.s32.totalorder %s93, %s107
    %p109 = scmp.eq.s32.totalorder %s20, 0
    %p110 = por %p108, %p109
    %s112 = sadd.s32 %s111, 1
    %p115 = scmp.eq.s32.totalorder %s14, 1
    %p116 = scmp.ne.s32.totalorder %s111, %s113
    %p117 = scmp.eq.s32.totalorder %s14, 0
    %p118 = por %p116, %p117
    %p119 = scmp.ne.s32.totalorder %s111, %s113
    %p120 = scmp.eq.s32.totalorder %s19, 1
    %p121 = por %p119, %p120
    %p122 = scmp.ne.s32.totalorder %s113, %s114
    %p123 = scmp.eq.s32.totalorder %s19, 0
    %p124 = por %p122, %p123
    %p125 = scmp.ne.s32.totalorder %s113, %s114
    %p126 = scmp.eq.s32.totalorder %s20, 1
    %p127 = por %p125, %p126
    %p129 = scmp.ne.s32.totalorder %s114, %s128
    %p130 = scmp.eq.s32.totalorder %s20, 0
    %p131 = por %p129, %p130
    %s133 = sadd.s32 %s132, 1
    %p136 = scmp.eq.s32.totalorder %s14, 1
    %p137 = scmp.ne.s32.totalorder %s132, %s134
    %p138 = scmp.eq.s32.totalorder %s14, 0
    %p139 = por %p137, %p138
    %p140 = scmp.ne.s32.totalorder %s132, %s134
    %p141 = scmp.eq.s32.totalorder %s19, 1
    %p142 = por %p140, %p141
    %p143 = scmp.ne.s32.totalorder %s134, %s135
    %p144 = scmp.eq.s32.totalorder %s19, 0
    %p145 = por %p143, %p144
    %p146 = scmp.ne.s32.totalorder %s134, %s135
    %p147 = scmp.eq.s32.totalorder %s20, 1
    %p148 = por %p146, %p147
    %p150 = scmp.ne.s32.totalorder %s135, %s149
    %p151 = scmp.eq.s32.totalorder %s20, 0
    %p152 = por %p150, %p151
    %s154 = sadd.s32 %s153, 1
    %p157 = scmp.eq.s32.totalorder %s14, 1
    %p158 = scmp.ne.s32.totalorder %s153, %s155
    %p159 = scmp.eq.s32.totalorder %s14, 0
    %p160 = por %p158, %p159
    %p161 = scmp.ne.s32.totalorder %s153, %s155
    %p162 = scmp.eq.s32.totalorder %s19, 1
    %p163 = por %p161, %p162
    %p164 = scmp.ne.s32.totalorder %s155, %s156
    %p165 = scmp.eq.s32.totalorder %s19, 0
    %p166 = por %p164, %p165
    %p167 = scmp.ne.s32.totalorder %s155, %s156
    %p168 = scmp.eq.s32.totalorder %s20, 1
    %p169 = por %p167, %p168
    %p171 = scmp.ne.s32.totalorder %s156, %s170
    %p172 = scmp.eq.s32.totalorder %s20, 0
    %p173 = por %p171, %p172
    %s174 = ssub.s32 %s14, %s21
    %p175 = scmp.eq.s32.totalorder %s174, 0
    %s177 = sadd.s32 %s176, 1
    %s178 = scalar_select %p175, %s176, %s177
    %p181 = pneg %p175
    %p182 = scmp.eq.s32.totalorder %s14, 1
    %p183 = por %p181, %p182
    %p184 = scmp.ne.s32.totalorder %s176, %s179
    %p185 = scmp.eq.s32.totalorder %s14, 0
    %p186 = por %p184, %p185
    %p187 = scmp.ne.s32.totalorder %s176, %s179
    %p188 = scmp.eq.s32.totalorder %s19, 1
    %p189 = por %p187, %p188
    %p190 = scmp.ne.s32.totalorder %s179, %s180
    %p191 = scmp.eq.s32.totalorder %s19, 0
    %p192 = por %p190, %p191
    %p193 = scmp.ne.s32.totalorder %s179, %s180
    %p194 = scmp.eq.s32.totalorder %s20, 1
    %p195 = por %p193, %p194
    %p197 = scmp.ne.s32.totalorder %s180, %s196
    %p198 = scmp.eq.s32.totalorder %s20, 0
    %p199 = por %p197, %p198
    %s200 = ssub.s32 %s14, %s21
    %p201 = scmp.eq.s32.totalorder %s200, 0
    %s203 = sadd.s32 %s202, 1
    %s204 = scalar_select %p201, %s202, %s203
    %p207 = pneg %p201
    %p208 = scmp.eq.s32.totalorder %s14, 1
    %p209 = por %p207, %p208
    %p210 = scmp.ne.s32.totalorder %s202, %s205
    %p211 = scmp.eq.s32.totalorder %s14, 0
    %p212 = por %p210, %p211
    %p213 = scmp.ne.s32.totalorder %s202, %s205
    %p214 = scmp.eq.s32.totalorder %s19, 1
    %p215 = por %p213, %p214
    %p216 = scmp.ne.s32.totalorder %s205, %s206
    %p217 = scmp.eq.s32.totalorder %s19, 0
    %p218 = por %p216, %p217
    %p219 = scmp.ne.s32.totalorder %s205, %s206
    %p220 = scmp.eq.s32.totalorder %s20, 1
    %p221 = por %p219, %p220
    %p223 = scmp.ne.s32.totalorder %s206, %s222
    %p224 = scmp.eq.s32.totalorder %s20, 0
    %p225 = por %p223, %p224
    %p226 = scmp.le.s32.totalorder 1, %s14
    %p227 = scmp.lt.s32.totalorder %s14, 3
    %p228 = pnand %p226, %p227
    %p229 = pneg %p228
    // Predicated region
    $region9: #{transformer_forward.25} parent=5 // pred_check
      _
    $region10: #{transformer_forward.25} parent=5 // pred_check_branch
      %231 = sbr.rel (%p228) target = $region12
    $region11: #{transformer_forward.25} parent=5 // pred_region
      %s232 = ssub.s32 %s14, 1
      // Predicated region
      $region13: #{transformer_forward.25} parent=11 // pred_check
        %p233 = pneg %p61
      $region14: #{transformer_forward.25} parent=11 // pred_check_branch
        %235 = sbr.rel (%p233) target = $region16
      $region15: #{transformer_forward.25} parent=11 // pred_region
        _
      $region16: #{transformer_forward.25} parent=11 // pred_fallthru
        _
      // Predicated region
      $region17: #{transformer_forward.25} parent=11 // pred_check
        %p236 = pneg %p82
      $region18: #{transformer_forward.25} parent=11 // pred_check_branch
        %238 = sbr.rel (%p236) target = $region20
      $region19: #{transformer_forward.25} parent=11 // pred_region
        _
      $region20: #{transformer_forward.25} parent=11 // pred_fallthru
        _
      // Predicated region
      $region21: #{transformer_forward.25} parent=11 // pred_check
        %p239 = pneg %p103
      $region22: #{transformer_forward.25} parent=11 // pred_check_branch
        %241 = sbr.rel (%p239) target = $region24
      $region23: #{transformer_forward.25} parent=11 // pred_region
        _
      $region24: #{transformer_forward.25} parent=11 // pred_fallthru
        _
      // Predicated region
      $region25: #{transformer_forward.25} parent=11 // pred_check
        %p242 = pneg %p124
      $region26: #{transformer_forward.25} parent=11 // pred_check_branch
        %244 = sbr.rel (%p242) target = $region28
      $region27: #{transformer_forward.25} parent=11 // pred_region
        _
      $region28: #{transformer_forward.25} parent=11 // pred_fallthru
        _
      // Predicated region
      $region29: #{transformer_forward.25} parent=11 // pred_check
        %p245 = pneg %p145
      $region30: #{transformer_forward.25} parent=11 // pred_check_branch
        %247 = sbr.rel (%p245) target = $region32
      $region31: #{transformer_forward.25} parent=11 // pred_region
        _
      $region32: #{transformer_forward.25} parent=11 // pred_fallthru
        _
      // Predicated region
      $region33: #{transformer_forward.25} parent=11 // pred_check
        %p248 = pneg %p166
      $region34: #{transformer_forward.25} parent=11 // pred_check_branch
        %250 = sbr.rel (%p248) target = $region36
      $region35: #{transformer_forward.25} parent=11 // pred_region
        _
      $region36: #{transformer_forward.25} parent=11 // pred_fallthru
        _
    $region12: #{transformer_forward.25} parent=5 // pred_fallthru
      _
    %p251 = scmp.lt.s32.totalorder %s14, 2
    // Predicated region
    $region37: #{transformer_forward.25} parent=5 // pred_check
      %p252 = pneg %p251
    $region38: #{transformer_forward.25} parent=5 // pred_check_branch
      %254 = sbr.rel (%p252) target = $region40
    $region39: #{transformer_forward.25} parent=5 // pred_region
      // Predicated region
      $region41: #{transformer_forward.25} parent=39 // pred_check
        %p255 = pneg %p34
      $region42: #{transformer_forward.25} parent=39 // pred_check_branch
        %257 = sbr.rel (%p255) target = $region44
      $region43: #{transformer_forward.25} parent=39 // pred_region
        %p258 = scmp.lt.s32.totalorder %s14, 1
        %s259 = scalar_select %p258, %s14, 1
        %s260 = smul.addr %s259, 8
        %s261 = scalar_lea.vmem %s0, %s260
      $region44: #{transformer_forward.25} parent=39 // pred_fallthru
        _
      // Predicated region
      $region45: #{transformer_forward.25} parent=39 // pred_check
        %p262 = pneg %p186
      $region46: #{transformer_forward.25} parent=39 // pred_check_branch
        %264 = sbr.rel (%p262) target = $region48
      $region47: #{transformer_forward.25} parent=39 // pred_region
        %p265 = scmp.lt.s32.totalorder %s14, 1
        %s266 = scalar_select %p265, %s14, 1
        %s267 = scalar_lea.vmem %s7, %s266
      $region48: #{transformer_forward.25} parent=39 // pred_fallthru
        _
    $region40: #{transformer_forward.25} parent=5 // pred_fallthru
      _
    %p268 = scmp.le.s32.totalorder 1, %s14
    %p269 = scmp.lt.s32.totalorder %s14, 3
    %p270 = pnand %p268, %p269
    %p271 = pneg %p270
    // Predicated region
    $region49: #{transformer_forward.25} parent=5 // pred_check
      _
    $region50: #{transformer_forward.25} parent=5 // pred_check_branch
      %273 = sbr.rel (%p270) target = $region52
    $region51: #{transformer_forward.25} parent=5 // pred_region
      %s274 = ssub.s32 %s14, 1
      %p275 = scmp.lt.s32.totalorder %s19, 1
      %s276 = scalar_select %p275, %s19, 1
      %s277 = smul.addr %s276, 8
      %s278 = scalar_lea.vmem %s0, %s277
      %p279 = pneg %p40
      %p280 = pneg %p37
      %p281 = pneg %p61
      %p282 = pneg %p58
      %p283 = pneg %p82
      %p284 = pneg %p79
      %p285 = pneg %p103
      %p286 = pneg %p100
      %p287 = pneg %p124
      %p288 = pneg %p121
      %p289 = pneg %p145
      %p290 = pneg %p142
      %p291 = pneg %p166
      %p292 = pneg %p163
      %p293 = scmp.lt.s32.totalorder %s19, 1
      %s294 = scalar_select %p293, %s19, 1
      %s295 = scalar_lea.vmem %s7, %s294
      %p296 = pneg %p192
      %p297 = pneg %p189
      %p298 = pneg %p218
      %p299 = pneg %p215
      %p300 = scmp.lt.s32.totalorder %s19, 1
      %s301 = scalar_select %p300, %s19, 1
      %s302 = smul.addr %s301, 8
      %s303 = scalar_lea.vmem %s8, %s302
      %p304 = scmp.lt.s32.totalorder %s19, 1
      %s305 = scalar_select %p304, %s19, 1
      %s306 = smul.addr %s305, 8
      %s307 = scalar_lea.vmem %s0, %s306
      %p308 = scmp.lt.s32.totalorder %s19, 1
      %s309 = scalar_select %p308, %s19, 1
      %s310 = scalar_lea.vmem %s7, %s309
      %p311 = scmp.lt.s32.totalorder %s19, 1
      %s312 = scalar_select %p311, %s19, 1
      %s313 = smul.addr %s312, 8
      %s314 = scalar_lea.vmem %s8, %s313
      %v316 = vld [vmem:[%s307] sm:$0xff]
      %v317 = vpack.c.bf16 %v316, %v316
      %v318 = vld [vmem:[%s1] sm:$0xf]
      %v319 = vld [vmem:[%s1 + $0x4] sm:$0xf]
      %v320 = vld [vmem:[%s1 + $0x8] sm:$0xf]
      %v321 = vld [vmem:[%s1 + $0xc] sm:$0xf]
      %v322 = vld [vmem:[%s2] sm:$0x1]
      %v324 = vperm.slane %v322, 0
      %v330 = vunpack.c.l.b16 %v318
      %v331 = vunpack.c.l.b16 %v319
      %v332 = vunpack.c.l.b16 %v320
      %v333 = vunpack.c.l.b16 %v321
      %v334 = vpack.c.b16 %v331, %v330
      %v335 = vpack.c.b16 %v333, %v332
      %vm338 = vcmask 261120
      %v340 = vsel %vm338, %v317, 0
      %342 = vmatpush.bf16.msra.mxu0 0
      %343 = vmatpush.bf16.msra.mxu0 0
      %344 = vmatpush.bf16.msra.mxu0 0
      %345 = vmatpush.bf16.msra.mxu0 0
      %346 = vmatpush.bf16.msra.mxu0 0
      %347 = vmatpush.bf16.msra.mxu0 0
      %348 = vmatpush.bf16.msra.mxu0 %v335
      %349 = vmatpush.bf16.msra.mxu0 %v334
      %350 = vmatmul.bf16.gmra.mxu0 %v340
      %v351 = vpop.f32.mrf.mxu0
      %v352 = vadd.f32 %v324, %v351
      %v353 = vpop.f32.mrf.mxu0
      %354 = vdwg.mxu0
      %v355 = vlaneseq
      %v356 = vshrl.u32 %v355, 7
      %v357 = vlaneseq
      %v358 = vand.u32 %v357, 127
      %vm359 = vcmp.ge.s32.totalorder %v356, %v358
      %v360 = vsel %vm359, 0.0, -inf
      %v361 = vld [vmem:[%s310] sm:$0x1]
      %v363 = vperm.slane %v361, 0
      %v365 = vadd.f32 %v360, %v363
      %v366 = vpack.c.bf16 %v352, %v352
      %368 = vrot.lane.b32.xlu0 %v366, 96
      %v369 = vpop.permute.xlu0 %368
      %vm370 = vcmask 64512
      %v372 = vsel %vm370, %v366, 0
      %v375 = vsel %vm370, %v369, 0
      %377 = vmatpush.bf16.xpose.msra.mxu0 0
      %378 = vmatpush.bf16.xpose.msra.mxu0 0
      %379 = vmatpush.bf16.xpose.msra.mxu0 0
      %380 = vmatpush.bf16.xpose.msra.mxu0 0
      %381 = vmatpush.bf16.xpose.msra.mxu0 0
      %382 = vmatpush.bf16.xpose.msra.mxu0 0
      %383 = vmatpush.bf16.xpose.msra.mxu0 0
      %384 = vmatpush.bf16.xpose.msra.mxu0 %v375
      %385 = vmatmul.bf16.gmra.mxu0 %v372
      %v386 = vpop.f32.mrf.mxu0
      %v387 = vadd.f32 0.0, %v386
      %v388 = vpop.f32.mrf.mxu0
      %389 = vdwg.mxu0
      %v390 = vmul.f32 %v387, 0.35355338
      %v391 = vadd.f32 %v390, %v365
      %v392 = vsel %vm370, %v391, -inf
      %393 = vmax.xlane.f32.xlu0 %v392
      %v394 = vpop.xlane.xlu0 %393
      %v395 = vsub.f32 %v391, %v394
      %v396 = vmul.f32 %v395, 1.442695
      %v397 = vpow.pop %v396
      %v398 = vsel %vm370, %v397, 0.0
      %399 = vadd.xlane.f32.xlu0 %v398
      %v400 = vpop.xlane.xlu0 %399
      %v401 = vpack.c.bf16 %v397, %v397
      %402 = vrot.lane.b32.xlu0 %v366, 64
      %v403 = vpop.permute.xlu0 %402
      %v405 = vsel %vm370, %v401, 0
      %vm407 = vcmask 1043456
      %v409 = vsel %vm407, %v403, 0
      %411 = vmatpush.bf16.msra.mxu0 0
      %412 = vmatpush.bf16.msra.mxu0 0
      %413 = vmatpush.bf16.msra.mxu0 0
      %414 = vmatpush.bf16.msra.mxu0 0
      %415 = vmatpush.bf16.msra.mxu0 0
      %416 = vmatpush.bf16.msra.mxu0 0
      %417 = vmatpush.bf16.msra.mxu0 0
      %418 = vmatpush.bf16.msra.mxu0 %v409
      %419 = vmatmul.bf16.gmra.mxu0 %v405
      %v420 = vpop.f32.mrf.mxu0
      %v421 = vadd.f32 0.0, %v420
      %v422 = vpop.f32.mrf.mxu0
      %423 = vdwg.mxu0
      %v424 = vrcp.pop %v400
      %v425 = vmul.f32 %v421, %v424
      %426 = vrot.lane.b32.xlu0 %v366, 120
      %v427 = vpop.permute.xlu0 %426
      %428 = vrot.lane.b32.xlu0 %v366, 88
      %v429 = vpop.permute.xlu0 %428
      %v431 = vsel %vm370, %v427, 0
      %v434 = vsel %vm370, %v429, 0
      %436 = vmatpush.bf16.xpose.msra.mxu0 0
      %437 = vmatpush.bf16.xpose.msra.mxu0 0
      %438 = vmatpush.bf16.xpose.msra.mxu0 0
      %439 = vmatpush.bf16.xpose.msra.mxu0 0
      %440 = vmatpush.bf16.xpose.msra.mxu0 0
      %441 = vmatpush.bf16.xpose.msra.mxu0 0
      %442 = vmatpush.bf16.xpose.msra.mxu0 0
      %443 = vmatpush.bf16.xpose.msra.mxu0 %v434
      %444 = vmatmul.bf16.gmra.mxu0 %v431
      %v445 = vpop.f32.mrf.mxu0
      %v446 = vadd.f32 0.0, %v445
      %v447 = vpop.f32.mrf.mxu0
      %448 = vdwg.mxu0
      %v449 = vmul.f32 %v446, 0.35355338
      %v450 = vadd.f32 %v449, %v365
      %v451 = vsel %vm370, %v450, -inf
      %452 = vmax.xlane.f32.xlu0 %v451
      %v453 = vpop.xlane.xlu0 %452
      %v454 = vsub.f32 %v450, %v453
      %v455 = vmul.f32 %v454, 1.442695
      %v456 = vpow.pop %v455
      %v457 = vsel %vm370, %v456, 0.0
      %458 = vadd.xlane.f32.xlu0 %v457
      %v459 = vpop.xlane.xlu0 %458
      %v460 = vpack.c.bf16 %v456, %v456
      %461 = vrot.lane.b32.xlu0 %v366, 56
      %v462 = vpop.permute.xlu0 %461
      %v464 = vsel %vm370, %v460, 0
      %v467 = vsel %vm407, %v462, 0
      %469 = vmatpush.bf16.msra.mxu0 0
      %470 = vmatpush.bf16.msra.mxu0 0
      %471 = vmatpush.bf16.msra.mxu0 0
      %472 = vmatpush.bf16.msra.mxu0 0
      %473 = vmatpush.bf16.msra.mxu0 0
      %474 = vmatpush.bf16.msra.mxu0 0
      %475 = vmatpush.bf16.msra.mxu0 0
      %476 = vmatpush.bf16.msra.mxu0 %v467
      %477 = vmatmul.bf16.gmra.mxu0 %v464
      %v478 = vpop.f32.mrf.mxu0
      %v479 = vadd.f32 0.0, %v478
      %v480 = vpop.f32.mrf.mxu0
      %481 = vdwg.mxu0
      %v482 = vrcp.pop %v459
      %v483 = vmul.f32 %v479, %v482
      %484 = vrot.lane.b32.xlu0 %v366, 112
      %v485 = vpop.permute.xlu0 %484
      %486 = vrot.lane.b32.xlu0 %v366, 80
      %v487 = vpop.permute.xlu0 %486
      %v489 = vsel %vm370, %v485, 0
      %v492 = vsel %vm370, %v487, 0
      %494 = vmatpush.bf16.xpose.msra.mxu0 0
      %495 = vmatpush.bf16.xpose.msra.mxu0 0
      %496 = vmatpush.bf16.xpose.msra.mxu0 0
      %497 = vmatpush.bf16.xpose.msra.mxu0 0
      %498 = vmatpush.bf16.xpose.msra.mxu0 0
      %499 = vmatpush.bf16.xpose.msra.mxu0 0
      %500 = vmatpush.bf16.xpose.msra.mxu0 0
      %501 = vmatpush.bf16.xpose.msra.mxu0 %v492
      %502 = vmatmul.bf16.gmra.mxu0 %v489
      %v503 = vpop.f32.mrf.mxu0
      %v504 = vadd.f32 0.0, %v503
      %v505 = vpop.f32.mrf.mxu0
      %506 = vdwg.mxu0
      %v507 = vmul.f32 %v504, 0.35355338
      %v508 = vadd.f32 %v507, %v365
      %v509 = vsel %vm370, %v508, -inf
      %510 = vmax.xlane.f32.xlu0 %v509
      %v511 = vpop.xlane.xlu0 %510
      %v512 = vsub.f32 %v508, %v511
      %v513 = vmul.f32 %v512, 1.442695
      %v514 = vpow.pop %v513
      %v515 = vsel %vm370, %v514, 0.0
      %516 = vadd.xlane.f32.xlu0 %v515
      %v517 = vpop.xlane.xlu0 %516
      %v518 = vpack.c.bf16 %v514, %v514
      %519 = vrot.lane.b32.xlu0 %v366, 48
      %v520 = vpop.permute.xlu0 %519
      %v522 = vsel %vm370, %v518, 0
      %v525 = vsel %vm407, %v520, 0
      %527 = vmatpush.bf16.msra.mxu0 0
      %528 = vmatpush.bf16.msra.mxu0 0
      %529 = vmatpush.bf16.msra.mxu0 0
      %530 = vmatpush.bf16.msra.mxu0 0
      %531 = vmatpush.bf16.msra.mxu0 0
      %532 = vmatpush.bf16.msra.mxu0 0
      %533 = vmatpush.bf16.msra.mxu0 0
      %534 = vmatpush.bf16.msra.mxu0 %v525
      %535 = vmatmul.bf16.gmra.mxu0 %v522
      %v536 = vpop.f32.mrf.mxu0
      %v537 = vadd.f32 0.0, %v536
      %v538 = vpop.f32.mrf.mxu0
      %539 = vdwg.mxu0
      %v540 = vrcp.pop %v517
      %v541 = vmul.f32 %v537, %v540
      %542 = vrot.lane.b32.xlu0 %v366, 104
      %v543 = vpop.permute.xlu0 %542
      %544 = vrot.lane.b32.xlu0 %v366, 72
      %v545 = vpop.permute.xlu0 %544
      %v547 = vsel %vm370, %v543, 0
      %v550 = vsel %vm370, %v545, 0
      %552 = vmatpush.bf16.xpose.msra.mxu0 0
      %553 = vmatpush.bf16.xpose.msra.mxu0 0
      %554 = vmatpush.bf16.xpose.msra.mxu0 0
      %555 = vmatpush.bf16.xpose.msra.mxu0 0
      %556 = vmatpush.bf16.xpose.msra.mxu0 0
      %557 = vmatpush.bf16.xpose.msra.mxu0 0
      %558 = vmatpush.bf16.xpose.msra.mxu0 0
      %559 = vmatpush.bf16.xpose.msra.mxu0 %v550
      %560 = vmatmul.bf16.gmra.mxu0 %v547
      %v561 = vpop.f32.mrf.mxu0
      %v562 = vadd.f32 0.0, %v561
      %v563 = vpop.f32.mrf.mxu0
      %564 = vdwg.mxu0
      %v565 = vmul.f32 %v562, 0.35355338
      %v566 = vadd.f32 %v565, %v365
      %v567 = vsel %vm370, %v566, -inf
      %568 = vmax.xlane.f32.xlu0 %v567
      %v569 = vpop.xlane.xlu0 %568
      %v570 = vsub.f32 %v566, %v569
      %v571 = vmul.f32 %v570, 1.442695
      %v572 = vpow.pop %v571
      %v573 = vsel %vm370, %v572, 0.0
      %574 = vadd.xlane.f32.xlu0 %v573
      %v575 = vpop.xlane.xlu0 %574
      %v576 = vpack.c.bf16 %v572, %v572
      %577 = vrot.lane.b32.xlu0 %v366, 40
      %v578 = vpop.permute.xlu0 %577
      %v580 = vsel %vm370, %v576, 0
      %v583 = vsel %vm407, %v578, 0
      %585 = vmatpush.bf16.msra.mxu0 0
      %586 = vmatpush.bf16.msra.mxu0 0
      %587 = vmatpush.bf16.msra.mxu0 0
      %588 = vmatpush.bf16.msra.mxu0 0
      %589 = vmatpush.bf16.msra.mxu0 0
      %590 = vmatpush.bf16.msra.mxu0 0
      %591 = vmatpush.bf16.msra.mxu0 0
      %592 = vmatpush.bf16.msra.mxu0 %v583
      %593 = vmatmul.bf16.gmra.mxu0 %v580
      %v594 = vpop.f32.mrf.mxu0
      %v595 = vadd.f32 0.0, %v594
      %v596 = vpop.f32.mrf.mxu0
      %597 = vdwg.mxu0
      %v598 = vrcp.pop %v575
      %v599 = vmul.f32 %v595, %v598
      %601 = vrot.lane.b32.xlu0 %v483, 8
      %v602 = vpop.permute.xlu0 %601
      %605 = vrot.lane.b32.xlu0 %v541, 16
      %v606 = vpop.permute.xlu0 %605
      %609 = vrot.lane.b32.xlu0 %v599, 24
      %v610 = vpop.permute.xlu0 %609
      %v612 = vsel %vm370, %v425, %v602
      %vm613 = vcmask 130048
      %v614 = vsel %vm613, %v612, %v606
      %vm615 = vcmask 195584
      %v616 = vsel %vm615, %v614, %v610
      %v617 = vpack.c.bf16 %v616, %v616
      %v618 = vld [vmem:[%s3] sm:$0xf]
      %v619 = vld [vmem:[%s3 + $0x4] sm:$0xf]
      %v620 = vld [vmem:[%s3 + $0x8] sm:$0xf]
      %v621 = vld [vmem:[%s3 + $0xc] sm:$0xf]
      %v622 = vld [vmem:[%s4] sm:$0x1]
      %v624 = vperm.slane %v622, 0
      %v630 = vunpack.c.l.b16 %v618
      %v631 = vunpack.c.l.b16 %v619
      %v632 = vunpack.c.l.b16 %v620
      %v633 = vunpack.c.l.b16 %v621
      %v634 = vpack.c.b16 %v631, %v630
      %v635 = vpack.c.b16 %v633, %v632
      %v639 = vsel %vm338, %v617, 0
      %641 = vmatpush.bf16.msra.mxu0 0
      %642 = vmatpush.bf16.msra.mxu0 0
      %643 = vmatpush.bf16.msra.mxu0 0
      %644 = vmatpush.bf16.msra.mxu0 0
      %645 = vmatpush.bf16.msra.mxu0 0
      %646 = vmatpush.bf16.msra.mxu0 0
      %647 = vmatpush.bf16.msra.mxu0 %v635
      %648 = vmatpush.bf16.msra.mxu0 %v634
      %649 = vmatmul.bf16.gmra.mxu0 %v639
      %v650 = vpop.f32.mrf.mxu0
      %v651 = vadd.f32 %v624, %v650
      %v652 = vpop.f32.mrf.mxu0
      %653 = vdwg.mxu0
      %v654 = vadd.f32 %v316, %v651
      %v655 = vld [vmem:[%s5] sm:$0x1]
      %v656 = vld [vmem:[%s6] sm:$0x1]
      %v657 = vsel %vm338, %v654, 0.0
      %658 = vadd.xlane.f32.xlu0 %v657
      %v659 = vpop.xlane.xlu0 %658
      %v660 = vrcp.pop 32.0
      %v661 = vmul.f32 32.0, %v660
      %v662 = vsub.f32 1.0, %v661
      %v663 = vmul.f32 %v660, %v662
      %v664 = vadd.f32 %v660, %v663
      %vm665 = vweird.f32 %v660
      %v666 = vsel %vm665, %v660, %v664
      %v667 = vmul.f32 %v659, %v666
      %v668 = vsub.f32 %v654, %v667
      %v669 = vmul.f32 %v668, %v668
      %v670 = vsel %vm338, %v669, 0.0
      %671 = vadd.xlane.f32.xlu0 %v670
      %v672 = vpop.xlane.xlu0 %671
      %v673 = vmul.f32 %v672, %v666
      %v674 = vadd.f32 %v673, 1e-05
      %v675 = vrsqrt.pop %v674
      %v676 = vmul.f32 %v675, %v674
      %v677 = vmul.f32 %v676, %v675
      %v678 = vmul.f32 0.5, %v677
      %v679 = vsub.f32 1.5, %v678
      %v680 = vmul.f32 %v675, %v679
      %vm681 = vweird.f32 %v674
      %vm682 = vweird.f32 %v675
      %vm683 = vmor %vm681, %vm682
      %v684 = vsel %vm683, %v675, %v680
      %v685 = vmul.f32 %v668, %v684
      %v687 = vperm.slane %v655, 0
      %v689 = vmul.f32 %v685, %v687
      %v691 = vperm.slane %v656, 0
      %v693 = vadd.f32 %v689, %v691
      %694 = vst.msk [vmem:[%s314] sm:$0xff] %vm338, %v693
      %p695 = scmp.lt.s32.totalorder %s19, 1
      %s696 = scalar_select %p695, %s19, 1
      %s697 = smul.addr %s696, 8
      %s698 = scalar_lea.vmem %s8, %s697
      // Predicated region
      $region53: #{transformer_forward.25} parent=51 // pred_check
        %p699 = pneg %p215
      $region54: #{transformer_forward.25} parent=51 // pred_check_branch
        %701 = sbr.rel (%p699) target = $region56
      $region55: #{transformer_forward.25} parent=51 // pred_region
        _
      $region56: #{transformer_forward.25} parent=51 // pred_fallthru
        _
    $region52: #{transformer_forward.25} parent=5 // pred_fallthru
      _
    %p702 = scmp.le.s32.totalorder 2, %s14
    // Predicated region
    $region57: #{transformer_forward.25} parent=5 // pred_check
      %p703 = pneg %p702
    $region58: #{transformer_forward.25} parent=5 // pred_check_branch
      %705 = sbr.rel (%p703) target = $region60
    $region59: #{transformer_forward.25} parent=5 // pred_region
      %s706 = ssub.s32 %s14, 2
      // Predicated region
      $region61: #{transformer_forward.25} parent=59 // pred_check
        %p707 = pneg %p221
      $region62: #{transformer_forward.25} parent=59 // pred_check_branch
        %709 = sbr.rel (%p707) target = $region64
      $region63: #{transformer_forward.25} parent=59 // pred_region
        %p710 = scmp.lt.s32.totalorder %s20, 1
        %s711 = scalar_select %p710, %s20, 1
        %s712 = smul.addr %s711, 8
        %s713 = scalar_lea.vmem %s8, %s712
      $region64: #{transformer_forward.25} parent=59 // pred_fallthru
        _
    $region60: #{transformer_forward.25} parent=5 // pred_fallthru
      _
  $region6: #{transformer_forward.25} parent=0 // loop_footer
    %s18 = sadd.s32 1, %s14
  $region7: #{transformer_forward.25} parent=0 // loop_footer_branch
    %13 = sbr.rel target = $region3
  $region8: #{transformer_forward.25} parent=0 // loop_exit
    _

// kernel: transformer_forward.19
$region0: #{transformer_forward.19}
  #allocation0 [shape = 'u32[]', space=smem, size = 0x4, offset = 0x4, fixed_abs, tag = 'smem constant byte address 0x4 - core index']
  #allocation1 [shape = 'u32[72,128]{1,0:T(1,128)}', space=vmem, size = 0x9000, scoped, tag = 'internal scratch']
  %s0 = inlined_call_operand.vmem [shape: f32[16,32], index: 0, kind: input, shape index: {}]
  %s1 = inlined_call_operand.vmem [shape: bf16[32,2048], index: 1, kind: input, shape index: {}]
  %s2 = inlined_call_operand.vmem [shape: f32[1,2048], index: 2, kind: input, shape index: {}]
  %s3 = inlined_call_operand.vmem [shape: bf16[2048,32], index: 3, kind: input, shape index: {}]
  %s4 = inlined_call_operand.vmem [shape: f32[1,32], index: 4, kind: input, shape index: {}]
  %s5 = inlined_call_operand.vmem [shape: f32[1,32], index: 5, kind: input, shape index: {}]
  %s6 = inlined_call_operand.vmem [shape: f32[1,32], index: 6, kind: input, shape index: {}]
  %s7 = inlined_call_operand.vmem [shape: f32[16,32], index: 7, kind: output, shape index: {}]
  %s8 = sld [smem:[#allocation0]]
  $region61: #{transformer_forward.19} parent=0
    _
  %s10 = ssub.s32 1, %s8
  %s11 = scalar_select 0, %s10, %s8
  loop: start=0, step=1, limit=4
  $region2: #{transformer_forward.19} parent=0 // loop_pre_header
    _
  $region3: #{transformer_forward.19} parent=0 // loop_header
    %s13 = sphi 0, %s17
    %p14 = scmp.ge.s32.totalorder %s13, 4
    %s23 = sphi 0, %s25
    %s26 = sphi 0, %s23
    %s27 = sphi 0, %s26
    %s43 = sphi 0, %s27
    %s47 = sphi 0, %s47
    %s49 = sphi 0, %s47
    %s50 = sphi 0, %s49
    %s64 = sphi 0, %s50
    %s68 = sphi 0, %s68
    %s70 = sphi 0, %s68
    %s71 = sphi 0, %s70
    %s85 = sphi 0, %s71
    %s89 = sphi 0, %s89
    %s91 = sphi 0, %s89
    %s92 = sphi 0, %s91
    %s106 = sphi 0, %s92
    %s110 = sphi 0, %s110
    %s112 = sphi 0, %s110
    %s113 = sphi 0, %s112
    %s127 = sphi 0, %s113
    %s131 = sphi 0, %s131
    %s133 = sphi 0, %s131
    %s134 = sphi 0, %s133
    %s148 = sphi 0, %s134
    %s152 = sphi 0, %s152
    %s154 = sphi 0, %s152
    %s155 = sphi 0, %s154
    %s169 = sphi 0, %s155
    %s175 = sphi 0, %s177
    %s178 = sphi 0, %s175
    %s179 = sphi 0, %s178
    %s195 = sphi 0, %s179
  $region4: #{transformer_forward.19} parent=0 // loop_header_branch
    %16 = sbr.rel (%p14) target = $region8
  $region5: #{transformer_forward.19} parent=0 // loop_body
    %s18 = ssub.s32 %s13, 1
    %s19 = ssub.s32 %s13, 2
    %s20 = sadd.s32 %s13, 1
    %s21 = ssub.s32 %s13, %s20
    %p22 = scmp.eq.s32.totalorder %s21, 0
    %s24 = sadd.s32 %s23, 1
    %s25 = scalar_select %p22, %s23, %s24
    %p28 = pneg %p22
    %p29 = scmp.eq.s32.totalorder %s13, 1
    %p30 = por %p28, %p29
    %p31 = scmp.ne.s32.totalorder %s23, %s26
    %p32 = scmp.eq.s32.totalorder %s13, 0
    %p33 = por %p31, %p32
    %p34 = scmp.ne.s32.totalorder %s23, %s26
    %p35 = scmp.eq.s32.totalorder %s18, 1
    %p36 = por %p34, %p35
    %p37 = scmp.ne.s32.totalorder %s26, %s27
    %p38 = scmp.eq.s32.totalorder %s18, 0
    %p39 = por %p37, %p38
    %p40 = scmp.ne.s32.totalorder %s26, %s27
    %p41 = scmp.eq.s32.totalorder %s19, 1
    %p42 = por %p40, %p41
    %p44 = scmp.ne.s32.totalorder %s27, %s43
    %p45 = scmp.eq.s32.totalorder %s19, 0
    %p46 = por %p44, %p45
    %s48 = sadd.s32 %s47, 1
    %p51 = scmp.eq.s32.totalorder %s13, 1
    %p52 = scmp.ne.s32.totalorder %s47, %s49
    %p53 = scmp.eq.s32.totalorder %s13, 0
    %p54 = por %p52, %p53
    %p55 = scmp.ne.s32.totalorder %s47, %s49
    %p56 = scmp.eq.s32.totalorder %s18, 1
    %p57 = por %p55, %p56
    %p58 = scmp.ne.s32.totalorder %s49, %s50
    %p59 = scmp.eq.s32.totalorder %s18, 0
    %p60 = por %p58, %p59
    %p61 = scmp.ne.s32.totalorder %s49, %s50
    %p62 = scmp.eq.s32.totalorder %s19, 1
    %p63 = por %p61, %p62
    %p65 = scmp.ne.s32.totalorder %s50, %s64
    %p66 = scmp.eq.s32.totalorder %s19, 0
    %p67 = por %p65, %p66
    %s69 = sadd.s32 %s68, 1
    %p72 = scmp.eq.s32.totalorder %s13, 1
    %p73 = scmp.ne.s32.totalorder %s68, %s70
    %p74 = scmp.eq.s32.totalorder %s13, 0
    %p75 = por %p73, %p74
    %p76 = scmp.ne.s32.totalorder %s68, %s70
    %p77 = scmp.eq.s32.totalorder %s18, 1
    %p78 = por %p76, %p77
    %p79 = scmp.ne.s32.totalorder %s70, %s71
    %p80 = scmp.eq.s32.totalorder %s18, 0
    %p81 = por %p79, %p80
    %p82 = scmp.ne.s32.totalorder %s70, %s71
    %p83 = scmp.eq.s32.totalorder %s19, 1
    %p84 = por %p82, %p83
    %p86 = scmp.ne.s32.totalorder %s71, %s85
    %p87 = scmp.eq.s32.totalorder %s19, 0
    %p88 = por %p86, %p87
    %s90 = sadd.s32 %s89, 1
    %p93 = scmp.eq.s32.totalorder %s13, 1
    %p94 = scmp.ne.s32.totalorder %s89, %s91
    %p95 = scmp.eq.s32.totalorder %s13, 0
    %p96 = por %p94, %p95
    %p97 = scmp.ne.s32.totalorder %s89, %s91
    %p98 = scmp.eq.s32.totalorder %s18, 1
    %p99 = por %p97, %p98
    %p100 = scmp.ne.s32.totalorder %s91, %s92
    %p101 = scmp.eq.s32.totalorder %s18, 0
    %p102 = por %p100, %p101
    %p103 = scmp.ne.s32.totalorder %s91, %s92
    %p104 = scmp.eq.s32.totalorder %s19, 1
    %p105 = por %p103, %p104
    %p107 = scmp.ne.s32.totalorder %s92, %s106
    %p108 = scmp.eq.s32.totalorder %s19, 0
    %p109 = por %p107, %p108
    %s111 = sadd.s32 %s110, 1
    %p114 = scmp.eq.s32.totalorder %s13, 1
    %p115 = scmp.ne.s32.totalorder %s110, %s112
    %p116 = scmp.eq.s32.totalorder %s13, 0
    %p117 = por %p115, %p116
    %p118 = scmp.ne.s32.totalorder %s110, %s112
    %p119 = scmp.eq.s32.totalorder %s18, 1
    %p120 = por %p118, %p119
    %p121 = scmp.ne.s32.totalorder %s112, %s113
    %p122 = scmp.eq.s32.totalorder %s18, 0
    %p123 = por %p121, %p122
    %p124 = scmp.ne.s32.totalorder %s112, %s113
    %p125 = scmp.eq.s32.totalorder %s19, 1
    %p126 = por %p124, %p125
    %p128 = scmp.ne.s32.totalorder %s113, %s127
    %p129 = scmp.eq.s32.totalorder %s19, 0
    %p130 = por %p128, %p129
    %s132 = sadd.s32 %s131, 1
    %p135 = scmp.eq.s32.totalorder %s13, 1
    %p136 = scmp.ne.s32.totalorder %s131, %s133
    %p137 = scmp.eq.s32.totalorder %s13, 0
    %p138 = por %p136, %p137
    %p139 = scmp.ne.s32.totalorder %s131, %s133
    %p140 = scmp.eq.s32.totalorder %s18, 1
    %p141 = por %p139, %p140
    %p142 = scmp.ne.s32.totalorder %s133, %s134
    %p143 = scmp.eq.s32.totalorder %s18, 0
    %p144 = por %p142, %p143
    %p145 = scmp.ne.s32.totalorder %s133, %s134
    %p146 = scmp.eq.s32.totalorder %s19, 1
    %p147 = por %p145, %p146
    %p149 = scmp.ne.s32.totalorder %s134, %s148
    %p150 = scmp.eq.s32.totalorder %s19, 0
    %p151 = por %p149, %p150
    %s153 = sadd.s32 %s152, 1
    %p156 = scmp.eq.s32.totalorder %s13, 1
    %p157 = scmp.ne.s32.totalorder %s152, %s154
    %p158 = scmp.eq.s32.totalorder %s13, 0
    %p159 = por %p157, %p158
    %p160 = scmp.ne.s32.totalorder %s152, %s154
    %p161 = scmp.eq.s32.totalorder %s18, 1
    %p162 = por %p160, %p161
    %p163 = scmp.ne.s32.totalorder %s154, %s155
    %p164 = scmp.eq.s32.totalorder %s18, 0
    %p165 = por %p163, %p164
    %p166 = scmp.ne.s32.totalorder %s154, %s155
    %p167 = scmp.eq.s32.totalorder %s19, 1
    %p168 = por %p166, %p167
    %p170 = scmp.ne.s32.totalorder %s155, %s169
    %p171 = scmp.eq.s32.totalorder %s19, 0
    %p172 = por %p170, %p171
    %s173 = ssub.s32 %s13, %s20
    %p174 = scmp.eq.s32.totalorder %s173, 0
    %s176 = sadd.s32 %s175, 1
    %s177 = scalar_select %p174, %s175, %s176
    %p180 = pneg %p174
    %p181 = scmp.eq.s32.totalorder %s13, 1
    %p182 = por %p180, %p181
    %p183 = scmp.ne.s32.totalorder %s175, %s178
    %p184 = scmp.eq.s32.totalorder %s13, 0
    %p185 = por %p183, %p184
    %p186 = scmp.ne.s32.totalorder %s175, %s178
    %p187 = scmp.eq.s32.totalorder %s18, 1
    %p188 = por %p186, %p187
    %p189 = scmp.ne.s32.totalorder %s178, %s179
    %p190 = scmp.eq.s32.totalorder %s18, 0
    %p191 = por %p189, %p190
    %p192 = scmp.ne.s32.totalorder %s178, %s179
    %p193 = scmp.eq.s32.totalorder %s19, 1
    %p194 = por %p192, %p193
    %p196 = scmp.ne.s32.totalorder %s179, %s195
    %p197 = scmp.eq.s32.totalorder %s19, 0
    %p198 = por %p196, %p197
    %p199 = scmp.le.s32.totalorder 1, %s13
    %p200 = scmp.lt.s32.totalorder %s13, 3
    %p201 = pnand %p199, %p200
    %p202 = pneg %p201
    // Predicated region
    $region9: #{transformer_forward.19} parent=5 // pred_check
      _
    $region10: #{transformer_forward.19} parent=5 // pred_check_branch
      %204 = sbr.rel (%p201) target = $region12
    $region11: #{transformer_forward.19} parent=5 // pred_region
      %s205 = ssub.s32 %s13, 1
      // Predicated region
      $region13: #{transformer_forward.19} parent=11 // pred_check
        %p206 = pneg %p60
      $region14: #{transformer_forward.19} parent=11 // pred_check_branch
        %208 = sbr.rel (%p206) target = $region16
      $region15: #{transformer_forward.19} parent=11 // pred_region
        _
      $region16: #{transformer_forward.19} parent=11 // pred_fallthru
        _
      // Predicated region
      $region17: #{transformer_forward.19} parent=11 // pred_check
        %p209 = pneg %p81
      $region18: #{transformer_forward.19} parent=11 // pred_check_branch
        %211 = sbr.rel (%p209) target = $region20
      $region19: #{transformer_forward.19} parent=11 // pred_region
        _
      $region20: #{transformer_forward.19} parent=11 // pred_fallthru
        _
      // Predicated region
      $region21: #{transformer_forward.19} parent=11 // pred_check
        %p212 = pneg %p102
      $region22: #{transformer_forward.19} parent=11 // pred_check_branch
        %214 = sbr.rel (%p212) target = $region24
      $region23: #{transformer_forward.19} parent=11 // pred_region
        _
      $region24: #{transformer_forward.19} parent=11 // pred_fallthru
        _
      // Predicated region
      $region25: #{transformer_forward.19} parent=11 // pred_check
        %p215 = pneg %p123
      $region26: #{transformer_forward.19} parent=11 // pred_check_branch
        %217 = sbr.rel (%p215) target = $region28
      $region27: #{transformer_forward.19} parent=11 // pred_region
        _
      $region28: #{transformer_forward.19} parent=11 // pred_fallthru
        _
      // Predicated region
      $region29: #{transformer_forward.19} parent=11 // pred_check
        %p218 = pneg %p144
      $region30: #{transformer_forward.19} parent=11 // pred_check_branch
        %220 = sbr.rel (%p218) target = $region32
      $region31: #{transformer_forward.19} parent=11 // pred_region
        _
      $region32: #{transformer_forward.19} parent=11 // pred_fallthru
        _
      // Predicated region
      $region33: #{transformer_forward.19} parent=11 // pred_check
        %p221 = pneg %p165
      $region34: #{transformer_forward.19} parent=11 // pred_check_branch
        %223 = sbr.rel (%p221) target = $region36
      $region35: #{transformer_forward.19} parent=11 // pred_region
        _
      $region36: #{transformer_forward.19} parent=11 // pred_fallthru
        _
    $region12: #{transformer_forward.19} parent=5 // pred_fallthru
      _
    %p224 = scmp.lt.s32.totalorder %s13, 2
    // Predicated region
    $region37: #{transformer_forward.19} parent=5 // pred_check
      %p225 = pneg %p224
    $region38: #{transformer_forward.19} parent=5 // pred_check_branch
      %227 = sbr.rel (%p225) target = $region40
    $region39: #{transformer_forward.19} parent=5 // pred_region
      // Predicated region
      $region41: #{transformer_forward.19} parent=39 // pred_check
        %p228 = pneg %p33
      $region42: #{transformer_forward.19} parent=39 // pred_check_branch
        %230 = sbr.rel (%p228) target = $region44
      $region43: #{transformer_forward.19} parent=39 // pred_region
        %p231 = scmp.lt.s32.totalorder %s13, 1
        %s232 = scalar_select %p231, %s13, 1
        %s233 = smul.addr %s232, 8
        %s234 = scalar_lea.vmem %s0, %s233
      $region44: #{transformer_forward.19} parent=39 // pred_fallthru
        _
    $region40: #{transformer_forward.19} parent=5 // pred_fallthru
      _
    %p235 = scmp.le.s32.totalorder 1, %s13
    %p236 = scmp.lt.s32.totalorder %s13, 3
    %p237 = pnand %p235, %p236
    %p238 = pneg %p237
    // Predicated region
    $region45: #{transformer_forward.19} parent=5 // pred_check
      _
    $region46: #{transformer_forward.19} parent=5 // pred_check_branch
      %240 = sbr.rel (%p237) target = $region48
    $region47: #{transformer_forward.19} parent=5 // pred_region
      %s241 = ssub.s32 %s13, 1
      %p242 = scmp.lt.s32.totalorder %s18, 1
      %s243 = scalar_select %p242, %s18, 1
      %s244 = smul.addr %s243, 8
      %s245 = scalar_lea.vmem %s0, %s244
      %p246 = pneg %p39
      %p247 = pneg %p36
      %p248 = pneg %p60
      %p249 = pneg %p57
      %p250 = pneg %p81
      %p251 = pneg %p78
      %p252 = pneg %p102
      %p253 = pneg %p99
      %p254 = pneg %p123
      %p255 = pneg %p120
      %p256 = pneg %p144
      %p257 = pneg %p141
      %p258 = pneg %p165
      %p259 = pneg %p162
      %p260 = pneg %p191
      %p261 = pneg %p188
      %p262 = scmp.lt.s32.totalorder %s18, 1
      %s263 = scalar_select %p262, %s18, 1
      %s264 = smul.addr %s263, 8
      %s265 = scalar_lea.vmem %s7, %s264
      %p266 = scmp.lt.s32.totalorder %s18, 1
      %s267 = scalar_select %p266, %s18, 1
      %s268 = smul.addr %s267, 8
      %s269 = scalar_lea.vmem %s0, %s268
      %p270 = scmp.lt.s32.totalorder %s18, 1
      %s271 = scalar_select %p270, %s18, 1
      %s272 = smul.addr %s271, 8
      %s273 = scalar_lea.vmem %s7, %s272
      %v275 = vld [vmem:[%s269] sm:$0xff]
      %v276 = vpack.c.bf16 %v275, %v275
      %v277 = vld [vmem:[%s1] sm:$0xff]
      %v278 = vld [vmem:[%s1 + $0x8] sm:$0xff]
      %v279 = vld [vmem:[%s1 + $0x10] sm:$0xff]
      %v280 = vld [vmem:[%s1 + $0x18] sm:$0xff]
      %v281 = vld [vmem:[%s1 + $0x20] sm:$0xff]
      %v282 = vld [vmem:[%s1 + $0x28] sm:$0xff]
      %v283 = vld [vmem:[%s1 + $0x30] sm:$0xff]
      %v284 = vld [vmem:[%s1 + $0x38] sm:$0xff]
      %v285 = vld [vmem:[%s1 + $0x40] sm:$0xff]
      %v286 = vld [vmem:[%s1 + $0x48] sm:$0xff]
      %v287 = vld [vmem:[%s1 + $0x50] sm:$0xff]
      %v288 = vld [vmem:[%s1 + $0x58] sm:$0xff]
      %v289 = vld [vmem:[%s1 + $0x60] sm:$0xff]
      %v290 = vld [vmem:[%s1 + $0x68] sm:$0xff]
      %v291 = vld [vmem:[%s1 + $0x70] sm:$0xff]
      %v292 = vld [vmem:[%s1 + $0x78] sm:$0xff]
      %v293 = vld [vmem:[%s1 + $0x80] sm:$0xff]
      %v294 = vld [vmem:[%s1 + $0x88] sm:$0xff]
      %v295 = vld [vmem:[%s1 + $0x90] sm:$0xff]
      %v296 = vld [vmem:[%s1 + $0x98] sm:$0xff]
      %v297 = vld [vmem:[%s1 + $0xa0] sm:$0xff]
      %v298 = vld [vmem:[%s1 + $0xa8] sm:$0xff]
      %v299 = vld [vmem:[%s1 + $0xb0] sm:$0xff]
      %v300 = vld [vmem:[%s1 + $0xb8] sm:$0xff]
      %v301 = vld [vmem:[%s1 + $0xc0] sm:$0xff]
      %v302 = vld [vmem:[%s1 + $0xc8] sm:$0xff]
      %v303 = vld [vmem:[%s1 + $0xd0] sm:$0xff]
      %v304 = vld [vmem:[%s1 + $0xd8] sm:$0xff]
      %v305 = vld [vmem:[%s1 + $0xe0] sm:$0xff]
      %v306 = vld [vmem:[%s1 + $0xe8] sm:$0xff]
      %v307 = vld [vmem:[%s1 + $0xf0] sm:$0xff]
      %v308 = vld [vmem:[%s1 + $0xf8] sm:$0xff]
      %v309 = vld [vmem:[%s2] sm:$0xff]
      %v310 = vld [vmem:[%s2 + $0x8] sm:$0xff]
      %v313 = vperm.slane %v309, 0
      %v314 = vperm.slane %v309, 1
      %v315 = vperm.slane %v309, 2
      %v316 = vperm.slane %v309, 3
      %v317 = vperm.slane %v309, 4
      %v318 = vperm.slane %v309, 5
      %v319 = vperm.slane %v309, 6
      %v320 = vperm.slane %v309, 7
      %v321 = vperm.slane %v310, 0
      %v322 = vperm.slane %v310, 1
      %v323 = vperm.slane %v310, 2
      %v324 = vperm.slane %v310, 3
      %v325 = vperm.slane %v310, 4
      %v326 = vperm.slane %v310, 5
      %v327 = vperm.slane %v310, 6
      %v328 = vperm.slane %v310, 7
      %v377 = vunpack.c.l.b16 %v277
      %v378 = vunpack.c.h.b16 %v277
      %v379 = vunpack.c.l.b16 %v278
      %v380 = vunpack.c.h.b16 %v278
      %v381 = vunpack.c.l.b16 %v279
      %v382 = vunpack.c.h.b16 %v279
      %v383 = vunpack.c.l.b16 %v280
      %v384 = vunpack.c.h.b16 %v280
      %v385 = vunpack.c.l.b16 %v281
      %v386 = vunpack.c.h.b16 %v281
      %v387 = vunpack.c.l.b16 %v282
      %v388 = vunpack.c.h.b16 %v282
      %v389 = vunpack.c.l.b16 %v283
      %v390 = vunpack.c.h.b16 %v283
      %v391 = vunpack.c.l.b16 %v284
      %v392 = vunpack.c.h.b16 %v284
      %v393 = vunpack.c.l.b16 %v285
      %v394 = vunpack.c.h.b16 %v285
      %v395 = vunpack.c.l.b16 %v286
      %v396 = vunpack.c.h.b16 %v286
      %v397 = vunpack.c.l.b16 %v287
      %v398 = vunpack.c.h.b16 %v287
      %v399 = vunpack.c.l.b16 %v288
      %v400 = vunpack.c.h.b16 %v288
      %v401 = vunpack.c.l.b16 %v289
      %v402 = vunpack.c.h.b16 %v289
      %v403 = vunpack.c.l.b16 %v290
      %v404 = vunpack.c.h.b16 %v290
      %v405 = vunpack.c.l.b16 %v291
      %v406 = vunpack.c.h.b16 %v291
      %v407 = vunpack.c.l.b16 %v292
      %v408 = vunpack.c.h.b16 %v292
      %v409 = vunpack.c.l.b16 %v293
      %v410 = vunpack.c.h.b16 %v293
      %v411 = vunpack.c.l.b16 %v294
      %v412 = vunpack.c.h.b16 %v294
      %v413 = vunpack.c.l.b16 %v295
      %v414 = vunpack.c.h.b16 %v295
      %v415 = vunpack.c.l.b16 %v296
      %v416 = vunpack.c.h.b16 %v296
      %v417 = vunpack.c.l.b16 %v297
      %v418 = vunpack.c.h.b16 %v297
      %v419 = vunpack.c.l.b16 %v298
      %v420 = vunpack.c.h.b16 %v298
      %v421 = vunpack.c.l.b16 %v299
      %v422 = vunpack.c.h.b16 %v299
      %v423 = vunpack.c.l.b16 %v300
      %v424 = vunpack.c.h.b16 %v300
      %v425 = vunpack.c.l.b16 %v301
      %v426 = vunpack.c.h.b16 %v301
      %v427 = vunpack.c.l.b16 %v302
      %v428 = vunpack.c.h.b16 %v302
      %v429 = vunpack.c.l.b16 %v303
      %v430 = vunpack.c.h.b16 %v303
      %v431 = vunpack.c.l.b16 %v304
      %v432 = vunpack.c.h.b16 %v304
      %v433 = vunpack.c.l.b16 %v305
      %v434 = vunpack.c.h.b16 %v305
      %v435 = vunpack.c.l.b16 %v306
      %v436 = vunpack.c.h.b16 %v306
      %v437 = vunpack.c.l.b16 %v307
      %v438 = vunpack.c.h.b16 %v307
      %v439 = vunpack.c.l.b16 %v308
      %v440 = vunpack.c.h.b16 %v308
      %v441 = vpack.c.b16 %v393, %v377
      %v442 = vpack.c.b16 %v394, %v378
      %v443 = vpack.c.b16 %v395, %v379
      %v444 = vpack.c.b16 %v396, %v380
      %v445 = vpack.c.b16 %v397, %v381
      %v446 = vpack.c.b16 %v398, %v382
      %v447 = vpack.c.b16 %v399, %v383
      %v448 = vpack.c.b16 %v400, %v384
      %v449 = vpack.c.b16 %v401, %v385
      %v450 = vpack.c.b16 %v402, %v386
      %v451 = vpack.c.b16 %v403, %v387
      %v452 = vpack.c.b16 %v404, %v388
      %v453 = vpack.c.b16 %v405, %v389
      %v454 = vpack.c.b16 %v406, %v390
      %v455 = vpack.c.b16 %v407, %v391
      %v456 = vpack.c.b16 %v408, %v392
      %v457 = vpack.c.b16 %v425, %v409
      %v458 = vpack.c.b16 %v426, %v410
      %v459 = vpack.c.b16 %v427, %v411
      %v460 = vpack.c.b16 %v428, %v412
      %v461 = vpack.c.b16 %v429, %v413
      %v462 = vpack.c.b16 %v430, %v414
      %v463 = vpack.c.b16 %v431, %v415
      %v464 = vpack.c.b16 %v432, %v416
      %v465 = vpack.c.b16 %v433, %v417
      %v466 = vpack.c.b16 %v434, %v418
      %v467 = vpack.c.b16 %v435, %v419
      %v468 = vpack.c.b16 %v436, %v420
      %v469 = vpack.c.b16 %v437, %v421
      %v470 = vpack.c.b16 %v438, %v422
      %v471 = vpack.c.b16 %v439, %v423
      %v472 = vpack.c.b16 %v440, %v424
      %vm505 = vcmask 261120
      %v507 = vsel %vm505, %v276, 0
      %509 = vmatpush.bf16.msra.mxu0 0
      %510 = vmatpush.bf16.msra.mxu0 0
      %511 = vmatpush.bf16.msra.mxu0 0
      %512 = vmatpush.bf16.msra.mxu0 0
      %513 = vmatpush.bf16.msra.mxu0 0
      %514 = vmatpush.bf16.msra.mxu0 0
      %515 = vmatpush.bf16.msra.mxu0 %v457
      %516 = vmatpush.bf16.msra.mxu0 %v441
      %517 = vmatmul.bf16.gmra.mxu0 %v507
      %v518 = vpop.f32.mrf.mxu0
      %v519 = vadd.f32 %v313, %v518
      %v520 = vpop.f32.mrf.mxu0
      %521 = vdwg.mxu0
      %522 = vmatpush.bf16.msra.mxu0 0
      %523 = vmatpush.bf16.msra.mxu0 0
      %524 = vmatpush.bf16.msra.mxu0 0
      %525 = vmatpush.bf16.msra.mxu0 0
      %526 = vmatpush.bf16.msra.mxu0 0
      %527 = vmatpush.bf16.msra.mxu0 0
      %528 = vmatpush.bf16.msra.mxu0 %v458
      %529 = vmatpush.bf16.msra.mxu0 %v442
      %530 = vmatmul.bf16.gmra.mxu0 %v507
      %v531 = vpop.f32.mrf.mxu0
      %v532 = vadd.f32 %v314, %v531
      %v533 = vpop.f32.mrf.mxu0
      %534 = vdwg.mxu0
      %535 = vmatpush.bf16.msra.mxu0 0
      %536 = vmatpush.bf16.msra.mxu0 0
      %537 = vmatpush.bf16.msra.mxu0 0
      %538 = vmatpush.bf16.msra.mxu0 0
      %539 = vmatpush.bf16.msra.mxu0 0
      %540 = vmatpush.bf16.msra.mxu0 0
      %541 = vmatpush.bf16.msra.mxu0 %v459
      %542 = vmatpush.bf16.msra.mxu0 %v443
      %543 = vmatmul.bf16.gmra.mxu0 %v507
      %v544 = vpop.f32.mrf.mxu0
      %v545 = vadd.f32 %v315, %v544
      %v546 = vpop.f32.mrf.mxu0
      %547 = vdwg.mxu0
      %548 = vmatpush.bf16.msra.mxu0 0
      %549 = vmatpush.bf16.msra.mxu0 0
      %550 = vmatpush.bf16.msra.mxu0 0
      %551 = vmatpush.bf16.msra.mxu0 0
      %552 = vmatpush.bf16.msra.mxu0 0
      %553 = vmatpush.bf16.msra.mxu0 0
      %554 = vmatpush.bf16.msra.mxu0 %v460
      %555 = vmatpush.bf16.msra.mxu0 %v444
      %556 = vmatmul.bf16.gmra.mxu0 %v507
      %v557 = vpop.f32.mrf.mxu0
      %v558 = vadd.f32 %v316, %v557
      %v559 = vpop.f32.mrf.mxu0
      %560 = vdwg.mxu0
      %561 = vmatpush.bf16.msra.mxu0 0
      %562 = vmatpush.bf16.msra.mxu0 0
      %563 = vmatpush.bf16.msra.mxu0 0
      %564 = vmatpush.bf16.msra.mxu0 0
      %565 = vmatpush.bf16.msra.mxu0 0
      %566 = vmatpush.bf16.msra.mxu0 0
      %567 = vmatpush.bf16.msra.mxu0 %v461
      %568 = vmatpush.bf16.msra.mxu0 %v445
      %569 = vmatmul.bf16.gmra.mxu0 %v507
      %v570 = vpop.f32.mrf.mxu0
      %v571 = vadd.f32 %v317, %v570
      %v572 = vpop.f32.mrf.mxu0
      %573 = vdwg.mxu0
      %574 = vmatpush.bf16.msra.mxu0 0
      %575 = vmatpush.bf16.msra.mxu0 0
      %576 = vmatpush.bf16.msra.mxu0 0
      %577 = vmatpush.bf16.msra.mxu0 0
      %578 = vmatpush.bf16.msra.mxu0 0
      %579 = vmatpush.bf16.msra.mxu0 0
      %580 = vmatpush.bf16.msra.mxu0 %v462
      %581 = vmatpush.bf16.msra.mxu0 %v446
      %582 = vmatmul.bf16.gmra.mxu0 %v507
      %v583 = vpop.f32.mrf.mxu0
      %v584 = vadd.f32 %v318, %v583
      %v585 = vpop.f32.mrf.mxu0
      %586 = vdwg.mxu0
      %587 = vmatpush.bf16.msra.mxu0 0
      %588 = vmatpush.bf16.msra.mxu0 0
      %589 = vmatpush.bf16.msra.mxu0 0
      %590 = vmatpush.bf16.msra.mxu0 0
      %591 = vmatpush.bf16.msra.mxu0 0
      %592 = vmatpush.bf16.msra.mxu0 0
      %593 = vmatpush.bf16.msra.mxu0 %v463
      %594 = vmatpush.bf16.msra.mxu0 %v447
      %595 = vmatmul.bf16.gmra.mxu0 %v507
      %v596 = vpop.f32.mrf.mxu0
      %v597 = vadd.f32 %v319, %v596
      %v598 = vpop.f32.mrf.mxu0
      %599 = vdwg.mxu0
      %600 = vmatpush.bf16.msra.mxu0 0
      %601 = vmatpush.bf16.msra.mxu0 0
      %602 = vmatpush.bf16.msra.mxu0 0
      %603 = vmatpush.bf16.msra.mxu0 0
      %604 = vmatpush.bf16.msra.mxu0 0
      %605 = vmatpush.bf16.msra.mxu0 0
      %606 = vmatpush.bf16.msra.mxu0 %v464
      %607 = vmatpush.bf16.msra.mxu0 %v448
      %608 = vmatmul.bf16.gmra.mxu0 %v507
      %v609 = vpop.f32.mrf.mxu0
      %v610 = vadd.f32 %v320, %v609
      %v611 = vpop.f32.mrf.mxu0
      %612 = vdwg.mxu0
      %613 = vmatpush.bf16.msra.mxu0 0
      %614 = vmatpush.bf16.msra.mxu0 0
      %615 = vmatpush.bf16.msra.mxu0 0
      %616 = vmatpush.bf16.msra.mxu0 0
      %617 = vmatpush.bf16.msra.mxu0 0
      %618 = vmatpush.bf16.msra.mxu0 0
      %619 = vmatpush.bf16.msra.mxu0 %v465
      %620 = vmatpush.bf16.msra.mxu0 %v449
      %621 = vmatmul.bf16.gmra.mxu0 %v507
      %v622 = vpop.f32.mrf.mxu0
      %v623 = vadd.f32 %v321, %v622
      %v624 = vpop.f32.mrf.mxu0
      %625 = vdwg.mxu0
      %626 = vmatpush.bf16.msra.mxu0 0
      %627 = vmatpush.bf16.msra.mxu0 0
      %628 = vmatpush.bf16.msra.mxu0 0
      %629 = vmatpush.bf16.msra.mxu0 0
      %630 = vmatpush.bf16.msra.mxu0 0
      %631 = vmatpush.bf16.msra.mxu0 0
      %632 = vmatpush.bf16.msra.mxu0 %v466
      %633 = vmatpush.bf16.msra.mxu0 %v450
      %634 = vmatmul.bf16.gmra.mxu0 %v507
      %v635 = vpop.f32.mrf.mxu0
      %v636 = vadd.f32 %v322, %v635
      %v637 = vpop.f32.mrf.mxu0
      %638 = vdwg.mxu0
      %639 = vmatpush.bf16.msra.mxu0 0
      %640 = vmatpush.bf16.msra.mxu0 0
      %641 = vmatpush.bf16.msra.mxu0 0
      %642 = vmatpush.bf16.msra.mxu0 0
      %643 = vmatpush.bf16.msra.mxu0 0
      %644 = vmatpush.bf16.msra.mxu0 0
      %645 = vmatpush.bf16.msra.mxu0 %v467
      %646 = vmatpush.bf16.msra.mxu0 %v451
      %647 = vmatmul.bf16.gmra.mxu0 %v507
      %v648 = vpop.f32.mrf.mxu0
      %v649 = vadd.f32 %v323, %v648
      %v650 = vpop.f32.mrf.mxu0
      %651 = vdwg.mxu0
      %652 = vmatpush.bf16.msra.mxu0 0
      %653 = vmatpush.bf16.msra.mxu0 0
      %654 = vmatpush.bf16.msra.mxu0 0
      %655 = vmatpush.bf16.msra.mxu0 0
      %656 = vmatpush.bf16.msra.mxu0 0
      %657 = vmatpush.bf16.msra.mxu0 0
      %658 = vmatpush.bf16.msra.mxu0 %v468
      %659 = vmatpush.bf16.msra.mxu0 %v452
      %660 = vmatmul.bf16.gmra.mxu0 %v507
      %v661 = vpop.f32.mrf.mxu0
      %v662 = vadd.f32 %v324, %v661
      %v663 = vpop.f32.mrf.mxu0
      %664 = vdwg.mxu0
      %665 = vmatpush.bf16.msra.mxu0 0
      %666 = vmatpush.bf16.msra.mxu0 0
      %667 = vmatpush.bf16.msra.mxu0 0
      %668 = vmatpush.bf16.msra.mxu0 0
      %669 = vmatpush.bf16.msra.mxu0 0
      %670 = vmatpush.bf16.msra.mxu0 0
      %671 = vmatpush.bf16.msra.mxu0 %v469
      %672 = vmatpush.bf16.msra.mxu0 %v453
      %673 = vmatmul.bf16.gmra.mxu0 %v507
      %v674 = vpop.f32.mrf.mxu0
      %v675 = vadd.f32 %v325, %v674
      %v676 = vpop.f32.mrf.mxu0
      %677 = vdwg.mxu0
      %678 = vmatpush.bf16.msra.mxu0 0
      %679 = vmatpush.bf16.msra.mxu0 0
      %680 = vmatpush.bf16.msra.mxu0 0
      %681 = vmatpush.bf16.msra.mxu0 0
      %682 = vmatpush.bf16.msra.mxu0 0
      %683 = vmatpush.bf16.msra.mxu0 0
      %684 = vmatpush.bf16.msra.mxu0 %v470
      %685 = vmatpush.bf16.msra.mxu0 %v454
      %686 = vmatmul.bf16.gmra.mxu0 %v507
      %v687 = vpop.f32.mrf.mxu0
      %v688 = vadd.f32 %v326, %v687
      %v689 = vpop.f32.mrf.mxu0
      %690 = vdwg.mxu0
      %691 = vmatpush.bf16.msra.mxu0 0
      %692 = vmatpush.bf16.msra.mxu0 0
      %693 = vmatpush.bf16.msra.mxu0 0
      %694 = vmatpush.bf16.msra.mxu0 0
      %695 = vmatpush.bf16.msra.mxu0 0
      %696 = vmatpush.bf16.msra.mxu0 0
      %697 = vmatpush.bf16.msra.mxu0 %v471
      %698 = vmatpush.bf16.msra.mxu0 %v455
      %699 = vmatmul.bf16.gmra.mxu0 %v507
      %v700 = vpop.f32.mrf.mxu0
      %v701 = vadd.f32 %v327, %v700
      %v702 = vpop.f32.mrf.mxu0
      %703 = vdwg.mxu0
      %704 = vmatpush.bf16.msra.mxu0 0
      %705 = vmatpush.bf16.msra.mxu0 0
      %706 = vmatpush.bf16.msra.mxu0 0
      %707 = vmatpush.bf16.msra.mxu0 0
      %708 = vmatpush.bf16.msra.mxu0 0
      %709 = vmatpush.bf16.msra.mxu0 0
      %710 = vmatpush.bf16.msra.mxu0 %v472
      %711 = vmatpush.bf16.msra.mxu0 %v456
      %712 = vmatmul.bf16.gmra.mxu0 %v507
      %v713 = vpop.f32.mrf.mxu0
      %v714 = vadd.f32 %v328, %v713
      %v715 = vpop.f32.mrf.mxu0
      %716 = vdwg.mxu0
      %v717 = vmax.f32 %v519, 0.0
      %v718 = vmax.f32 %v532, 0.0
      %v719 = vmax.f32 %v545, 0.0
      %v720 = vmax.f32 %v558, 0.0
      %v721 = vmax.f32 %v571, 0.0
      %v722 = vmax.f32 %v584, 0.0
      %v723 = vmax.f32 %v597, 0.0
      %v724 = vmax.f32 %v610, 0.0
      %v725 = vmax.f32 %v623, 0.0
      %v726 = vmax.f32 %v636, 0.0
      %v727 = vmax.f32 %v649, 0.0
      %v728 = vmax.f32 %v662, 0.0
      %v729 = vmax.f32 %v675, 0.0
      %v730 = vmax.f32 %v688, 0.0
      %v731 = vmax.f32 %v701, 0.0
      %v732 = vmax.f32 %v714, 0.0
      %v733 = vpack.c.bf16 %v717, %v717
      %v734 = vpack.c.bf16 %v718, %v718
      %v735 = vpack.c.bf16 %v719, %v719
      %v736 = vpack.c.bf16 %v720, %v720
      %v737 = vpack.c.bf16 %v721, %v721
      %v738 = vpack.c.bf16 %v722, %v722
      %v739 = vpack.c.bf16 %v723, %v723
      %v740 = vpack.c.bf16 %v724, %v724
      %v741 = vpack.c.bf16 %v725, %v725
      %v742 = vpack.c.bf16 %v726, %v726
      %v743 = vpack.c.bf16 %v727, %v727
      %v744 = vpack.c.bf16 %v728, %v728
      %v745 = vpack.c.bf16 %v729, %v729
      %v746 = vpack.c.bf16 %v730, %v730
      %v747 = vpack.c.bf16 %v731, %v731
      %v748 = vpack.c.bf16 %v732, %v732
      %v749 = vld [vmem:[%s3] sm:$0xf]
      %v750 = vld [vmem:[%s3 + $0x4] sm:$0xf]
      %v751 = vld [vmem:[%s3 + $0x8] sm:$0xf]
      %v752 = vld [vmem:[%s3 + $0xc] sm:$0xf]
      %v753 = vld [vmem:[%s3 + $0x10] sm:$0xf]
      %v754 = vld [vmem:[%s3 + $0x14] sm:$0xf]
      %v755 = vld [vmem:[%s3 + $0x18] sm:$0xf]
      %v756 = vld [vmem:[%s3 + $0x1c] sm:$0xf]
      %v757 = vld [vmem:[%s3 + $0x20] sm:$0xf]
      %v758 = vld [vmem:[%s3 + $0x24] sm:$0xf]
      %v759 = vld [vmem:[%s3 + $0x28] sm:$0xf]
      %v760 = vld [vmem:[%s3 + $0x2c] sm:$0xf]
      %v761 = vld [vmem:[%s3 + $0x30] sm:$0xf]
      %v762 = vld [vmem:[%s3 + $0x34] sm:$0xf]
      %v763 = vld [vmem:[%s3 + $0x38] sm:$0xf]
      %v764 = vld [vmem:[%s3 + $0x3c] sm:$0xf]
      %v765 = vld [vmem:[%s3 + $0x40] sm:$0xf]
      %v766 = vld [vmem:[%s3 + $0x44] sm:$0xf]
      %v767 = vld [vmem:[%s3 + $0x48] sm:$0xf]
      %v768 = vld [vmem:[%s3 + $0x4c] sm:$0xf]
      %v769 = vld [vmem:[%s3 + $0x50] sm:$0xf]
      %v770 = vld [vmem:[%s3 + $0x54] sm:$0xf]
      %v771 = vld [vmem:[%s3 + $0x58] sm:$0xf]
      %v772 = vld [vmem:[%s3 + $0x5c] sm:$0xf]
      %v773 = vld [vmem:[%s3 + $0x60] sm:$0xf]
      %v774 = vld [vmem:[%s3 + $0x64] sm:$0xf]
      %v775 = vld [vmem:[%s3 + $0x68] sm:$0xf]
      %v776 = vld [vmem:[%s3 + $0x6c] sm:$0xf]
      %v777 = vld [vmem:[%s3 + $0x70] sm:$0xf]
      %v778 = vld [vmem:[%s3 + $0x74] sm:$0xf]
      %v779 = vld [vmem:[%s3 + $0x78] sm:$0xf]
      %v780 = vld [vmem:[%s3 + $0x7c] sm:$0xf]
      %v781 = vld [vmem:[%s3 + $0x80] sm:$0xf]
      %v782 = vld [vmem:[%s3 + $0x84] sm:$0xf]
      %v783 = vld [vmem:[%s3 + $0x88] sm:$0xf]
      %v784 = vld [vmem:[%s3 + $0x8c] sm:$0xf]
      %v785 = vld [vmem:[%s3 + $0x90] sm:$0xf]
      %v786 = vld [vmem:[%s3 + $0x94] sm:$0xf]
      %v787 = vld [vmem:[%s3 + $0x98] sm:$0xf]
      %v788 = vld [vmem:[%s3 + $0x9c] sm:$0xf]
      %v789 = vld [vmem:[%s3 + $0xa0] sm:$0xf]
      %v790 = vld [vmem:[%s3 + $0xa4] sm:$0xf]
      %v791 = vld [vmem:[%s3 + $0xa8] sm:$0xf]
      %v792 = vld [vmem:[%s3 + $0xac] sm:$0xf]
      %v793 = vld [vmem:[%s3 + $0xb0] sm:$0xf]
      %v794 = vld [vmem:[%s3 + $0xb4] sm:$0xf]
      %v795 = vld [vmem:[%s3 + $0xb8] sm:$0xf]
      %v796 = vld [vmem:[%s3 + $0xbc] sm:$0xf]
      %v797 = vld [vmem:[%s3 + $0xc0] sm:$0xf]
      %v798 = vld [vmem:[%s3 + $0xc4] sm:$0xf]
      %v799 = vld [vmem:[%s3 + $0xc8] sm:$0xf]
      %v800 = vld [vmem:[%s3 + $0xcc] sm:$0xf]
      %v801 = vld [vmem:[%s3 + $0xd0] sm:$0xf]
      %v802 = vld [vmem:[%s3 + $0xd4] sm:$0xf]
      %v803 = vld [vmem:[%s3 + $0xd8] sm:$0xf]
      %v804 = vld [vmem:[%s3 + $0xdc] sm:$0xf]
      %v805 = vld [vmem:[%s3 + $0xe0] sm:$0xf]
      %v806 = vld [vmem:[%s3 + $0xe4] sm:$0xf]
      %v807 = vld [vmem:[%s3 + $0xe8] sm:$0xf]
      %v808 = vld [vmem:[%s3 + $0xec] sm:$0xf]
      %v809 = vld [vmem:[%s3 + $0xf0] sm:$0xf]
      %v810 = vld [vmem:[%s3 + $0xf4] sm:$0xf]
      %v811 = vld [vmem:[%s3 + $0xf8] sm:$0xf]
      %v812 = vld [vmem:[%s3 + $0xfc] sm:$0xf]
      %v813 = vld [vmem:[%s3 + $0x100] sm:$0xf]
      %v814 = vld [vmem:[%s3 + $0x104] sm:$0xf]
      %v815 = vld [vmem:[%s3 + $0x108] sm:$0xf]
      %v816 = vld [vmem:[%s3 + $0x10c] sm:$0xf]
      %v817 = vld [vmem:[%s3 + $0x110] sm:$0xf]
      %v818 = vld [vmem:[%s3 + $0x114] sm:$0xf]
      %v819 = vld [vmem:[%s3 + $0x118] sm:$0xf]
      %v820 = vld [vmem:[%s3 + $0x11c] sm:$0xf]
      %v821 = vld [vmem:[%s3 + $0x120] sm:$0xf]
      %v822 = vld [vmem:[%s3 + $0x124] sm:$0xf]
      %v823 = vld [vmem:[%s3 + $0x128] sm:$0xf]
      %v824 = vld [vmem:[%s3 + $0x12c] sm:$0xf]
      %v825 = vld [vmem:[%s3 + $0x130] sm:$0xf]
      %v826 = vld [vmem:[%s3 + $0x134] sm:$0xf]
      %v827 = vld [vmem:[%s3 + $0x138] sm:$0xf]
      %v828 = vld [vmem:[%s3 + $0x13c] sm:$0xf]
      %v829 = vld [vmem:[%s3 + $0x140] sm:$0xf]
      %v830 = vld [vmem:[%s3 + $0x144] sm:$0xf]
      %v831 = vld [vmem:[%s3 + $0x148] sm:$0xf]
      %v832 = vld [vmem:[%s3 + $0x14c] sm:$0xf]
      %v833 = vld [vmem:[%s3 + $0x150] sm:$0xf]
      %v834 = vld [vmem:[%s3 + $0x154] sm:$0xf]
      %v835 = vld [vmem:[%s3 + $0x158] sm:$0xf]
      %v836 = vld [vmem:[%s3 + $0x15c] sm:$0xf]
      %v837 = vld [vmem:[%s3 + $0x160] sm:$0xf]
      %v838 = vld [vmem:[%s3 + $0x164] sm:$0xf]
      %v839 = vld [vmem:[%s3 + $0x168] sm:$0xf]
      %v840 = vld [vmem:[%s3 + $0x16c] sm:$0xf]
      %v841 = vld [vmem:[%s3 + $0x170] sm:$0xf]
      %v842 = vld [vmem:[%s3 + $0x174] sm:$0xf]
      %v843 = vld [vmem:[%s3 + $0x178] sm:$0xf]
      %v844 = vld [vmem:[%s3 + $0x17c] sm:$0xf]
      %v845 = vld [vmem:[%s3 + $0x180] sm:$0xf]
      %v846 = vld [vmem:[%s3 + $0x184] sm:$0xf]
      %v847 = vld [vmem:[%s3 + $0x188] sm:$0xf]
      %v848 = vld [vmem:[%s3 + $0x18c] sm:$0xf]
      %v849 = vld [vmem:[%s3 + $0x190] sm:$0xf]
      %v850 = vld [vmem:[%s3 + $0x194] sm:$0xf]
      %v851 = vld [vmem:[%s3 + $0x198] sm:$0xf]
      %v852 = vld [vmem:[%s3 + $0x19c] sm:$0xf]
      %v853 = vld [vmem:[%s3 + $0x1a0] sm:$0xf]
      %v854 = vld [vmem:[%s3 + $0x1a4] sm:$0xf]
      %v855 = vld [vmem:[%s3 + $0x1a8] sm:$0xf]
      %v856 = vld [vmem:[%s3 + $0x1ac] sm:$0xf]
      %v857 = vld [vmem:[%s3 + $0x1b0] sm:$0xf]
      %v858 = vld [vmem:[%s3 + $0x1b4] sm:$0xf]
      %v859 = vld [vmem:[%s3 + $0x1b8] sm:$0xf]
      %v860 = vld [vmem:[%s3 + $0x1bc] sm:$0xf]
      %v861 = vld [vmem:[%s3 + $0x1c0] sm:$0xf]
      %v862 = vld [vmem:[%s3 + $0x1c4] sm:$0xf]
      %v863 = vld [vmem:[%s3 + $0x1c8] sm:$0xf]
      %v864 = vld [vmem:[%s3 + $0x1cc] sm:$0xf]
      %v865 = vld [vmem:[%s3 + $0x1d0] sm:$0xf]
      %v866 = vld [vmem:[%s3 + $0x1d4] sm:$0xf]
      %v867 = vld [vmem:[%s3 + $0x1d8] sm:$0xf]
      %v868 = vld [vmem:[%s3 + $0x1dc] sm:$0xf]
      %v869 = vld [vmem:[%s3 + $0x1e0] sm:$0xf]
      %v870 = vld [vmem:[%s3 + $0x1e4] sm:$0xf]
      %v871 = vld [vmem:[%s3 + $0x1e8] sm:$0xf]
      %v872 = vld [vmem:[%s3 + $0x1ec] sm:$0xf]
      %v873 = vld [vmem:[%s3 + $0x1f0] sm:$0xf]
      %v874 = vld [vmem:[%s3 + $0x1f4] sm:$0xf]
      %v875 = vld [vmem:[%s3 + $0x1f8] sm:$0xf]
      %v876 = vld [vmem:[%s3 + $0x1fc] sm:$0xf]
      %v877 = vld [vmem:[%s3 + $0x200] sm:$0xf]
      %v878 = vld [vmem:[%s3 + $0x204] sm:$0xf]
      %v879 = vld [vmem:[%s3 + $0x208] sm:$0xf]
      %v880 = vld [vmem:[%s3 + $0x20c] sm:$0xf]
      %v881 = vld [vmem:[%s3 + $0x210] sm:$0xf]
      %v882 = vld [vmem:[%s3 + $0x214] sm:$0xf]
      %v883 = vld [vmem:[%s3 + $0x218] sm:$0xf]
      %v884 = vld [vmem:[%s3 + $0x21c] sm:$0xf]
      %v885 = vld [vmem:[%s3 + $0x220] sm:$0xf]
      %v886 = vld [vmem:[%s3 + $0x224] sm:$0xf]
      %v887 = vld [vmem:[%s3 + $0x228] sm:$0xf]
      %v888 = vld [vmem:[%s3 + $0x22c] sm:$0xf]
      %v889 = vld [vmem:[%s3 + $0x230] sm:$0xf]
      %v890 = vld [vmem:[%s3 + $0x234] sm:$0xf]
      %v891 = vld [vmem:[%s3 + $0x238] sm:$0xf]
      %v892 = vld [vmem:[%s3 + $0x23c] sm:$0xf]
      %v893 = vld [vmem:[%s3 + $0x240] sm:$0xf]
      %v894 = vld [vmem:[%s3 + $0x244] sm:$0xf]
      %v895 = vld [vmem:[%s3 + $0x248] sm:$0xf]
      %v896 = vld [vmem:[%s3 + $0x24c] sm:$0xf]
      %v897 = vld [vmem:[%s3 + $0x250] sm:$0xf]
      %v898 = vld [vmem:[%s3 + $0x254] sm:$0xf]
      %v899 = vld [vmem:[%s3 + $0x258] sm:$0xf]
      %v900 = vld [vmem:[%s3 + $0x25c] sm:$0xf]
      %v901 = vld [vmem:[%s3 + $0x260] sm:$0xf]
      %v902 = vld [vmem:[%s3 + $0x264] sm:$0xf]
      %v903 = vld [vmem:[%s3 + $0x268] sm:$0xf]
      %v904 = vld [vmem:[%s3 + $0x26c] sm:$0xf]
      %v905 = vld [vmem:[%s3 + $0x270] sm:$0xf]
      %v906 = vld [vmem:[%s3 + $0x274] sm:$0xf]
      %v907 = vld [vmem:[%s3 + $0x278] sm:$0xf]
      %v908 = vld [vmem:[%s3 + $0x27c] sm:$0xf]
      %v909 = vld [vmem:[%s3 + $0x280] sm:$0xf]
      %v910 = vld [vmem:[%s3 + $0x284] sm:$0xf]
      %v911 = vld [vmem:[%s3 + $0x288] sm:$0xf]
      %v912 = vld [vmem:[%s3 + $0x28c] sm:$0xf]
      %v913 = vld [vmem:[%s3 + $0x290] sm:$0xf]
      %v914 = vld [vmem:[%s3 + $0x294] sm:$0xf]
      %v915 = vld [vmem:[%s3 + $0x298] sm:$0xf]
      %v916 = vld [vmem:[%s3 + $0x29c] sm:$0xf]
      %v917 = vld [vmem:[%s3 + $0x2a0] sm:$0xf]
      %v918 = vld [vmem:[%s3 + $0x2a4] sm:$0xf]
      %v919 = vld [vmem:[%s3 + $0x2a8] sm:$0xf]
      %v920 = vld [vmem:[%s3 + $0x2ac] sm:$0xf]
      %v921 = vld [vmem:[%s3 + $0x2b0] sm:$0xf]
      %v922 = vld [vmem:[%s3 + $0x2b4] sm:$0xf]
      %v923 = vld [vmem:[%s3 + $0x2b8] sm:$0xf]
      %v924 = vld [vmem:[%s3 + $0x2bc] sm:$0xf]
      %v925 = vld [vmem:[%s3 + $0x2c0] sm:$0xf]
      %v926 = vld [vmem:[%s3 + $0x2c4] sm:$0xf]
      %v927 = vld [vmem:[%s3 + $0x2c8] sm:$0xf]
      %v928 = vld [vmem:[%s3 + $0x2cc] sm:$0xf]
      %v929 = vld [vmem:[%s3 + $0x2d0] sm:$0xf]
      %v930 = vld [vmem:[%s3 + $0x2d4] sm:$0xf]
      %v931 = vld [vmem:[%s3 + $0x2d8] sm:$0xf]
      %v932 = vld [vmem:[%s3 + $0x2dc] sm:$0xf]
      %v933 = vld [vmem:[%s3 + $0x2e0] sm:$0xf]
      %v934 = vld [vmem:[%s3 + $0x2e4] sm:$0xf]
      %v935 = vld [vmem:[%s3 + $0x2e8] sm:$0xf]
      %v936 = vld [vmem:[%s3 + $0x2ec] sm:$0xf]
      %v937 = vld [vmem:[%s3 + $0x2f0] sm:$0xf]
      %v938 = vld [vmem:[%s3 + $0x2f4] sm:$0xf]
      %v939 = vld [vmem:[%s3 + $0x2f8] sm:$0xf]
      %v940 = vld [vmem:[%s3 + $0x2fc] sm:$0xf]
      %v941 = vld [vmem:[%s3 + $0x300] sm:$0xf]
      %v942 = vld [vmem:[%s3 + $0x304] sm:$0xf]
      %v943 = vld [vmem:[%s3 + $0x308] sm:$0xf]
      %v944 = vld [vmem:[%s3 + $0x30c] sm:$0xf]
      %v945 = vld [vmem:[%s3 + $0x310] sm:$0xf]
      %v946 = vld [vmem:[%s3 + $0x314] sm:$0xf]
      %v947 = vld [vmem:[%s3 + $0x318] sm:$0xf]
      %v948 = vld [vmem:[%s3 + $0x31c] sm:$0xf]
      %v949 = vld [vmem:[%s3 + $0x320] sm:$0xf]
      %v950 = vld [vmem:[%s3 + $0x324] sm:$0xf]
      %v951 = vld [vmem:[%s3 + $0x328] sm:$0xf]
      %v952 = vld [vmem:[%s3 + $0x32c] sm:$0xf]
      %v953 = vld [vmem:[%s3 + $0x330] sm:$0xf]
      %v954 = vld [vmem:[%s3 + $0x334] sm:$0xf]
      %v955 = vld [vmem:[%s3 + $0x338] sm:$0xf]
      %v956 = vld [vmem:[%s3 + $0x33c] sm:$0xf]
      %v957 = vld [vmem:[%s3 + $0x340] sm:$0xf]
      %v958 = vld [vmem:[%s3 + $0x344] sm:$0xf]
      %v959 = vld [vmem:[%s3 + $0x348] sm:$0xf]
      %v960 = vld [vmem:[%s3 + $0x34c] sm:$0xf]
      %v961 = vld [vmem:[%s3 + $0x350] sm:$0xf]
      %v962 = vld [vmem:[%s3 + $0x354] sm:$0xf]
      %v963 = vld [vmem:[%s3 + $0x358] sm:$0xf]
      %v964 = vld [vmem:[%s3 + $0x35c] sm:$0xf]
      %v965 = vld [vmem:[%s3 + $0x360] sm:$0xf]
      %v966 = vld [vmem:[%s3 + $0x364] sm:$0xf]
      %v967 = vld [vmem:[%s3 + $0x368] sm:$0xf]
      %v968 = vld [vmem:[%s3 + $0x36c] sm:$0xf]
      %v969 = vld [vmem:[%s3 + $0x370] sm:$0xf]
      %v970 = vld [vmem:[%s3 + $0x374] sm:$0xf]
      %v971 = vld [vmem:[%s3 + $0x378] sm:$0xf]
      %v972 = vld [vmem:[%s3 + $0x37c] sm:$0xf]
      %v973 = vld [vmem:[%s3 + $0x380] sm:$0xf]
      %v974 = vld [vmem:[%s3 + $0x384] sm:$0xf]
      %v975 = vld [vmem:[%s3 + $0x388] sm:$0xf]
      %v976 = vld [vmem:[%s3 + $0x38c] sm:$0xf]
      %v977 = vld [vmem:[%s3 + $0x390] sm:$0xf]
      %v978 = vld [vmem:[%s3 + $0x394] sm:$0xf]
      %v979 = vld [vmem:[%s3 + $0x398] sm:$0xf]
      %v980 = vld [vmem:[%s3 + $0x39c] sm:$0xf]
      %v981 = vld [vmem:[%s3 + $0x3a0] sm:$0xf]
      %v982 = vld [vmem:[%s3 + $0x3a4] sm:$0xf]
      %v983 = vld [vmem:[%s3 + $0x3a8] sm:$0xf]
      %v984 = vld [vmem:[%s3 + $0x3ac] sm:$0xf]
      %v985 = vld [vmem:[%s3 + $0x3b0] sm:$0xf]
      %v986 = vld [vmem:[%s3 + $0x3b4] sm:$0xf]
      %v987 = vld [vmem:[%s3 + $0x3b8] sm:$0xf]
      %v988 = vld [vmem:[%s3 + $0x3bc] sm:$0xf]
      %v989 = vld [vmem:[%s3 + $0x3c0] sm:$0xf]
      %v990 = vld [vmem:[%s3 + $0x3c4] sm:$0xf]
      %v991 = vld [vmem:[%s3 + $0x3c8] sm:$0xf]
      %v992 = vld [vmem:[%s3 + $0x3cc] sm:$0xf]
      %v993 = vld [vmem:[%s3 + $0x3d0] sm:$0xf]
      %v994 = vld [vmem:[%s3 + $0x3d4] sm:$0xf]
      %v995 = vld [vmem:[%s3 + $0x3d8] sm:$0xf]
      %v996 = vld [vmem:[%s3 + $0x3dc] sm:$0xf]
      %v997 = vld [vmem:[%s3 + $0x3e0] sm:$0xf]
      %v998 = vld [vmem:[%s3 + $0x3e4] sm:$0xf]
      %v999 = vld [vmem:[%s3 + $0x3e8] sm:$0xf]
      %v1000 = vld [vmem:[%s3 + $0x3ec] sm:$0xf]
      %v1001 = vld [vmem:[%s3 + $0x3f0] sm:$0xf]
      %v1002 = vld [vmem:[%s3 + $0x3f4] sm:$0xf]
      %v1003 = vld [vmem:[%s3 + $0x3f8] sm:$0xf]
      %v1004 = vld [vmem:[%s3 + $0x3fc] sm:$0xf]
      %v1005 = vld [vmem:[%s4] sm:$0x1]
      %v1007 = vperm.slane %v1005, 0
      %v1265 = vunpack.c.l.b16 %v749
      %v1266 = vunpack.c.l.b16 %v750
      %v1267 = vunpack.c.l.b16 %v751
      %v1268 = vunpack.c.l.b16 %v752
      %v1269 = vunpack.c.l.b16 %v753
      %v1270 = vunpack.c.l.b16 %v754
      %v1271 = vunpack.c.l.b16 %v755
      %v1272 = vunpack.c.l.b16 %v756
      %v1273 = vunpack.c.l.b16 %v757
      %v1274 = vunpack.c.l.b16 %v758
      %v1275 = vunpack.c.l.b16 %v759
      %v1276 = vunpack.c.l.b16 %v760
      %v1277 = vunpack.c.l.b16 %v761
      %v1278 = vunpack.c.l.b16 %v762
      %v1279 = vunpack.c.l.b16 %v763
      %v1280 = vunpack.c.l.b16 %v764
      %v1281 = vunpack.c.l.b16 %v765
      %v1282 = vunpack.c.l.b16 %v766
      %v1283 = vunpack.c.l.b16 %v767
      %v1284 = vunpack.c.l.b16 %v768
      %v1285 = vunpack.c.l.b16 %v769
      %v1286 = vunpack.c.l.b16 %v770
      %v1287 = vunpack.c.l.b16 %v771
      %v1288 = vunpack.c.l.b16 %v772
      %v1289 = vunpack.c.l.b16 %v773
      %v1290 = vunpack.c.l.b16 %v774
      %v1291 = vunpack.c.l.b16 %v775
      %v1292 = vunpack.c.l.b16 %v776
      %v1293 = vunpack.c.l.b16 %v777
      %v1294 = vunpack.c.l.b16 %v778
      %v1295 = vunpack.c.l.b16 %v779
      %v1296 = vunpack.c.l.b16 %v780
      %v1297 = vunpack.c.l.b16 %v781
      %v1298 = vunpack.c.l.b16 %v782
      %v1299 = vunpack.c.l.b16 %v783
      %v1300 = vunpack.c.l.b16 %v784
      %v1301 = vunpack.c.l.b16 %v785
      %v1302 = vunpack.c.l.b16 %v786
      %v1303 = vunpack.c.l.b16 %v787
      %v1304 = vunpack.c.l.b16 %v788
      %v1305 = vunpack.c.l.b16 %v789
      %v1306 = vunpack.c.l.b16 %v790
      %v1307 = vunpack.c.l.b16 %v791
      %v1308 = vunpack.c.l.b16 %v792
      %v1309 = vunpack.c.l.b16 %v793
      %v1310 = vunpack.c.l.b16 %v794
      %v1311 = vunpack.c.l.b16 %v795
      %v1312 = vunpack.c.l.b16 %v796
      %v1313 = vunpack.c.l.b16 %v797
      %v1314 = vunpack.c.l.b16 %v798
      %v1315 = vunpack.c.l.b16 %v799
      %v1316 = vunpack.c.l.b16 %v800
      %v1317 = vunpack.c.l.b16 %v801
      %v1318 = vunpack.c.l.b16 %v802
      %v1319 = vunpack.c.l.b16 %v803
      %v1320 = vunpack.c.l.b16 %v804
      %v1321 = vunpack.c.l.b16 %v805
      %v1322 = vunpack.c.l.b16 %v806
      %v1323 = vunpack.c.l.b16 %v807
      %v1324 = vunpack.c.l.b16 %v808
      %v1325 = vunpack.c.l.b16 %v809
      %v1326 = vunpack.c.l.b16 %v810
      %v1327 = vunpack.c.l.b16 %v811
      %v1328 = vunpack.c.l.b16 %v812
      %v1329 = vunpack.c.l.b16 %v813
      %v1330 = vunpack.c.l.b16 %v814
      %v1331 = vunpack.c.l.b16 %v815
      %v1332 = vunpack.c.l.b16 %v816
      %v1333 = vunpack.c.l.b16 %v817
      %v1334 = vunpack.c.l.b16 %v818
      %v1335 = vunpack.c.l.b16 %v819
      %v1336 = vunpack.c.l.b16 %v820
      %v1337 = vunpack.c.l.b16 %v821
      %v1338 = vunpack.c.l.b16 %v822
      %v1339 = vunpack.c.l.b16 %v823
      %v1340 = vunpack.c.l.b16 %v824
      %v1341 = vunpack.c.l.b16 %v825
      %v1342 = vunpack.c.l.b16 %v826
      %v1343 = vunpack.c.l.b16 %v827
      %v1344 = vunpack.c.l.b16 %v828
      %v1345 = vunpack.c.l.b16 %v829
      %v1346 = vunpack.c.l.b16 %v830
      %v1347 = vunpack.c.l.b16 %v831
      %v1348 = vunpack.c.l.b16 %v832
      %v1349 = vunpack.c.l.b16 %v833
      %v1350 = vunpack.c.l.b16 %v834
      %v1351 = vunpack.c.l.b16 %v835
      %v1352 = vunpack.c.l.b16 %v836
      %v1353 = vunpack.c.l.b16 %v837
      %v1354 = vunpack.c.l.b16 %v838
      %v1355 = vunpack.c.l.b16 %v839
      %v1356 = vunpack.c.l.b16 %v840
      %v1357 = vunpack.c.l.b16 %v841
      %v1358 = vunpack.c.l.b16 %v842
      %v1359 = vunpack.c.l.b16 %v843
      %v1360 = vunpack.c.l.b16 %v844
      %v1361 = vunpack.c.l.b16 %v845
      %v1362 = vunpack.c.l.b16 %v846
      %v1363 = vunpack.c.l.b16 %v847
      %v1364 = vunpack.c.l.b16 %v848
      %v1365 = vunpack.c.l.b16 %v849
      %v1366 = vunpack.c.l.b16 %v850
      %v1367 = vunpack.c.l.b16 %v851
      %v1368 = vunpack.c.l.b16 %v852
      %v1369 = vunpack.c.l.b16 %v853
      %v1370 = vunpack.c.l.b16 %v854
      %v1371 = vunpack.c.l.b16 %v855
      %v1372 = vunpack.c.l.b16 %v856
      %v1373 = vunpack.c.l.b16 %v857
      %v1374 = vunpack.c.l.b16 %v858
      %v1375 = vunpack.c.l.b16 %v859
      %v1376 = vunpack.c.l.b16 %v860
      %v1377 = vunpack.c.l.b16 %v861
      %v1378 = vunpack.c.l.b16 %v862
      %v1379 = vunpack.c.l.b16 %v863
      %v1380 = vunpack.c.l.b16 %v864
      %v1381 = vunpack.c.l.b16 %v865
      %v1382 = vunpack.c.l.b16 %v866
      %v1383 = vunpack.c.l.b16 %v867
      %v1384 = vunpack.c.l.b16 %v868
      %v1385 = vunpack.c.l.b16 %v869
      %v1386 = vunpack.c.l.b16 %v870
      %v1387 = vunpack.c.l.b16 %v871
      %v1388 = vunpack.c.l.b16 %v872
      %v1389 = vunpack.c.l.b16 %v873
      %v1390 = vunpack.c.l.b16 %v874
      %v1391 = vunpack.c.l.b16 %v875
      %v1392 = vunpack.c.l.b16 %v876
      %v1393 = vunpack.c.l.b16 %v877
      %v1394 = vunpack.c.l.b16 %v878
      %v1395 = vunpack.c.l.b16 %v879
      %v1396 = vunpack.c.l.b16 %v880
      %v1397 = vunpack.c.l.b16 %v881
      %v1398 = vunpack.c.l.b16 %v882
      %v1399 = vunpack.c.l.b16 %v883
      %v1400 = vunpack.c.l.b16 %v884
      %v1401 = vunpack.c.l.b16 %v885
      %v1402 = vunpack.c.l.b16 %v886
      %v1403 = vunpack.c.l.b16 %v887
      %v1404 = vunpack.c.l.b16 %v888
      %v1405 = vunpack.c.l.b16 %v889
      %v1406 = vunpack.c.l.b16 %v890
      %v1407 = vunpack.c.l.b16 %v891
      %v1408 = vunpack.c.l.b16 %v892
      %v1409 = vunpack.c.l.b16 %v893
      %v1410 = vunpack.c.l.b16 %v894
      %v1411 = vunpack.c.l.b16 %v895
      %v1412 = vunpack.c.l.b16 %v896
      %v1413 = vunpack.c.l.b16 %v897
      %v1414 = vunpack.c.l.b16 %v898
      %v1415 = vunpack.c.l.b16 %v899
      %v1416 = vunpack.c.l.b16 %v900
      %v1417 = vunpack.c.l.b16 %v901
      %v1418 = vunpack.c.l.b16 %v902
      %v1419 = vunpack.c.l.b16 %v903
      %v1420 = vunpack.c.l.b16 %v904
      %v1421 = vunpack.c.l.b16 %v905
      %v1422 = vunpack.c.l.b16 %v906
      %v1423 = vunpack.c.l.b16 %v907
      %v1424 = vunpack.c.l.b16 %v908
      %v1425 = vunpack.c.l.b16 %v909
      %v1426 = vunpack.c.l.b16 %v910
      %v1427 = vunpack.c.l.b16 %v911
      %v1428 = vunpack.c.l.b16 %v912
      %v1429 = vunpack.c.l.b16 %v913
      %v1430 = vunpack.c.l.b16 %v914
      %v1431 = vunpack.c.l.b16 %v915
      %v1432 = vunpack.c.l.b16 %v916
      %v1433 = vunpack.c.l.b16 %v917
      %v1434 = vunpack.c.l.b16 %v918
      %v1435 = vunpack.c.l.b16 %v919
      %v1436 = vunpack.c.l.b16 %v920
      %v1437 = vunpack.c.l.b16 %v921
      %v1438 = vunpack.c.l.b16 %v922
      %v1439 = vunpack.c.l.b16 %v923
      %v1440 = vunpack.c.l.b16 %v924
      %v1441 = vunpack.c.l.b16 %v925
      %v1442 = vunpack.c.l.b16 %v926
      %v1443 = vunpack.c.l.b16 %v927
      %v1444 = vunpack.c.l.b16 %v928
      %v1445 = vunpack.c.l.b16 %v929
      %v1446 = vunpack.c.l.b16 %v930
      %v1447 = vunpack.c.l.b16 %v931
      %v1448 = vunpack.c.l.b16 %v932
      %v1449 = vunpack.c.l.b16 %v933
      %v1450 = vunpack.c.l.b16 %v934
      %v1451 = vunpack.c.l.b16 %v935
      %v1452 = vunpack.c.l.b16 %v936
      %v1453 = vunpack.c.l.b16 %v937
      %v1454 = vunpack.c.l.b16 %v938
      %v1455 = vunpack.c.l.b16 %v939
      %v1456 = vunpack.c.l.b16 %v940
      %v1457 = vunpack.c.l.b16 %v941
      %v1458 = vunpack.c.l.b16 %v942
      %v1459 = vunpack.c.l.b16 %v943
      %v1460 = vunpack.c.l.b16 %v944
      %v1461 = vunpack.c.l.b16 %v945
      %v1462 = vunpack.c.l.b16 %v946
      %v1463 = vunpack.c.l.b16 %v947
      %v1464 = vunpack.c.l.b16 %v948
      %v1465 = vunpack.c.l.b16 %v949
      %v1466 = vunpack.c.l.b16 %v950
      %v1467 = vunpack.c.l.b16 %v951
      %v1468 = vunpack.c.l.b16 %v952
      %v1469 = vunpack.c.l.b16 %v953
      %v1470 = vunpack.c.l.b16 %v954
      %v1471 = vunpack.c.l.b16 %v955
      %v1472 = vunpack.c.l.b16 %v956
      %v1473 = vunpack.c.l.b16 %v957
      %v1474 = vunpack.c.l.b16 %v958
      %v1475 = vunpack.c.l.b16 %v959
      %v1476 = vunpack.c.l.b16 %v960
      %v1477 = vunpack.c.l.b16 %v961
      %v1478 = vunpack.c.l.b16 %v962
      %v1479 = vunpack.c.l.b16 %v963
      %v1480 = vunpack.c.l.b16 %v964
      %v1481 = vunpack.c.l.b16 %v965
      %v1482 = vunpack.c.l.b16 %v966
      %v1483 = vunpack.c.l.b16 %v967
      %v1484 = vunpack.c.l.b16 %v968
      %v1485 = vunpack.c.l.b16 %v969
      %v1486 = vunpack.c.l.b16 %v970
      %v1487 = vunpack.c.l.b16 %v971
      %v1488 = vunpack.c.l.b16 %v972
      %v1489 = vunpack.c.l.b16 %v973
      %v1490 = vunpack.c.l.b16 %v974
      %v1491 = vunpack.c.l.b16 %v975
      %v1492 = vunpack.c.l.b16 %v976
      %v1493 = vunpack.c.l.b16 %v977
      %v1494 = vunpack.c.l.b16 %v978
      %v1495 = vunpack.c.l.b16 %v979
      %v1496 = vunpack.c.l.b16 %v980
      %v1497 = vunpack.c.l.b16 %v981
      %v1498 = vunpack.c.l.b16 %v982
      %v1499 = vunpack.c.l.b16 %v983
      %v1500 = vunpack.c.l.b16 %v984
      %v1501 = vunpack.c.l.b16 %v985
      %v1502 = vunpack.c.l.b16 %v986
      %v1503 = vunpack.c.l.b16 %v987
      %v1504 = vunpack.c.l.b16 %v988
      %v1505 = vunpack.c.l.b16 %v989
      %v1506 = vunpack.c.l.b16 %v990
      %v1507 = vunpack.c.l.b16 %v991
      %v1508 = vunpack.c.l.b16 %v992
      %v1509 = vunpack.c.l.b16 %v993
      %v1510 = vunpack.c.l.b16 %v994
      %v1511 = vunpack.c.l.b16 %v995
      %v1512 = vunpack.c.l.b16 %v996
      %v1513 = vunpack.c.l.b16 %v997
      %v1514 = vunpack.c.l.b16 %v998
      %v1515 = vunpack.c.l.b16 %v999
      %v1516 = vunpack.c.l.b16 %v1000
      %v1517 = vunpack.c.l.b16 %v1001
      %v1518 = vunpack.c.l.b16 %v1002
      %v1519 = vunpack.c.l.b16 %v1003
      %v1520 = vunpack.c.l.b16 %v1004
      %v1521 = vpack.c.b16 %v1266, %v1265
      %v1522 = vpack.c.b16 %v1268, %v1267
      %v1523 = vpack.c.b16 %v1270, %v1269
      %v1524 = vpack.c.b16 %v1272, %v1271
      %v1525 = vpack.c.b16 %v1274, %v1273
      %v1526 = vpack.c.b16 %v1276, %v1275
      %v1527 = vpack.c.b16 %v1278, %v1277
      %v1528 = vpack.c.b16 %v1280, %v1279
      %v1529 = vpack.c.b16 %v1282, %v1281
      %v1530 = vpack.c.b16 %v1284, %v1283
      %v1531 = vpack.c.b16 %v1286, %v1285
      %v1532 = vpack.c.b16 %v1288, %v1287
      %v1533 = vpack.c.b16 %v1290, %v1289
      %v1534 = vpack.c.b16 %v1292, %v1291
      %v1535 = vpack.c.b16 %v1294, %v1293
      %v1536 = vpack.c.b16 %v1296, %v1295
      %v1537 = vpack.c.b16 %v1298, %v1297
      %v1538 = vpack.c.b16 %v1300, %v1299
      %v1539 = vpack.c.b16 %v1302, %v1301
      %v1540 = vpack.c.b16 %v1304, %v1303
      %v1541 = vpack.c.b16 %v1306, %v1305
      %v1542 = vpack.c.b16 %v1308, %v1307
      %v1543 = vpack.c.b16 %v1310, %v1309
      %v1544 = vpack.c.b16 %v1312, %v1311
      %v1545 = vpack.c.b16 %v1314, %v1313
      %v1546 = vpack.c.b16 %v1316, %v1315
      %v1547 = vpack.c.b16 %v1318, %v1317
      %v1548 = vpack.c.b16 %v1320, %v1319
      %v1549 = vpack.c.b16 %v1322, %v1321
      %v1550 = vpack.c.b16 %v1324, %v1323
      %v1551 = vpack.c.b16 %v1326, %v1325
      %v1552 = vpack.c.b16 %v1328, %v1327
      %v1553 = vpack.c.b16 %v1330, %v1329
      %v1554 = vpack.c.b16 %v1332, %v1331
      %v1555 = vpack.c.b16 %v1334, %v1333
      %v1556 = vpack.c.b16 %v1336, %v1335
      %v1557 = vpack.c.b16 %v1338, %v1337
      %v1558 = vpack.c.b16 %v1340, %v1339
      %v1559 = vpack.c.b16 %v1342, %v1341
      %v1560 = vpack.c.b16 %v1344, %v1343
      %v1561 = vpack.c.b16 %v1346, %v1345
      %v1562 = vpack.c.b16 %v1348, %v1347
      %v1563 = vpack.c.b16 %v1350, %v1349
      %v1564 = vpack.c.b16 %v1352, %v1351
      %v1565 = vpack.c.b16 %v1354, %v1353
      %v1566 = vpack.c.b16 %v1356, %v1355
      %v1567 = vpack.c.b16 %v1358, %v1357
      %v1568 = vpack.c.b16 %v1360, %v1359
      %v1569 = vpack.c.b16 %v1362, %v1361
      %v1570 = vpack.c.b16 %v1364, %v1363
      %v1571 = vpack.c.b16 %v1366, %v1365
      %v1572 = vpack.c.b16 %v1368, %v1367
      %v1573 = vpack.c.b16 %v1370, %v1369
      %v1574 = vpack.c.b16 %v1372, %v1371
      %v1575 = vpack.c.b16 %v1374, %v1373
      %v1576 = vpack.c.b16 %v1376, %v1375
      %v1577 = vpack.c.b16 %v1378, %v1377
      %v1578 = vpack.c.b16 %v1380, %v1379
      %v1579 = vpack.c.b16 %v1382, %v1381
      %v1580 = vpack.c.b16 %v1384, %v1383
      %v1581 = vpack.c.b16 %v1386, %v1385
      %v1582 = vpack.c.b16 %v1388, %v1387
      %v1583 = vpack.c.b16 %v1390, %v1389
      %v1584 = vpack.c.b16 %v1392, %v1391
      %v1585 = vpack.c.b16 %v1394, %v1393
      %v1586 = vpack.c.b16 %v1396, %v1395
      %v1587 = vpack.c.b16 %v1398, %v1397
      %v1588 = vpack.c.b16 %v1400, %v1399
      %v1589 = vpack.c.b16 %v1402, %v1401
      %v1590 = vpack.c.b16 %v1404, %v1403
      %v1591 = vpack.c.b16 %v1406, %v1405
      %v1592 = vpack.c.b16 %v1408, %v1407
      %v1593 = vpack.c.b16 %v1410, %v1409
      %v1594 = vpack.c.b16 %v1412, %v1411
      %v1595 = vpack.c.b16 %v1414, %v1413
      %v1596 = vpack.c.b16 %v1416, %v1415
      %v1597 = vpack.c.b16 %v1418, %v1417
      %v1598 = vpack.c.b16 %v1420, %v1419
      %v1599 = vpack.c.b16 %v1422, %v1421
      %v1600 = vpack.c.b16 %v1424, %v1423
      %v1601 = vpack.c.b16 %v1426, %v1425
      %v1602 = vpack.c.b16 %v1428, %v1427
      %v1603 = vpack.c.b16 %v1430, %v1429
      %v1604 = vpack.c.b16 %v1432, %v1431
      %v1605 = vpack.c.b16 %v1434, %v1433
      %v1606 = vpack.c.b16 %v1436, %v1435
      %v1607 = vpack.c.b16 %v1438, %v1437
      %v1608 = vpack.c.b16 %v1440, %v1439
      %v1609 = vpack.c.b16 %v1442, %v1441
      %v1610 = vpack.c.b16 %v1444, %v1443
      %v1611 = vpack.c.b16 %v1446, %v1445
      %v1612 = vpack.c.b16 %v1448, %v1447
      %v1613 = vpack.c.b16 %v1450, %v1449
      %v1614 = vpack.c.b16 %v1452, %v1451
      %v1615 = vpack.c.b16 %v1454, %v1453
      %v1616 = vpack.c.b16 %v1456, %v1455
      %v1617 = vpack.c.b16 %v1458, %v1457
      %v1618 = vpack.c.b16 %v1460, %v1459
      %v1619 = vpack.c.b16 %v1462, %v1461
      %v1620 = vpack.c.b16 %v1464, %v1463
      %v1621 = vpack.c.b16 %v1466, %v1465
      %v1622 = vpack.c.b16 %v1468, %v1467
      %v1623 = vpack.c.b16 %v1470, %v1469
      %v1624 = vpack.c.b16 %v1472, %v1471
      %v1625 = vpack.c.b16 %v1474, %v1473
      %v1626 = vpack.c.b16 %v1476, %v1475
      %v1627 = vpack.c.b16 %v1478, %v1477
      %v1628 = vpack.c.b16 %v1480, %v1479
      %v1629 = vpack.c.b16 %v1482, %v1481
      %v1630 = vpack.c.b16 %v1484, %v1483
      %v1631 = vpack.c.b16 %v1486, %v1485
      %v1632 = vpack.c.b16 %v1488, %v1487
      %v1633 = vpack.c.b16 %v1490, %v1489
      %v1634 = vpack.c.b16 %v1492, %v1491
      %v1635 = vpack.c.b16 %v1494, %v1493
      %v1636 = vpack.c.b16 %v1496, %v1495
      %v1637 = vpack.c.b16 %v1498, %v1497
      %v1638 = vpack.c.b16 %v1500, %v1499
      %v1639 = vpack.c.b16 %v1502, %v1501
      %v1640 = vpack.c.b16 %v1504, %v1503
      %v1641 = vpack.c.b16 %v1506, %v1505
      %v1642 = vpack.c.b16 %v1508, %v1507
      %v1643 = vpack.c.b16 %v1510, %v1509
      %v1644 = vpack.c.b16 %v1512, %v1511
      %v1645 = vpack.c.b16 %v1514, %v1513
      %v1646 = vpack.c.b16 %v1516, %v1515
      %v1647 = vpack.c.b16 %v1518, %v1517
      %v1648 = vpack.c.b16 %v1520, %v1519
      %1777 = vmatpush.bf16.msra.mxu0 %v1528
      %1778 = vmatpush.bf16.msra.mxu0 %v1527
      %1779 = vmatpush.bf16.msra.mxu0 %v1526
      %1780 = vmatpush.bf16.msra.mxu0 %v1525
      %1781 = vmatpush.bf16.msra.mxu0 %v1524
      %1782 = vmatpush.bf16.msra.mxu0 %v1523
      %1783 = vmatpush.bf16.msra.mxu0 %v1522
      %1784 = vmatpush.bf16.msra.mxu0 %v1521
      %1785 = vmatmul.bf16.gmra.mxu0 %v733
      %v1786 = vpop.f32.mrf.mxu0
      %v1787 = vadd.f32 %v1007, %v1786
      %v1788 = vpop.f32.mrf.mxu0
      %1789 = vdwg.mxu0
      %1790 = vmatpush.bf16.msra.mxu0 %v1536
      %1791 = vmatpush.bf16.msra.mxu0 %v1535
      %1792 = vmatpush.bf16.msra.mxu0 %v1534
      %1793 = vmatpush.bf16.msra.mxu0 %v1533
      %1794 = vmatpush.bf16.msra.mxu0 %v1532
      %1795 = vmatpush.bf16.msra.mxu0 %v1531
      %1796 = vmatpush.bf16.msra.mxu0 %v1530
      %1797 = vmatpush.bf16.msra.mxu0 %v1529
      %1798 = vmatmul.bf16.gmra.mxu0 %v734
      %v1799 = vpop.f32.mrf.mxu0
      %v1800 = vadd.f32 %v1787, %v1799
      %v1801 = vpop.f32.mrf.mxu0
      %1802 = vdwg.mxu0
      %1803 = vmatpush.bf16.msra.mxu0 %v1544
      %1804 = vmatpush.bf16.msra.mxu0 %v1543
      %1805 = vmatpush.bf16.msra.mxu0 %v1542
      %1806 = vmatpush.bf16.msra.mxu0 %v1541
      %1807 = vmatpush.bf16.msra.mxu0 %v1540
      %1808 = vmatpush.bf16.msra.mxu0 %v1539
      %1809 = vmatpush.bf16.msra.mxu0 %v1538
      %1810 = vmatpush.bf16.msra.mxu0 %v1537
      %1811 = vmatmul.bf16.gmra.mxu0 %v735
      %v1812 = vpop.f32.mrf.mxu0
      %v1813 = vadd.f32 %v1800, %v1812
      %v1814 = vpop.f32.mrf.mxu0
      %1815 = vdwg.mxu0
      %1816 = vmatpush.bf16.msra.mxu0 %v1552
      %1817 = vmatpush.bf16.msra.mxu0 %v1551
      %1818 = vmatpush.bf16.msra.mxu0 %v1550
      %1819 = vmatpush.bf16.msra.mxu0 %v1549
      %1820 = vmatpush.bf16.msra.mxu0 %v1548
      %1821 = vmatpush.bf16.msra.mxu0 %v1547
      %1822 = vmatpush.bf16.msra.mxu0 %v1546
      %1823 = vmatpush.bf16.msra.mxu0 %v1545
      %1824 = vmatmul.bf16.gmra.mxu0 %v736
      %v1825 = vpop.f32.mrf.mxu0
      %v1826 = vadd.f32 %v1813, %v1825
      %v1827 = vpop.f32.mrf.mxu0
      %1828 = vdwg.mxu0
      %1829 = vmatpush.bf16.msra.mxu0 %v1560
      %1830 = vmatpush.bf16.msra.mxu0 %v1559
      %1831 = vmatpush.bf16.msra.mxu0 %v1558
      %1832 = vmatpush.bf16.msra.mxu0 %v1557
      %1833 = vmatpush.bf16.msra.mxu0 %v1556
      %1834 = vmatpush.bf16.msra.mxu0 %v1555
      %1835 = vmatpush.bf16.msra.mxu0 %v1554
      %1836 = vmatpush.bf16.msra.mxu0 %v1553
      %1837 = vmatmul.bf16.gmra.mxu0 %v737
      %v1838 = vpop.f32.mrf.mxu0
      %v1839 = vadd.f32 %v1826, %v1838
      %v1840 = vpop.f32.mrf.mxu0
      %1841 = vdwg.mxu0
      %1842 = vmatpush.bf16.msra.mxu0 %v1568
      %1843 = vmatpush.bf16.msra.mxu0 %v1567
      %1844 = vmatpush.bf16.msra.mxu0 %v1566
      %1845 = vmatpush.bf16.msra.mxu0 %v1565
      %1846 = vmatpush.bf16.msra.mxu0 %v1564
      %1847 = vmatpush.bf16.msra.mxu0 %v1563
      %1848 = vmatpush.bf16.msra.mxu0 %v1562
      %1849 = vmatpush.bf16.msra.mxu0 %v1561
      %1850 = vmatmul.bf16.gmra.mxu0 %v738
      %v1851 = vpop.f32.mrf.mxu0
      %v1852 = vadd.f32 %v1839, %v1851
      %v1853 = vpop.f32.mrf.mxu0
      %1854 = vdwg.mxu0
      %1855 = vmatpush.bf16.msra.mxu0 %v1576
      %1856 = vmatpush.bf16.msra.mxu0 %v1575
      %1857 = vmatpush.bf16.msra.mxu0 %v1574
      %1858 = vmatpush.bf16.msra.mxu0 %v1573
      %1859 = vmatpush.bf16.msra.mxu0 %v1572
      %1860 = vmatpush.bf16.msra.mxu0 %v1571
      %1861 = vmatpush.bf16.msra.mxu0 %v1570
      %1862 = vmatpush.bf16.msra.mxu0 %v1569
      %1863 = vmatmul.bf16.gmra.mxu0 %v739
      %v1864 = vpop.f32.mrf.mxu0
      %v1865 = vadd.f32 %v1852, %v1864
      %v1866 = vpop.f32.mrf.mxu0
      %1867 = vdwg.mxu0
      %1868 = vmatpush.bf16.msra.mxu0 %v1584
      %1869 = vmatpush.bf16.msra.mxu0 %v1583
      %1870 = vmatpush.bf16.msra.mxu0 %v1582
      %1871 = vmatpush.bf16.msra.mxu0 %v1581
      %1872 = vmatpush.bf16.msra.mxu0 %v1580
      %1873 = vmatpush.bf16.msra.mxu0 %v1579
      %1874 = vmatpush.bf16.msra.mxu0 %v1578
      %1875 = vmatpush.bf16.msra.mxu0 %v1577
      %1876 = vmatmul.bf16.gmra.mxu0 %v740
      %v1877 = vpop.f32.mrf.mxu0
      %v1878 = vadd.f32 %v1865, %v1877
      %v1879 = vpop.f32.mrf.mxu0
      %1880 = vdwg.mxu0
      %1881 = vmatpush.bf16.msra.mxu0 %v1592
      %1882 = vmatpush.bf16.msra.mxu0 %v1591
      %1883 = vmatpush.bf16.msra.mxu0 %v1590
      %1884 = vmatpush.bf16.msra.mxu0 %v1589
      %1885 = vmatpush.bf16.msra.mxu0 %v1588
      %1886 = vmatpush.bf16.msra.mxu0 %v1587
      %1887 = vmatpush.bf16.msra.mxu0 %v1586
      %1888 = vmatpush.bf16.msra.mxu0 %v1585
      %1889 = vmatmul.bf16.gmra.mxu0 %v741
      %v1890 = vpop.f32.mrf.mxu0
      %v1891 = vadd.f32 %v1878, %v1890
      %v1892 = vpop.f32.mrf.mxu0
      %1893 = vdwg.mxu0
      %1894 = vmatpush.bf16.msra.mxu0 %v1600
      %1895 = vmatpush.bf16.msra.mxu0 %v1599
      %1896 = vmatpush.bf16.msra.mxu0 %v1598
      %1897 = vmatpush.bf16.msra.mxu0 %v1597
      %1898 = vmatpush.bf16.msra.mxu0 %v1596
      %1899 = vmatpush.bf16.msra.mxu0 %v1595
      %1900 = vmatpush.bf16.msra.mxu0 %v1594
      %1901 = vmatpush.bf16.msra.mxu0 %v1593
      %1902 = vmatmul.bf16.gmra.mxu0 %v742
      %v1903 = vpop.f32.mrf.mxu0
      %v1904 = vadd.f32 %v1891, %v1903
      %v1905 = vpop.f32.mrf.mxu0
      %1906 = vdwg.mxu0
      %1907 = vmatpush.bf16.msra.mxu0 %v1608
      %1908 = vmatpush.bf16.msra.mxu0 %v1607
      %1909 = vmatpush.bf16.msra.mxu0 %v1606
      %1910 = vmatpush.bf16.msra.mxu0 %v1605
      %1911 = vmatpush.bf16.msra.mxu0 %v1604
      %1912 = vmatpush.bf16.msra.mxu0 %v1603
      %1913 = vmatpush.bf16.msra.mxu0 %v1602
      %1914 = vmatpush.bf16.msra.mxu0 %v1601
      %1915 = vmatmul.bf16.gmra.mxu0 %v743
      %v1916 = vpop.f32.mrf.mxu0
      %v1917 = vadd.f32 %v1904, %v1916
      %v1918 = vpop.f32.mrf.mxu0
      %1919 = vdwg.mxu0
      %1920 = vmatpush.bf16.msra.mxu0 %v1616
      %1921 = vmatpush.bf16.msra.mxu0 %v1615
      %1922 = vmatpush.bf16.msra.mxu0 %v1614
      %1923 = vmatpush.bf16.msra.mxu0 %v1613
      %1924 = vmatpush.bf16.msra.mxu0 %v1612
      %1925 = vmatpush.bf16.msra.mxu0 %v1611
      %1926 = vmatpush.bf16.msra.mxu0 %v1610
      %1927 = vmatpush.bf16.msra.mxu0 %v1609
      %1928 = vmatmul.bf16.gmra.mxu0 %v744
      %v1929 = vpop.f32.mrf.mxu0
      %v1930 = vadd.f32 %v1917, %v1929
      %v1931 = vpop.f32.mrf.mxu0
      %1932 = vdwg.mxu0
      %1933 = vmatpush.bf16.msra.mxu0 %v1624
      %1934 = vmatpush.bf16.msra.mxu0 %v1623
      %1935 = vmatpush.bf16.msra.mxu0 %v1622
      %1936 = vmatpush.bf16.msra.mxu0 %v1621
      %1937 = vmatpush.bf16.msra.mxu0 %v1620
      %1938 = vmatpush.bf16.msra.mxu0 %v1619
      %1939 = vmatpush.bf16.msra.mxu0 %v1618
      %1940 = vmatpush.bf16.msra.mxu0 %v1617
      %1941 = vmatmul.bf16.gmra.mxu0 %v745
      %v1942 = vpop.f32.mrf.mxu0
      %v1943 = vadd.f32 %v1930, %v1942
      %v1944 = vpop.f32.mrf.mxu0
      %1945 = vdwg.mxu0
      %1946 = vmatpush.bf16.msra.mxu0 %v1632
      %1947 = vmatpush.bf16.msra.mxu0 %v1631
      %1948 = vmatpush.bf16.msra.mxu0 %v1630
      %1949 = vmatpush.bf16.msra.mxu0 %v1629
      %1950 = vmatpush.bf16.msra.mxu0 %v1628
      %1951 = vmatpush.bf16.msra.mxu0 %v1627
      %1952 = vmatpush.bf16.msra.mxu0 %v1626
      %1953 = vmatpush.bf16.msra.mxu0 %v1625
      %1954 = vmatmul.bf16.gmra.mxu0 %v746
      %v1955 = vpop.f32.mrf.mxu0
      %v1956 = vadd.f32 %v1943, %v1955
      %v1957 = vpop.f32.mrf.mxu0
      %1958 = vdwg.mxu0
      %1959 = vmatpush.bf16.msra.mxu0 %v1640
      %1960 = vmatpush.bf16.msra.mxu0 %v1639
      %1961 = vmatpush.bf16.msra.mxu0 %v1638
      %1962 = vmatpush.bf16.msra.mxu0 %v1637
      %1963 = vmatpush.bf16.msra.mxu0 %v1636
      %1964 = vmatpush.bf16.msra.mxu0 %v1635
      %1965 = vmatpush.bf16.msra.mxu0 %v1634
      %1966 = vmatpush.bf16.msra.mxu0 %v1633
      %1967 = vmatmul.bf16.gmra.mxu0 %v747
      %v1968 = vpop.f32.mrf.mxu0
      %v1969 = vadd.f32 %v1956, %v1968
      %v1970 = vpop.f32.mrf.mxu0
      %1971 = vdwg.mxu0
      %1972 = vmatpush.bf16.msra.mxu0 %v1648
      %1973 = vmatpush.bf16.msra.mxu0 %v1647
      %1974 = vmatpush.bf16.msra.mxu0 %v1646
      %1975 = vmatpush.bf16.msra.mxu0 %v1645
      %1976 = vmatpush.bf16.msra.mxu0 %v1644
      %1977 = vmatpush.bf16.msra.mxu0 %v1643
      %1978 = vmatpush.bf16.msra.mxu0 %v1642
      %1979 = vmatpush.bf16.msra.mxu0 %v1641
      %1980 = vmatmul.bf16.gmra.mxu0 %v748
      %v1981 = vpop.f32.mrf.mxu0
      %v1982 = vadd.f32 %v1969, %v1981
      %v1983 = vpop.f32.mrf.mxu0
      %1984 = vdwg.mxu0
      %v1985 = vadd.f32 %v275, %v1982
      %v1986 = vld [vmem:[%s5] sm:$0x1]
      %v1987 = vld [vmem:[%s6] sm:$0x1]
      %v1988 = vsel %vm505, %v1985, 0.0
      %1989 = vadd.xlane.f32.xlu0 %v1988
      %v1990 = vpop.xlane.xlu0 %1989
      %v1991 = vrcp.pop 32.0
      %v1992 = vmul.f32 32.0, %v1991
      %v1993 = vsub.f32 1.0, %v1992
      %v1994 = vmul.f32 %v1991, %v1993
      %v1995 = vadd.f32 %v1991, %v1994
      %vm1996 = vweird.f32 %v1991
      %v1997 = vsel %vm1996, %v1991, %v1995
      %v1998 = vmul.f32 %v1990, %v1997
      %v1999 = vsub.f32 %v1985, %v1998
      %v2000 = vmul.f32 %v1999, %v1999
      %v2001 = vsel %vm505, %v2000, 0.0
      %2002 = vadd.xlane.f32.xlu0 %v2001
      %v2003 = vpop.xlane.xlu0 %2002
      %v2004 = vmul.f32 %v2003, %v1997
      %v2005 = vadd.f32 %v2004, 1e-05
      %v2006 = vrsqrt.pop %v2005
      %v2007 = vmul.f32 %v2006, %v2005
      %v2008 = vmul.f32 %v2007, %v2006
      %v2009 = vmul.f32 0.5, %v2008
      %v2010 = vsub.f32 1.5, %v2009
      %v2011 = vmul.f32 %v2006, %v2010
      %vm2012 = vweird.f32 %v2005
      %vm2013 = vweird.f32 %v2006
      %vm2014 = vmor %vm2012, %vm2013
      %v2015 = vsel %vm2014, %v2006, %v2011
      %v2016 = vmul.f32 %v1999, %v2015
      %v2018 = vperm.slane %v1986, 0
      %v2020 = vmul.f32 %v2016, %v2018
      %v2022 = vperm.slane %v1987, 0
      %v2024 = vadd.f32 %v2020, %v2022
      %2025 = vst.msk [vmem:[%s273] sm:$0xff] %vm505, %v2024
      %p2026 = scmp.lt.s32.totalorder %s18, 1
      %s2027 = scalar_select %p2026, %s18, 1
      %s2028 = smul.addr %s2027, 8
      %s2029 = scalar_lea.vmem %s7, %s2028
      // Predicated region
      $region49: #{transformer_forward.19} parent=47 // pred_check
        %p2030 = pneg %p188
      $region50: #{transformer_forward.19} parent=47 // pred_check_branch
        %2032 = sbr.rel (%p2030) target = $region52
      $region51: #{transformer_forward.19} parent=47 // pred_region
        _
      $region52: #{transformer_forward.19} parent=47 // pred_fallthru
        _
    $region48: #{transformer_forward.19} parent=5 // pred_fallthru
      _
    %p2033 = scmp.le.s32.totalorder 2, %s13
    // Predicated region
    $region53: #{transformer_forward.19} parent=5 // pred_check
      %p2034 = pneg %p2033
    $region54: #{transformer_forward.19} parent=5 // pred_check_branch
      %2036 = sbr.rel (%p2034) target = $region56
    $region55: #{transformer_forward.19} parent=5 // pred_region
      %s2037 = ssub.s32 %s13, 2
      // Predicated region
      $region57: #{transformer_forward.19} parent=55 // pred_check
        %p2038 = pneg %p194
      $region58: #{transformer_forward.19} parent=55 // pred_check_branch
        %2040 = sbr.rel (%p2038) target = $region60
      $region59: #{transformer_forward.19} parent=55 // pred_region
        %p2041 = scmp.lt.s32.totalorder %s19, 1
        %s2042 = scalar_select %p2041, %s19, 1
        %s2043 = smul.addr %s2042, 8
        %s2044 = scalar_lea.vmem %s7, %s2043
      $region60: #{transformer_forward.19} parent=55 // pred_fallthru
        _
    $region56: #{transformer_forward.19} parent=5 // pred_fallthru
      _
  $region6: #{transformer_forward.19} parent=0 // loop_footer
    %s17 = sadd.s32 1, %s13
  $region7: #{transformer_forward.19} parent=0 // loop_footer_branch
    %12 = sbr.rel target = $region3
  $region8: #{transformer_forward.19} parent=0 // loop_exit
    _

// kernel: transformer_forward.26
$region0: #{transformer_forward.26}
  #allocation0 [shape = 'u32[]', space=smem, size = 0x4, offset = 0x4, fixed_abs, tag = 'smem constant byte address 0x4 - core index']
  #allocation1 [shape = 'u32[72,128]{1,0:T(1,128)}', space=vmem, size = 0x9000, scoped, tag = 'internal scratch']
  %s0 = inlined_call_operand.vmem [shape: f32[2,8,32], index: 0, kind: input, shape index: {}]
  %s1 = inlined_call_operand.vmem [shape: f32[2,8,32], index: 1, kind: input, shape index: {}]
  %s2 = inlined_call_operand.vmem [shape: bf16[32,32], index: 2, kind: input, shape index: {}]
  %s3 = inlined_call_operand.vmem [shape: f32[1,32], index: 3, kind: input, shape index: {}]
  %s4 = inlined_call_operand.vmem [shape: bf16[32,64], index: 4, kind: input, shape index: {}]
  %s5 = inlined_call_operand.vmem [shape: f32[1,64], index: 5, kind: input, shape index: {}]
  %s6 = inlined_call_operand.vmem [shape: bf16[32,32], index: 6, kind: input, shape index: {}]
  %s7 = inlined_call_operand.vmem [shape: f32[1,32], index: 7, kind: input, shape index: {}]
  %s8 = inlined_call_operand.vmem [shape: f32[1,32], index: 8, kind: input, shape index: {}]
  %s9 = inlined_call_operand.vmem [shape: f32[1,32], index: 9, kind: input, shape index: {}]
  %s10 = inlined_call_operand.vmem [shape: f32[2,8,32], index: 10, kind: output, shape index: {}]
  %s11 = sld [smem:[#allocation0]]
  $region73: #{transformer_forward.26} parent=0
    _
  %s13 = ssub.s32 1, %s11
  %s14 = scalar_select 0, %s13, %s11
  loop: start=0, step=1, limit=4
  $region2: #{transformer_forward.26} parent=0 // loop_pre_header
    _
  $region3: #{transformer_forward.26} parent=0 // loop_header
    %s16 = sphi 0, %s20
    %p17 = scmp.ge.s32.totalorder %s16, 4
    %s26 = sphi 0, %s28
    %s29 = sphi 0, %s26
    %s30 = sphi 0, %s29
    %s46 = sphi 0, %s30
    %s52 = sphi 0, %s54
    %s55 = sphi 0, %s52
    %s56 = sphi 0, %s55
    %s72 = sphi 0, %s56
    %s76 = sphi 0, %s76
    %s78 = sphi 0, %s76
    %s79 = sphi 0, %s78
    %s93 = sphi 0, %s79
    %s97 = sphi 0, %s97
    %s99 = sphi 0, %s97
    %s100 = sphi 0, %s99
    %s114 = sphi 0, %s100
    %s118 = sphi 0, %s118
    %s120 = sphi 0, %s118
    %s121 = sphi 0, %s120
    %s135 = sphi 0, %s121
    %s139 = sphi 0, %s139
    %s141 = sphi 0, %s139
    %s142 = sphi 0, %s141
    %s156 = sphi 0, %s142
    %s160 = sphi 0, %s160
    %s162 = sphi 0, %s160
    %s163 = sphi 0, %s162
    %s177 = sphi 0, %s163
    %s181 = sphi 0, %s181
    %s183 = sphi 0, %s181
    %s184 = sphi 0, %s183
    %s198 = sphi 0, %s184
    %s202 = sphi 0, %s202
    %s204 = sphi 0, %s202
    %s205 = sphi 0, %s204
    %s219 = sphi 0, %s205
    %s223 = sphi 0, %s223
    %s225 = sphi 0, %s223
    %s226 = sphi 0, %s225
    %s240 = sphi 0, %s226
    %s246 = sphi 0, %s248
    %s249 = sphi 0, %s246
    %s250 = sphi 0, %s249
    %s266 = sphi 0, %s250
  $region4: #{transformer_forward.26} parent=0 // loop_header_branch
    %19 = sbr.rel (%p17) target = $region8
  $region5: #{transformer_forward.26} parent=0 // loop_body
    %s21 = ssub.s32 %s16, 1
    %s22 = ssub.s32 %s16, 2
    %s23 = sadd.s32 %s16, 1
    %s24 = ssub.s32 %s16, %s23
    %p25 = scmp.eq.s32.totalorder %s24, 0
    %s27 = sadd.s32 %s26, 1
    %s28 = scalar_select %p25, %s26, %s27
    %p31 = pneg %p25
    %p32 = scmp.eq.s32.totalorder %s16, 1
    %p33 = por %p31, %p32
    %p34 = scmp.ne.s32.totalorder %s26, %s29
    %p35 = scmp.eq.s32.totalorder %s16, 0
    %p36 = por %p34, %p35
    %p37 = scmp.ne.s32.totalorder %s26, %s29
    %p38 = scmp.eq.s32.totalorder %s21, 1
    %p39 = por %p37, %p38
    %p40 = scmp.ne.s32.totalorder %s29, %s30
    %p41 = scmp.eq.s32.totalorder %s21, 0
    %p42 = por %p40, %p41
    %p43 = scmp.ne.s32.totalorder %s29, %s30
    %p44 = scmp.eq.s32.totalorder %s22, 1
    %p45 = por %p43, %p44
    %p47 = scmp.ne.s32.totalorder %s30, %s46
    %p48 = scmp.eq.s32.totalorder %s22, 0
    %p49 = por %p47, %p48
    %s50 = ssub.s32 %s16, %s23
    %p51 = scmp.eq.s32.totalorder %s50, 0
    %s53 = sadd.s32 %s52, 1
    %s54 = scalar_select %p51, %s52, %s53
    %p57 = pneg %p51
    %p58 = scmp.eq.s32.totalorder %s16, 1
    %p59 = por %p57, %p58
    %p60 = scmp.ne.s32.totalorder %s52, %s55
    %p61 = scmp.eq.s32.totalorder %s16, 0
    %p62 = por %p60, %p61
    %p63 = scmp.ne.s32.totalorder %s52, %s55
    %p64 = scmp.eq.s32.totalorder %s21, 1
    %p65 = por %p63, %p64
    %p66 = scmp.ne.s32.totalorder %s55, %s56
    %p67 = scmp.eq.s32.totalorder %s21, 0
    %p68 = por %p66, %p67
    %p69 = scmp.ne.s32.totalorder %s55, %s56
    %p70 = scmp.eq.s32.totalorder %s22, 1
    %p71 = por %p69, %p70
    %p73 = scmp.ne.s32.totalorder %s56, %s72
    %p74 = scmp.eq.s32.totalorder %s22, 0
    %p75 = por %p73, %p74
    %s77 = sadd.s32 %s76, 1
    %p80 = scmp.eq.s32.totalorder %s16, 1
    %p81 = scmp.ne.s32.totalorder %s76, %s78
    %p82 = scmp.eq.s32.totalorder %s16, 0
    %p83 = por %p81, %p82
    %p84 = scmp.ne.s32.totalorder %s76, %s78
    %p85 = scmp.eq.s32.totalorder %s21, 1
    %p86 = por %p84, %p85
    %p87 = scmp.ne.s32.totalorder %s78, %s79
    %p88 = scmp.eq.s32.totalorder %s21, 0
    %p89 = por %p87, %p88
    %p90 = scmp.ne.s32.totalorder %s78, %s79
    %p91 = scmp.eq.s32.totalorder %s22, 1
    %p92 = por %p90, %p91
    %p94 = scmp.ne.s32.totalorder %s79, %s93
    %p95 = scmp.eq.s32.totalorder %s22, 0
    %p96 = por %p94, %p95
    %s98 = sadd.s32 %s97, 1
    %p101 = scmp.eq.s32.totalorder %s16, 1
    %p102 = scmp.ne.s32.totalorder %s97, %s99
    %p103 = scmp.eq.s32.totalorder %s16, 0
    %p104 = por %p102, %p103
    %p105 = scmp.ne.s32.totalorder %s97, %s99
    %p106 = scmp.eq.s32.totalorder %s21, 1
    %p107 = por %p105, %p106
    %p108 = scmp.ne.s32.totalorder %s99, %s100
    %p109 = scmp.eq.s32.totalorder %s21, 0
    %p110 = por %p108, %p109
    %p111 = scmp.ne.s32.totalorder %s99, %s100
    %p112 = scmp.eq.s32.totalorder %s22, 1
    %p113 = por %p111, %p112
    %p115 = scmp.ne.s32.totalorder %s100, %s114
    %p116 = scmp.eq.s32.totalorder %s22, 0
    %p117 = por %p115, %p116
    %s119 = sadd.s32 %s118, 1
    %p122 = scmp.eq.s32.totalorder %s16, 1
    %p123 = scmp.ne.s32.totalorder %s118, %s120
    %p124 = scmp.eq.s32.totalorder %s16, 0
    %p125 = por %p123, %p124
    %p126 = scmp.ne.s32.totalorder %s118, %s120
    %p127 = scmp.eq.s32.totalorder %s21, 1
    %p128 = por %p126, %p127
    %p129 = scmp.ne.s32.totalorder %s120, %s121
    %p130 = scmp.eq.s32.totalorder %s21, 0
    %p131 = por %p129, %p130
    %p132 = scmp.ne.s32.totalorder %s120, %s121
    %p133 = scmp.eq.s32.totalorder %s22, 1
    %p134 = por %p132, %p133
    %p136 = scmp.ne.s32.totalorder %s121, %s135
    %p137 = scmp.eq.s32.totalorder %s22, 0
    %p138 = por %p136, %p137
    %s140 = sadd.s32 %s139, 1
    %p143 = scmp.eq.s32.totalorder %s16, 1
    %p144 = scmp.ne.s32.totalorder %s139, %s141
    %p145 = scmp.eq.s32.totalorder %s16, 0
    %p146 = por %p144, %p145
    %p147 = scmp.ne.s32.totalorder %s139, %s141
    %p148 = scmp.eq.s32.totalorder %s21, 1
    %p149 = por %p147, %p148
    %p150 = scmp.ne.s32.totalorder %s141, %s142
    %p151 = scmp.eq.s32.totalorder %s21, 0
    %p152 = por %p150, %p151
    %p153 = scmp.ne.s32.totalorder %s141, %s142
    %p154 = scmp.eq.s32.totalorder %s22, 1
    %p155 = por %p153, %p154
    %p157 = scmp.ne.s32.totalorder %s142, %s156
    %p158 = scmp.eq.s32.totalorder %s22, 0
    %p159 = por %p157, %p158
    %s161 = sadd.s32 %s160, 1
    %p164 = scmp.eq.s32.totalorder %s16, 1
    %p165 = scmp.ne.s32.totalorder %s160, %s162
    %p166 = scmp.eq.s32.totalorder %s16, 0
    %p167 = por %p165, %p166
    %p168 = scmp.ne.s32.totalorder %s160, %s162
    %p169 = scmp.eq.s32.totalorder %s21, 1
    %p170 = por %p168, %p169
    %p171 = scmp.ne.s32.totalorder %s162, %s163
    %p172 = scmp.eq.s32.totalorder %s21, 0
    %p173 = por %p171, %p172
    %p174 = scmp.ne.s32.totalorder %s162, %s163
    %p175 = scmp.eq.s32.totalorder %s22, 1
    %p176 = por %p174, %p175
    %p178 = scmp.ne.s32.totalorder %s163, %s177
    %p179 = scmp.eq.s32.totalorder %s22, 0
    %p180 = por %p178, %p179
    %s182 = sadd.s32 %s181, 1
    %p185 = scmp.eq.s32.totalorder %s16, 1
    %p186 = scmp.ne.s32.totalorder %s181, %s183
    %p187 = scmp.eq.s32.totalorder %s16, 0
    %p188 = por %p186, %p187
    %p189 = scmp.ne.s32.totalorder %s181, %s183
    %p190 = scmp.eq.s32.totalorder %s21, 1
    %p191 = por %p189, %p190
    %p192 = scmp.ne.s32.totalorder %s183, %s184
    %p193 = scmp.eq.s32.totalorder %s21, 0
    %p194 = por %p192, %p193
    %p195 = scmp.ne.s32.totalorder %s183, %s184
    %p196 = scmp.eq.s32.totalorder %s22, 1
    %p197 = por %p195, %p196
    %p199 = scmp.ne.s32.totalorder %s184, %s198
    %p200 = scmp.eq.s32.totalorder %s22, 0
    %p201 = por %p199, %p200
    %s203 = sadd.s32 %s202, 1
    %p206 = scmp.eq.s32.totalorder %s16, 1
    %p207 = scmp.ne.s32.totalorder %s202, %s204
    %p208 = scmp.eq.s32.totalorder %s16, 0
    %p209 = por %p207, %p208
    %p210 = scmp.ne.s32.totalorder %s202, %s204
    %p211 = scmp.eq.s32.totalorder %s21, 1
    %p212 = por %p210, %p211
    %p213 = scmp.ne.s32.totalorder %s204, %s205
    %p214 = scmp.eq.s32.totalorder %s21, 0
    %p215 = por %p213, %p214
    %p216 = scmp.ne.s32.totalorder %s204, %s205
    %p217 = scmp.eq.s32.totalorder %s22, 1
    %p218 = por %p216, %p217
    %p220 = scmp.ne.s32.totalorder %s205, %s219
    %p221 = scmp.eq.s32.totalorder %s22, 0
    %p222 = por %p220, %p221
    %s224 = sadd.s32 %s223, 1
    %p227 = scmp.eq.s32.totalorder %s16, 1
    %p228 = scmp.ne.s32.totalorder %s223, %s225
    %p229 = scmp.eq.s32.totalorder %s16, 0
    %p230 = por %p228, %p229
    %p231 = scmp.ne.s32.totalorder %s223, %s225
    %p232 = scmp.eq.s32.totalorder %s21, 1
    %p233 = por %p231, %p232
    %p234 = scmp.ne.s32.totalorder %s225, %s226
    %p235 = scmp.eq.s32.totalorder %s21, 0
    %p236 = por %p234, %p235
    %p237 = scmp.ne.s32.totalorder %s225, %s226
    %p238 = scmp.eq.s32.totalorder %s22, 1
    %p239 = por %p237, %p238
    %p241 = scmp.ne.s32.totalorder %s226, %s240
    %p242 = scmp.eq.s32.totalorder %s22, 0
    %p243 = por %p241, %p242
    %s244 = ssub.s32 %s16, %s23
    %p245 = scmp.eq.s32.totalorder %s244, 0
    %s247 = sadd.s32 %s246, 1
    %s248 = scalar_select %p245, %s246, %s247
    %p251 = pneg %p245
    %p252 = scmp.eq.s32.totalorder %s16, 1
    %p253 = por %p251, %p252
    %p254 = scmp.ne.s32.totalorder %s246, %s249
    %p255 = scmp.eq.s32.totalorder %s16, 0
    %p256 = por %p254, %p255
    %p257 = scmp.ne.s32.totalorder %s246, %s249
    %p258 = scmp.eq.s32.totalorder %s21, 1
    %p259 = por %p257, %p258
    %p260 = scmp.ne.s32.totalorder %s249, %s250
    %p261 = scmp.eq.s32.totalorder %s21, 0
    %p262 = por %p260, %p261
    %p263 = scmp.ne.s32.totalorder %s249, %s250
    %p264 = scmp.eq.s32.totalorder %s22, 1
    %p265 = por %p263, %p264
    %p267 = scmp.ne.s32.totalorder %s250, %s266
    %p268 = scmp.eq.s32.totalorder %s22, 0
    %p269 = por %p267, %p268
    %p270 = scmp.le.s32.totalorder 1, %s16
    %p271 = scmp.lt.s32.totalorder %s16, 3
    %p272 = pnand %p270, %p271
    %p273 = pneg %p272
    // Predicated region
    $region9: #{transformer_forward.26} parent=5 // pred_check
      _
    $region10: #{transformer_forward.26} parent=5 // pred_check_branch
      %275 = sbr.rel (%p272) target = $region12
    $region11: #{transformer_forward.26} parent=5 // pred_region
      %s276 = ssub.s32 %s16, 1
      // Predicated region
      $region13: #{transformer_forward.26} parent=11 // pred_check
        %p277 = pneg %p89
      $region14: #{transformer_forward.26} parent=11 // pred_check_branch
        %279 = sbr.rel (%p277) target = $region16
      $region15: #{transformer_forward.26} parent=11 // pred_region
        _
      $region16: #{transformer_forward.26} parent=11 // pred_fallthru
        _
      // Predicated region
      $region17: #{transformer_forward.26} parent=11 // pred_check
        %p280 = pneg %p110
      $region18: #{transformer_forward.26} parent=11 // pred_check_branch
        %282 = sbr.rel (%p280) target = $region20
      $region19: #{transformer_forward.26} parent=11 // pred_region
        _
      $region20: #{transformer_forward.26} parent=11 // pred_fallthru
        _
      // Predicated region
      $region21: #{transformer_forward.26} parent=11 // pred_check
        %p283 = pneg %p131
      $region22: #{transformer_forward.26} parent=11 // pred_check_branch
        %285 = sbr.rel (%p283) target = $region24
      $region23: #{transformer_forward.26} parent=11 // pred_region
        _
      $region24: #{transformer_forward.26} parent=11 // pred_fallthru
        _
      // Predicated region
      $region25: #{transformer_forward.26} parent=11 // pred_check
        %p286 = pneg %p152
      $region26: #{transformer_forward.26} parent=11 // pred_check_branch
        %288 = sbr.rel (%p286) target = $region28
      $region27: #{transformer_forward.26} parent=11 // pred_region
        _
      $region28: #{transformer_forward.26} parent=11 // pred_fallthru
        _
      // Predicated region
      $region29: #{transformer_forward.26} parent=11 // pred_check
        %p289 = pneg %p173
      $region30: #{transformer_forward.26} parent=11 // pred_check_branch
        %291 = sbr.rel (%p289) target = $region32
      $region31: #{transformer_forward.26} parent=11 // pred_region
        _
      $region32: #{transformer_forward.26} parent=11 // pred_fallthru
        _
      // Predicated region
      $region33: #{transformer_forward.26} parent=11 // pred_check
        %p292 = pneg %p194
      $region34: #{transformer_forward.26} parent=11 // pred_check_branch
        %294 = sbr.rel (%p292) target = $region36
      $region35: #{transformer_forward.26} parent=11 // pred_region
        _
      $region36: #{transformer_forward.26} parent=11 // pred_fallthru
        _
      // Predicated region
      $region37: #{transformer_forward.26} parent=11 // pred_check
        %p295 = pneg %p215
      $region38: #{transformer_forward.26} parent=11 // pred_check_branch
        %297 = sbr.rel (%p295) target = $region40
      $region39: #{transformer_forward.26} parent=11 // pred_region
        _
      $region40: #{transformer_forward.26} parent=11 // pred_fallthru
        _
      // Predicated region
      $region41: #{transformer_forward.26} parent=11 // pred_check
        %p298 = pneg %p236
      $region42: #{transformer_forward.26} parent=11 // pred_check_branch
        %300 = sbr.rel (%p298) target = $region44
      $region43: #{transformer_forward.26} parent=11 // pred_region
        _
      $region44: #{transformer_forward.26} parent=11 // pred_fallthru
        _
    $region12: #{transformer_forward.26} parent=5 // pred_fallthru
      _
    %p301 = scmp.lt.s32.totalorder %s16, 2
    // Predicated region
    $region45: #{transformer_forward.26} parent=5 // pred_check
      %p302 = pneg %p301
    $region46: #{transformer_forward.26} parent=5 // pred_check_branch
      %304 = sbr.rel (%p302) target = $region48
    $region47: #{transformer_forward.26} parent=5 // pred_region
      // Predicated region
      $region49: #{transformer_forward.26} parent=47 // pred_check
        %p305 = pneg %p36
      $region50: #{transformer_forward.26} parent=47 // pred_check_branch
        %307 = sbr.rel (%p305) target = $region52
      $region51: #{transformer_forward.26} parent=47 // pred_region
        %p308 = scmp.lt.s32.totalorder %s16, 1
        %s309 = scalar_select %p308, %s16, 1
        %s310 = smul.addr %s309, 8
        %s311 = scalar_lea.vmem %s0, %s310
      $region52: #{transformer_forward.26} parent=47 // pred_fallthru
        _
      // Predicated region
      $region53: #{transformer_forward.26} parent=47 // pred_check
        %p312 = pneg %p62
      $region54: #{transformer_forward.26} parent=47 // pred_check_branch
        %314 = sbr.rel (%p312) target = $region56
      $region55: #{transformer_forward.26} parent=47 // pred_region
        %p315 = scmp.lt.s32.totalorder %s16, 1
        %s316 = scalar_select %p315, %s16, 1
        %s317 = smul.addr %s316, 8
        %s318 = scalar_lea.vmem %s1, %s317
      $region56: #{transformer_forward.26} parent=47 // pred_fallthru
        _
    $region48: #{transformer_forward.26} parent=5 // pred_fallthru
      _
    %p319 = scmp.le.s32.totalorder 1, %s16
    %p320 = scmp.lt.s32.totalorder %s16, 3
    %p321 = pnand %p319, %p320
    %p322 = pneg %p321
    // Predicated region
    $region57: #{transformer_forward.26} parent=5 // pred_check
      _
    $region58: #{transformer_forward.26} parent=5 // pred_check_branch
      %324 = sbr.rel (%p321) target = $region60
    $region59: #{transformer_forward.26} parent=5 // pred_region
      %s325 = ssub.s32 %s16, 1
      %p326 = scmp.lt.s32.totalorder %s21, 1
      %s327 = scalar_select %p326, %s21, 1
      %s328 = smul.addr %s327, 8
      %s329 = scalar_lea.vmem %s0, %s328
      %p330 = pneg %p42
      %p331 = pneg %p39
      %p332 = scmp.lt.s32.totalorder %s21, 1
      %s333 = scalar_select %p332, %s21, 1
      %s334 = smul.addr %s333, 8
      %s335 = scalar_lea.vmem %s1, %s334
      %p336 = pneg %p68
      %p337 = pneg %p65
      %p338 = pneg %p89
      %p339 = pneg %p86
      %p340 = pneg %p110
      %p341 = pneg %p107
      %p342 = pneg %p131
      %p343 = pneg %p128
      %p344 = pneg %p152
      %p345 = pneg %p149
      %p346 = pneg %p173
      %p347 = pneg %p170
      %p348 = pneg %p194
      %p349 = pneg %p191
      %p350 = pneg %p215
      %p351 = pneg %p212
      %p352 = pneg %p236
      %p353 = pneg %p233
      %p354 = pneg %p262
      %p355 = pneg %p259
      %p356 = scmp.lt.s32.totalorder %s21, 1
      %s357 = scalar_select %p356, %s21, 1
      %s358 = smul.addr %s357, 8
      %s359 = scalar_lea.vmem %s10, %s358
      %p360 = scmp.lt.s32.totalorder %s21, 1
      %s361 = scalar_select %p360, %s21, 1
      %s362 = smul.addr %s361, 8
      %s363 = scalar_lea.vmem %s0, %s362
      %p364 = scmp.lt.s32.totalorder %s21, 1
      %s365 = scalar_select %p364, %s21, 1
      %s366 = smul.addr %s365, 8
      %s367 = scalar_lea.vmem %s1, %s366
      %p368 = scmp.lt.s32.totalorder %s21, 1
      %s369 = scalar_select %p368, %s21, 1
      %s370 = smul.addr %s369, 8
      %s371 = scalar_lea.vmem %s10, %s370
      %v373 = vld [vmem:[%s363] sm:$0xff]
      %v374 = vld [vmem:[%s367] sm:$0xff]
      %v375 = vpack.c.bf16 %v373, %v373
      %v376 = vld [vmem:[%s2] sm:$0xf]
      %v377 = vld [vmem:[%s2 + $0x4] sm:$0xf]
      %v378 = vld [vmem:[%s2 + $0x8] sm:$0xf]
      %v379 = vld [vmem:[%s2 + $0xc] sm:$0xf]
      %v380 = vld [vmem:[%s3] sm:$0x1]
      %v382 = vperm.slane %v380, 0
      %v388 = vunpack.c.l.b16 %v376
      %v389 = vunpack.c.l.b16 %v377
      %v390 = vunpack.c.l.b16 %v378
      %v391 = vunpack.c.l.b16 %v379
      %v392 = vpack.c.b16 %v389, %v388
      %v393 = vpack.c.b16 %v391, %v390
      %vm396 = vcmask 261120
      %v398 = vsel %vm396, %v375, 0
      %400 = vmatpush.bf16.msra.mxu0 0
      %401 = vmatpush.bf16.msra.mxu0 0
      %402 = vmatpush.bf16.msra.mxu0 0
      %403 = vmatpush.bf16.msra.mxu0 0
      %404 = vmatpush.bf16.msra.mxu0 0
      %405 = vmatpush.bf16.msra.mxu0 0
      %406 = vmatpush.bf16.msra.mxu0 %v393
      %407 = vmatpush.bf16.msra.mxu0 %v392
      %408 = vmatmul.bf16.gmra.mxu0 %v398
      %v409 = vpop.f32.mrf.mxu0
      %v410 = vadd.f32 %v382, %v409
      %v411 = vpop.f32.mrf.mxu0
      %412 = vdwg.mxu0
      %v413 = vpack.c.bf16 %v374, %v374
      %v414 = vld [vmem:[%s4] sm:$0xf]
      %v415 = vld [vmem:[%s4 + $0x4] sm:$0xf]
      %v416 = vld [vmem:[%s4 + $0x8] sm:$0xf]
      %v417 = vld [vmem:[%s4 + $0xc] sm:$0xf]
      %v418 = vld [vmem:[%s5] sm:$0x1]
      %v420 = vperm.slane %v418, 0
      %v426 = vunpack.c.l.b16 %v414
      %v427 = vunpack.c.l.b16 %v415
      %v428 = vunpack.c.l.b16 %v416
      %v429 = vunpack.c.l.b16 %v417
      %v430 = vpack.c.b16 %v427, %v426
      %v431 = vpack.c.b16 %v429, %v428
      %v435 = vsel %vm396, %v413, 0
      %437 = vmatpush.bf16.msra.mxu0 0
      %438 = vmatpush.bf16.msra.mxu0 0
      %439 = vmatpush.bf16.msra.mxu0 0
      %440 = vmatpush.bf16.msra.mxu0 0
      %441 = vmatpush.bf16.msra.mxu0 0
      %442 = vmatpush.bf16.msra.mxu0 0
      %443 = vmatpush.bf16.msra.mxu0 %v431
      %444 = vmatpush.bf16.msra.mxu0 %v430
      %445 = vmatmul.bf16.gmra.mxu0 %v435
      %v446 = vpop.f32.mrf.mxu0
      %v447 = vadd.f32 %v420, %v446
      %v448 = vpop.f32.mrf.mxu0
      %449 = vdwg.mxu0
      %v450 = vpack.c.bf16 %v410, %v410
      %v451 = vpack.c.bf16 %v447, %v447
      %vm452 = vcmask 64512
      %v454 = vsel %vm452, %v450, 0
      %v457 = vsel %vm452, %v451, 0
      %459 = vmatpush.bf16.xpose.msra.mxu0 0
      %460 = vmatpush.bf16.xpose.msra.mxu0 0
      %461 = vmatpush.bf16.xpose.msra.mxu0 0
      %462 = vmatpush.bf16.xpose.msra.mxu0 0
      %463 = vmatpush.bf16.xpose.msra.mxu0 0
      %464 = vmatpush.bf16.xpose.msra.mxu0 0
      %465 = vmatpush.bf16.xpose.msra.mxu0 0
      %466 = vmatpush.bf16.xpose.msra.mxu0 %v457
      %467 = vmatmul.bf16.gmra.mxu0 %v454
      %v468 = vpop.f32.mrf.mxu0
      %v469 = vadd.f32 0.0, %v468
      %v470 = vpop.f32.mrf.mxu0
      %471 = vdwg.mxu0
      %v472 = vmul.f32 %v469, 0.35355338
      %v473 = vsel %vm452, %v472, -inf
      %474 = vmax.xlane.f32.xlu0 %v473
      %v475 = vpop.xlane.xlu0 %474
      %v476 = vsub.f32 %v472, %v475
      %v477 = vmul.f32 %v476, 1.442695
      %v478 = vpow.pop %v477
      %v479 = vsel %vm452, %v478, 0.0
      %480 = vadd.xlane.f32.xlu0 %v479
      %v481 = vpop.xlane.xlu0 %480
      %v482 = vpack.c.bf16 %v478, %v478
      %484 = vrot.lane.b32.xlu0 %v451, 96
      %v485 = vpop.permute.xlu0 %484
      %v487 = vsel %vm452, %v482, 0
      %vm489 = vcmask 1043456
      %v491 = vsel %vm489, %v485, 0
      %493 = vmatpush.bf16.msra.mxu0 0
      %494 = vmatpush.bf16.msra.mxu0 0
      %495 = vmatpush.bf16.msra.mxu0 0
      %496 = vmatpush.bf16.msra.mxu0 0
      %497 = vmatpush.bf16.msra.mxu0 0
      %498 = vmatpush.bf16.msra.mxu0 0
      %499 = vmatpush.bf16.msra.mxu0 0
      %500 = vmatpush.bf16.msra.mxu0 %v491
      %501 = vmatmul.bf16.gmra.mxu0 %v487
      %v502 = vpop.f32.mrf.mxu0
      %v503 = vadd.f32 0.0, %v502
      %v504 = vpop.f32.mrf.mxu0
      %505 = vdwg.mxu0
      %v506 = vrcp.pop %v481
      %v507 = vmul.f32 %v503, %v506
      %509 = vrot.lane.b32.xlu0 %v450, 120
      %v510 = vpop.permute.xlu0 %509
      %511 = vrot.lane.b32.xlu0 %v451, 120
      %v512 = vpop.permute.xlu0 %511
      %v514 = vsel %vm452, %v510, 0
      %v517 = vsel %vm452, %v512, 0
      %519 = vmatpush.bf16.xpose.msra.mxu0 0
      %520 = vmatpush.bf16.xpose.msra.mxu0 0
      %521 = vmatpush.bf16.xpose.msra.mxu0 0
      %522 = vmatpush.bf16.xpose.msra.mxu0 0
      %523 = vmatpush.bf16.xpose.msra.mxu0 0
      %524 = vmatpush.bf16.xpose.msra.mxu0 0
      %525 = vmatpush.bf16.xpose.msra.mxu0 0
      %526 = vmatpush.bf16.xpose.msra.mxu0 %v517
      %527 = vmatmul.bf16.gmra.mxu0 %v514
      %v528 = vpop.f32.mrf.mxu0
      %v529 = vadd.f32 0.0, %v528
      %v530 = vpop.f32.mrf.mxu0
      %531 = vdwg.mxu0
      %v532 = vmul.f32 %v529, 0.35355338
      %v533 = vsel %vm452, %v532, -inf
      %534 = vmax.xlane.f32.xlu0 %v533
      %v535 = vpop.xlane.xlu0 %534
      %v536 = vsub.f32 %v532, %v535
      %v537 = vmul.f32 %v536, 1.442695
      %v538 = vpow.pop %v537
      %v539 = vsel %vm452, %v538, 0.0
      %540 = vadd.xlane.f32.xlu0 %v539
      %v541 = vpop.xlane.xlu0 %540
      %v542 = vpack.c.bf16 %v538, %v538
      %543 = vrot.lane.b32.xlu0 %v451, 88
      %v544 = vpop.permute.xlu0 %543
      %v546 = vsel %vm452, %v542, 0
      %v549 = vsel %vm489, %v544, 0
      %551 = vmatpush.bf16.msra.mxu0 0
      %552 = vmatpush.bf16.msra.mxu0 0
      %553 = vmatpush.bf16.msra.mxu0 0
      %554 = vmatpush.bf16.msra.mxu0 0
      %555 = vmatpush.bf16.msra.mxu0 0
      %556 = vmatpush.bf16.msra.mxu0 0
      %557 = vmatpush.bf16.msra.mxu0 0
      %558 = vmatpush.bf16.msra.mxu0 %v549
      %559 = vmatmul.bf16.gmra.mxu0 %v546
      %v560 = vpop.f32.mrf.mxu0
      %v561 = vadd.f32 0.0, %v560
      %v562 = vpop.f32.mrf.mxu0
      %563 = vdwg.mxu0
      %v564 = vrcp.pop %v541
      %v565 = vmul.f32 %v561, %v564
      %566 = vrot.lane.b32.xlu0 %v450, 112
      %v567 = vpop.permute.xlu0 %566
      %568 = vrot.lane.b32.xlu0 %v451, 112
      %v569 = vpop.permute.xlu0 %568
      %v571 = vsel %vm452, %v567, 0
      %v574 = vsel %vm452, %v569, 0
      %576 = vmatpush.bf16.xpose.msra.mxu0 0
      %577 = vmatpush.bf16.xpose.msra.mxu0 0
      %578 = vmatpush.bf16.xpose.msra.mxu0 0
      %579 = vmatpush.bf16.xpose.msra.mxu0 0
      %580 = vmatpush.bf16.xpose.msra.mxu0 0
      %581 = vmatpush.bf16.xpose.msra.mxu0 0
      %582 = vmatpush.bf16.xpose.msra.mxu0 0
      %583 = vmatpush.bf16.xpose.msra.mxu0 %v574
      %584 = vmatmul.bf16.gmra.mxu0 %v571
      %v585 = vpop.f32.mrf.mxu0
      %v586 = vadd.f32 0.0, %v585
      %v587 = vpop.f32.mrf.mxu0
      %588 = vdwg.mxu0
      %v589 = vmul.f32 %v586, 0.35355338
      %v590 = vsel %vm452, %v589, -inf
      %591 = vmax.xlane.f32.xlu0 %v590
      %v592 = vpop.xlane.xlu0 %591
      %v593 = vsub.f32 %v589, %v592
      %v594 = vmul.f32 %v593, 1.442695
      %v595 = vpow.pop %v594
      %v596 = vsel %vm452, %v595, 0.0
      %597 = vadd.xlane.f32.xlu0 %v596
      %v598 = vpop.xlane.xlu0 %597
      %v599 = vpack.c.bf16 %v595, %v595
      %600 = vrot.lane.b32.xlu0 %v451, 80
      %v601 = vpop.permute.xlu0 %600
      %v603 = vsel %vm452, %v599, 0
      %v606 = vsel %vm489, %v601, 0
      %608 = vmatpush.bf16.msra.mxu0 0
      %609 = vmatpush.bf16.msra.mxu0 0
      %610 = vmatpush.bf16.msra.mxu0 0
      %611 = vmatpush.bf16.msra.mxu0 0
      %612 = vmatpush.bf16.msra.mxu0 0
      %613 = vmatpush.bf16.msra.mxu0 0
      %614 = vmatpush.bf16.msra.mxu0 0
      %615 = vmatpush.bf16.msra.mxu0 %v606
      %616 = vmatmul.bf16.gmra.mxu0 %v603
      %v617 = vpop.f32.mrf.mxu0
      %v618 = vadd.f32 0.0, %v617
      %v619 = vpop.f32.mrf.mxu0
      %620 = vdwg.mxu0
      %v621 = vrcp.pop %v598
      %v622 = vmul.f32 %v618, %v621
      %623 = vrot.lane.b32.xlu0 %v450, 104
      %v624 = vpop.permute.xlu0 %623
      %625 = vrot.lane.b32.xlu0 %v451, 104
      %v626 = vpop.permute.xlu0 %625
      %v628 = vsel %vm452, %v624, 0
      %v631 = vsel %vm452, %v626, 0
      %633 = vmatpush.bf16.xpose.msra.mxu0 0
      %634 = vmatpush.bf16.xpose.msra.mxu0 0
      %635 = vmatpush.bf16.xpose.msra.mxu0 0
      %636 = vmatpush.bf16.xpose.msra.mxu0 0
      %637 = vmatpush.bf16.xpose.msra.mxu0 0
      %638 = vmatpush.bf16.xpose.msra.mxu0 0
      %639 = vmatpush.bf16.xpose.msra.mxu0 0
      %640 = vmatpush.bf16.xpose.msra.mxu0 %v631
      %641 = vmatmul.bf16.gmra.mxu0 %v628
      %v642 = vpop.f32.mrf.mxu0
      %v643 = vadd.f32 0.0, %v642
      %v644 = vpop.f32.mrf.mxu0
      %645 = vdwg.mxu0
      %v646 = vmul.f32 %v643, 0.35355338
      %v647 = vsel %vm452, %v646, -inf
      %648 = vmax.xlane.f32.xlu0 %v647
      %v649 = vpop.xlane.xlu0 %648
      %v650 = vsub.f32 %v646, %v649
      %v651 = vmul.f32 %v650, 1.442695
      %v652 = vpow.pop %v651
      %v653 = vsel %vm452, %v652, 0.0
      %654 = vadd.xlane.f32.xlu0 %v653
      %v655 = vpop.xlane.xlu0 %654
      %v656 = vpack.c.bf16 %v652, %v652
      %657 = vrot.lane.b32.xlu0 %v451, 72
      %v658 = vpop.permute.xlu0 %657
      %v660 = vsel %vm452, %v656, 0
      %v663 = vsel %vm489, %v658, 0
      %665 = vmatpush.bf16.msra.mxu0 0
      %666 = vmatpush.bf16.msra.mxu0 0
      %667 = vmatpush.bf16.msra.mxu0 0
      %668 = vmatpush.bf16.msra.mxu0 0
      %669 = vmatpush.bf16.msra.mxu0 0
      %670 = vmatpush.bf16.msra.mxu0 0
      %671 = vmatpush.bf16.msra.mxu0 0
      %672 = vmatpush.bf16.msra.mxu0 %v663
      %673 = vmatmul.bf16.gmra.mxu0 %v660
      %v674 = vpop.f32.mrf.mxu0
      %v675 = vadd.f32 0.0, %v674
      %v676 = vpop.f32.mrf.mxu0
      %677 = vdwg.mxu0
      %v678 = vrcp.pop %v655
      %v679 = vmul.f32 %v675, %v678
      %681 = vrot.lane.b32.xlu0 %v565, 8
      %v682 = vpop.permute.xlu0 %681
      %685 = vrot.lane.b32.xlu0 %v622, 16
      %v686 = vpop.permute.xlu0 %685
      %689 = vrot.lane.b32.xlu0 %v679, 24
      %v690 = vpop.permute.xlu0 %689
      %v692 = vsel %vm452, %v507, %v682
      %vm693 = vcmask 130048
      %v694 = vsel %vm693, %v692, %v686
      %vm695 = vcmask 195584
      %v696 = vsel %vm695, %v694, %v690
      %v697 = vpack.c.bf16 %v696, %v696
      %v698 = vld [vmem:[%s6] sm:$0xf]
      %v699 = vld [vmem:[%s6 + $0x4] sm:$0xf]
      %v700 = vld [vmem:[%s6 + $0x8] sm:$0xf]
      %v701 = vld [vmem:[%s6 + $0xc] sm:$0xf]
      %v702 = vld [vmem:[%s7] sm:$0x1]
      %v704 = vperm.slane %v702, 0
      %v710 = vunpack.c.l.b16 %v698
      %v711 = vunpack.c.l.b16 %v699
      %v712 = vunpack.c.l.b16 %v700
      %v713 = vunpack.c.l.b16 %v701
      %v714 = vpack.c.b16 %v711, %v710
      %v715 = vpack.c.b16 %v713, %v712
      %v719 = vsel %vm396, %v697, 0
      %721 = vmatpush.bf16.msra.mxu0 0
      %722 = vmatpush.bf16.msra.mxu0 0
      %723 = vmatpush.bf16.msra.mxu0 0
      %724 = vmatpush.bf16.msra.mxu0 0
      %725 = vmatpush.bf16.msra.mxu0 0
      %726 = vmatpush.bf16.msra.mxu0 0
      %727 = vmatpush.bf16.msra.mxu0 %v715
      %728 = vmatpush.bf16.msra.mxu0 %v714
      %729 = vmatmul.bf16.gmra.mxu0 %v719
      %v730 = vpop.f32.mrf.mxu0
      %v731 = vadd.f32 %v704, %v730
      %v732 = vpop.f32.mrf.mxu0
      %733 = vdwg.mxu0
      %v734 = vadd.f32 %v373, %v731
      %v735 = vld [vmem:[%s8] sm:$0x1]
      %v736 = vld [vmem:[%s9] sm:$0x1]
      %v737 = vsel %vm396, %v734, 0.0
      %738 = vadd.xlane.f32.xlu0 %v737
      %v739 = vpop.xlane.xlu0 %738
      %v740 = vrcp.pop 32.0
      %v741 = vmul.f32 32.0, %v740
      %v742 = vsub.f32 1.0, %v741
      %v743 = vmul.f32 %v740, %v742
      %v744 = vadd.f32 %v740, %v743
      %vm745 = vweird.f32 %v740
      %v746 = vsel %vm745, %v740, %v744
      %v747 = vmul.f32 %v739, %v746
      %v748 = vsub.f32 %v734, %v747
      %v749 = vmul.f32 %v748, %v748
      %v750 = vsel %vm396, %v749, 0.0
      %751 = vadd.xlane.f32.xlu0 %v750
      %v752 = vpop.xlane.xlu0 %751
      %v753 = vmul.f32 %v752, %v746
      %v754 = vadd.f32 %v753, 1e-05
      %v755 = vrsqrt.pop %v754
      %v756 = vmul.f32 %v755, %v754
      %v757 = vmul.f32 %v756, %v755
      %v758 = vmul.f32 0.5, %v757
      %v759 = vsub.f32 1.5, %v758
      %v760 = vmul.f32 %v755, %v759
      %vm761 = vweird.f32 %v754
      %vm762 = vweird.f32 %v755
      %vm763 = vmor %vm761, %vm762
      %v764 = vsel %vm763, %v755, %v760
      %v765 = vmul.f32 %v748, %v764
      %v767 = vperm.slane %v735, 0
      %v769 = vmul.f32 %v765, %v767
      %v771 = vperm.slane %v736, 0
      %v773 = vadd.f32 %v769, %v771
      %774 = vst.msk [vmem:[%s371] sm:$0xff] %vm396, %v773
      %p775 = scmp.lt.s32.totalorder %s21, 1
      %s776 = scalar_select %p775, %s21, 1
      %s777 = smul.addr %s776, 8
      %s778 = scalar_lea.vmem %s10, %s777
      // Predicated region
      $region61: #{transformer_forward.26} parent=59 // pred_check
        %p779 = pneg %p259
      $region62: #{transformer_forward.26} parent=59 // pred_check_branch
        %781 = sbr.rel (%p779) target = $region64
      $region63: #{transformer_forward.26} parent=59 // pred_region
        _
      $region64: #{transformer_forward.26} parent=59 // pred_fallthru
        _
    $region60: #{transformer_forward.26} parent=5 // pred_fallthru
      _
    %p782 = scmp.le.s32.totalorder 2, %s16
    // Predicated region
    $region65: #{transformer_forward.26} parent=5 // pred_check
      %p783 = pneg %p782
    $region66: #{transformer_forward.26} parent=5 // pred_check_branch
      %785 = sbr.rel (%p783) target = $region68
    $region67: #{transformer_forward.26} parent=5 // pred_region
      %s786 = ssub.s32 %s16, 2
      // Predicated region
      $region69: #{transformer_forward.26} parent=67 // pred_check
        %p787 = pneg %p265
      $region70: #{transformer_forward.26} parent=67 // pred_check_branch
        %789 = sbr.rel (%p787) target = $region72
      $region71: #{transformer_forward.26} parent=67 // pred_region
        %p790 = scmp.lt.s32.totalorder %s22, 1
        %s791 = scalar_select %p790, %s22, 1
        %s792 = smul.addr %s791, 8
        %s793 = scalar_lea.vmem %s10, %s792
      $region72: #{transformer_forward.26} parent=67 // pred_fallthru
        _
    $region68: #{transformer_forward.26} parent=5 // pred_fallthru
      _
  $region6: #{transformer_forward.26} parent=0 // loop_footer
    %s20 = sadd.s32 1, %s16
  $region7: #{transformer_forward.26} parent=0 // loop_footer_branch
    %15 = sbr.rel target = $region3
  $region8: #{transformer_forward.26} parent=0 // loop_exit
    _

// kernel: transformer_forward.35
$region0: #{transformer_forward.35}
  #allocation0 [shape = 'u32[]', space=smem, size = 0x4, offset = 0x4, fixed_abs, tag = 'smem constant byte address 0x4 - core index']
  #allocation1 [shape = 'u32[72,128]{1,0:T(1,128)}', space=vmem, size = 0x9000, scoped, tag = 'internal scratch']
  %s0 = inlined_call_operand.vmem [shape: f32[16,32], index: 0, kind: input, shape index: {}]
  %s1 = inlined_call_operand.vmem [shape: bf16[32,128], index: 1, kind: input, shape index: {}]
  %s2 = inlined_call_operand.vmem [shape: f32[1,128], index: 2, kind: input, shape index: {}]
  %s3 = inlined_call_operand.vmem [shape: f32[16,128], index: 3, kind: output, shape index: {}]
  %s4 = sld [smem:[#allocation0]]
  $region45: #{transformer_forward.35} parent=0
    _
  %s6 = ssub.s32 1, %s4
  %s7 = scalar_select 0, %s6, %s4
  loop: start=0, step=1, limit=4
  $region2: #{transformer_forward.35} parent=0 // loop_pre_header
    _
  $region3: #{transformer_forward.35} parent=0 // loop_header
    %s9 = sphi 0, %s13
    %p10 = scmp.ge.s32.totalorder %s9, 4
    %s16 = sphi 0, %s28
    %s17 = sphi 0, %s24
    %s18 = sphi 0, %s16
    %s19 = sphi 0, %s17
    %s20 = sphi 0, %s18
    %s21 = sphi 0, %s19
    %s31 = sphi 0, %s33
    %s34 = sphi 0, %s31
    %s35 = sphi 0, %s34
    %s51 = sphi 0, %s35
    %s57 = sphi 0, %s59
    %s60 = sphi 0, %s57
    %s61 = sphi 0, %s60
    %s77 = sphi 0, %s61
    %s83 = sphi 0, %s85
    %s86 = sphi 0, %s83
    %s87 = sphi 0, %s86
    %s103 = sphi 0, %s87
    %s111 = sphi 0, %s113
    %s114 = sphi 0, %s111
    %s115 = sphi 0, %s114
    %s131 = sphi 0, %s115
  $region4: #{transformer_forward.35} parent=0 // loop_header_branch
    %12 = sbr.rel (%p10) target = $region8
  $region5: #{transformer_forward.35} parent=0 // loop_body
    %s14 = ssub.s32 %s9, 1
    %s15 = ssub.s32 %s9, 2
    %s22 = sadd.s32 1, %s17
    %p23 = scmp.ge.s32.totalorder %s22, 1
    %s24 = scalar_select %p23, 0, %s22
    %s25 = sadd.s32 1, %s16
    %s26 = scalar_select %p23, %s25, %s16
    %p27 = scmp.ge.s32.totalorder %s26, 2
    %s28 = scalar_select %p27, 0, %s26
    %s29 = ssub.s32 %s16, %s28
    %p30 = scmp.eq.s32.totalorder %s29, 0
    %s32 = sadd.s32 %s31, 1
    %s33 = scalar_select %p30, %s31, %s32
    %p36 = pneg %p30
    %p37 = scmp.eq.s32.totalorder %s9, 1
    %p38 = por %p36, %p37
    %p39 = scmp.ne.s32.totalorder %s31, %s34
    %p40 = scmp.eq.s32.totalorder %s9, 0
    %p41 = por %p39, %p40
    %p42 = scmp.ne.s32.totalorder %s31, %s34
    %p43 = scmp.eq.s32.totalorder %s14, 1
    %p44 = por %p42, %p43
    %p45 = scmp.ne.s32.totalorder %s34, %s35
    %p46 = scmp.eq.s32.totalorder %s14, 0
    %p47 = por %p45, %p46
    %p48 = scmp.ne.s32.totalorder %s34, %s35
    %p49 = scmp.eq.s32.totalorder %s15, 1
    %p50 = por %p48, %p49
    %p52 = scmp.ne.s32.totalorder %s35, %s51
    %p53 = scmp.eq.s32.totalorder %s15, 0
    %p54 = por %p52, %p53
    %s55 = ssub.s32 %s17, %s24
    %p56 = scmp.eq.s32.totalorder %s55, 0
    %s58 = sadd.s32 %s57, 1
    %s59 = scalar_select %p56, %s57, %s58
    %p62 = pneg %p56
    %p63 = scmp.eq.s32.totalorder %s9, 1
    %p64 = por %p62, %p63
    %p65 = scmp.ne.s32.totalorder %s57, %s60
    %p66 = scmp.eq.s32.totalorder %s9, 0
    %p67 = por %p65, %p66
    %p68 = scmp.ne.s32.totalorder %s57, %s60
    %p69 = scmp.eq.s32.totalorder %s14, 1
    %p70 = por %p68, %p69
    %p71 = scmp.ne.s32.totalorder %s60, %s61
    %p72 = scmp.eq.s32.totalorder %s14, 0
    %p73 = por %p71, %p72
    %p74 = scmp.ne.s32.totalorder %s60, %s61
    %p75 = scmp.eq.s32.totalorder %s15, 1
    %p76 = por %p74, %p75
    %p78 = scmp.ne.s32.totalorder %s61, %s77
    %p79 = scmp.eq.s32.totalorder %s15, 0
    %p80 = por %p78, %p79
    %s81 = ssub.s32 %s17, %s24
    %p82 = scmp.eq.s32.totalorder %s81, 0
    %s84 = sadd.s32 %s83, 1
    %s85 = scalar_select %p82, %s83, %s84
    %p88 = pneg %p82
    %p89 = scmp.eq.s32.totalorder %s9, 1
    %p90 = por %p88, %p89
    %p91 = scmp.ne.s32.totalorder %s83, %s86
    %p92 = scmp.eq.s32.totalorder %s9, 0
    %p93 = por %p91, %p92
    %p94 = scmp.ne.s32.totalorder %s83, %s86
    %p95 = scmp.eq.s32.totalorder %s14, 1
    %p96 = por %p94, %p95
    %p97 = scmp.ne.s32.totalorder %s86, %s87
    %p98 = scmp.eq.s32.totalorder %s14, 0
    %p99 = por %p97, %p98
    %p100 = scmp.ne.s32.totalorder %s86, %s87
    %p101 = scmp.eq.s32.totalorder %s15, 1
    %p102 = por %p100, %p101
    %p104 = scmp.ne.s32.totalorder %s87, %s103
    %p105 = scmp.eq.s32.totalorder %s15, 0
    %p106 = por %p104, %p105
    %s107 = ssub.s32 %s16, %s28
    %s108 = ssub.s32 %s17, %s24
    %s109 = sor.u32 %s107, %s108
    %p110 = scmp.eq.s32.totalorder %s109, 0
    %s112 = sadd.s32 %s111, 1
    %s113 = scalar_select %p110, %s111, %s112
    %p116 = pneg %p110
    %p117 = scmp.eq.s32.totalorder %s9, 1
    %p118 = por %p116, %p117
    %p119 = scmp.ne.s32.totalorder %s111, %s114
    %p120 = scmp.eq.s32.totalorder %s9, 0
    %p121 = por %p119, %p120
    %p122 = scmp.ne.s32.totalorder %s111, %s114
    %p123 = scmp.eq.s32.totalorder %s14, 1
    %p124 = por %p122, %p123
    %p125 = scmp.ne.s32.totalorder %s114, %s115
    %p126 = scmp.eq.s32.totalorder %s14, 0
    %p127 = por %p125, %p126
    %p128 = scmp.ne.s32.totalorder %s114, %s115
    %p129 = scmp.eq.s32.totalorder %s15, 1
    %p130 = por %p128, %p129
    %p132 = scmp.ne.s32.totalorder %s115, %s131
    %p133 = scmp.eq.s32.totalorder %s15, 0
    %p134 = por %p132, %p133
    %p135 = scmp.le.s32.totalorder 1, %s9
    %p136 = scmp.lt.s32.totalorder %s9, 3
    %p137 = pnand %p135, %p136
    %p138 = pneg %p137
    // Predicated region
    $region9: #{transformer_forward.35} parent=5 // pred_check
      _
    $region10: #{transformer_forward.35} parent=5 // pred_check_branch
      %140 = sbr.rel (%p137) target = $region12
    $region11: #{transformer_forward.35} parent=5 // pred_region
      %s141 = ssub.s32 %s9, 1
      // Predicated region
      $region13: #{transformer_forward.35} parent=11 // pred_check
        %p142 = pneg %p73
      $region14: #{transformer_forward.35} parent=11 // pred_check_branch
        %144 = sbr.rel (%p142) target = $region16
      $region15: #{transformer_forward.35} parent=11 // pred_region
        %p145 = scmp.lt.s32.totalorder %s19, 0
        %s146 = scalar_select %p145, %s19, 0
        %s147 = smul.addr %s146, 4
        %s148 = scalar_lea.vmem %s1, %s147
      $region16: #{transformer_forward.35} parent=11 // pred_fallthru
        _
      // Predicated region
      $region17: #{transformer_forward.35} parent=11 // pred_check
        %p149 = pneg %p99
      $region18: #{transformer_forward.35} parent=11 // pred_check_branch
        %151 = sbr.rel (%p149) target = $region20
      $region19: #{transformer_forward.35} parent=11 // pred_region
        %p152 = scmp.lt.s32.totalorder %s19, 0
        %s153 = scalar_select %p152, %s19, 0
        %s154 = scalar_lea.vmem %s2, %s153
      $region20: #{transformer_forward.35} parent=11 // pred_fallthru
        _
    $region12: #{transformer_forward.35} parent=5 // pred_fallthru
      _
    %p155 = scmp.lt.s32.totalorder %s9, 2
    // Predicated region
    $region21: #{transformer_forward.35} parent=5 // pred_check
      %p156 = pneg %p155
    $region22: #{transformer_forward.35} parent=5 // pred_check_branch
      %158 = sbr.rel (%p156) target = $region24
    $region23: #{transformer_forward.35} parent=5 // pred_region
      // Predicated region
      $region25: #{transformer_forward.35} parent=23 // pred_check
        %p159 = pneg %p41
      $region26: #{transformer_forward.35} parent=23 // pred_check_branch
        %161 = sbr.rel (%p159) target = $region28
      $region27: #{transformer_forward.35} parent=23 // pred_region
        %p162 = scmp.lt.s32.totalorder %s16, 1
        %s163 = scalar_select %p162, %s16, 1
        %s164 = smul.addr %s163, 8
        %s165 = scalar_lea.vmem %s0, %s164
      $region28: #{transformer_forward.35} parent=23 // pred_fallthru
        _
    $region24: #{transformer_forward.35} parent=5 // pred_fallthru
      _
    %p166 = scmp.le.s32.totalorder 1, %s9
    %p167 = scmp.lt.s32.totalorder %s9, 3
    %p168 = pnand %p166, %p167
    %p169 = pneg %p168
    // Predicated region
    $region29: #{transformer_forward.35} parent=5 // pred_check
      _
    $region30: #{transformer_forward.35} parent=5 // pred_check_branch
      %171 = sbr.rel (%p168) target = $region32
    $region31: #{transformer_forward.35} parent=5 // pred_region
      %s172 = ssub.s32 %s9, 1
      %p173 = scmp.lt.s32.totalorder %s18, 1
      %s174 = scalar_select %p173, %s18, 1
      %s175 = smul.addr %s174, 8
      %s176 = scalar_lea.vmem %s0, %s175
      %p177 = pneg %p47
      %p178 = pneg %p44
      %p179 = scmp.lt.s32.totalorder %s19, 0
      %s180 = scalar_select %p179, %s19, 0
      %s181 = smul.addr %s180, 4
      %s182 = scalar_lea.vmem %s1, %s181
      %p183 = pneg %p73
      %p184 = pneg %p70
      %p185 = scmp.lt.s32.totalorder %s19, 0
      %s186 = scalar_select %p185, %s19, 0
      %s187 = scalar_lea.vmem %s2, %s186
      %p188 = pneg %p99
      %p189 = pneg %p96
      %p190 = pneg %p127
      %p191 = pneg %p124
      %p192 = scmp.lt.s32.totalorder %s18, 1
      %s193 = scalar_select %p192, %s18, 1
      %p194 = scmp.lt.s32.totalorder %s19, 0
      %s195 = scalar_select %p194, %s19, 0
      %s196 = sadd.s32 %s195, %s193
      %s197 = smul.addr %s196, 8
      %s198 = scalar_lea.vmem %s3, %s197
      %p199 = scmp.lt.s32.totalorder %s18, 1
      %s200 = scalar_select %p199, %s18, 1
      %s201 = smul.addr %s200, 8
      %s202 = scalar_lea.vmem %s0, %s201
      %p203 = scmp.lt.s32.totalorder %s19, 0
      %s204 = scalar_select %p203, %s19, 0
      %s205 = smul.addr %s204, 4
      %s206 = scalar_lea.vmem %s1, %s205
      %p207 = scmp.lt.s32.totalorder %s19, 0
      %s208 = scalar_select %p207, %s19, 0
      %s209 = scalar_lea.vmem %s2, %s208
      %p210 = scmp.lt.s32.totalorder %s18, 1
      %s211 = scalar_select %p210, %s18, 1
      %p212 = scmp.lt.s32.totalorder %s19, 0
      %s213 = scalar_select %p212, %s19, 0
      %s214 = sadd.s32 %s213, %s211
      %s215 = smul.addr %s214, 8
      %s216 = scalar_lea.vmem %s3, %s215
      %v218 = vld [vmem:[%s202] sm:$0xff]
      %v219 = vpack.c.bf16 %v218, %v218
      %v220 = vld [vmem:[%s206] sm:$0xf]
      %v221 = vld [vmem:[%s206 + $0x4] sm:$0xf]
      %v222 = vld [vmem:[%s206 + $0x8] sm:$0xf]
      %v223 = vld [vmem:[%s206 + $0xc] sm:$0xf]
      %v224 = vld [vmem:[%s209] sm:$0x1]
      %v226 = vperm.slane %v224, 0
      %v232 = vunpack.c.l.b16 %v220
      %v233 = vunpack.c.l.b16 %v221
      %v234 = vunpack.c.l.b16 %v222
      %v235 = vunpack.c.l.b16 %v223
      %v236 = vpack.c.b16 %v233, %v232
      %v237 = vpack.c.b16 %v235, %v234
      %vm240 = vcmask 261120
      %v242 = vsel %vm240, %v219, 0
      %244 = vmatpush.bf16.msra.mxu0 0
      %245 = vmatpush.bf16.msra.mxu0 0
      %246 = vmatpush.bf16.msra.mxu0 0
      %247 = vmatpush.bf16.msra.mxu0 0
      %248 = vmatpush.bf16.msra.mxu0 0
      %249 = vmatpush.bf16.msra.mxu0 0
      %250 = vmatpush.bf16.msra.mxu0 %v237
      %251 = vmatpush.bf16.msra.mxu0 %v236
      %252 = vmatmul.bf16.gmra.mxu0 %v242
      %v253 = vpop.f32.mrf.mxu0
      %v254 = vadd.f32 %v226, %v253
      %v255 = vpop.f32.mrf.mxu0
      %256 = vdwg.mxu0
      %257 = vst [vmem:[%s216] sm:$0xff] %v254
      %p258 = scmp.lt.s32.totalorder %s18, 1
      %s259 = scalar_select %p258, %s18, 1
      %p260 = scmp.lt.s32.totalorder %s19, 0
      %s261 = scalar_select %p260, %s19, 0
      %s262 = sadd.s32 %s261, %s259
      %s263 = smul.addr %s262, 8
      %s264 = scalar_lea.vmem %s3, %s263
      // Predicated region
      $region33: #{transformer_forward.35} parent=31 // pred_check
        %p265 = pneg %p124
      $region34: #{transformer_forward.35} parent=31 // pred_check_branch
        %267 = sbr.rel (%p265) target = $region36
      $region35: #{transformer_forward.35} parent=31 // pred_region
        _
      $region36: #{transformer_forward.35} parent=31 // pred_fallthru
        _
    $region32: #{transformer_forward.35} parent=5 // pred_fallthru
      _
    %p268 = scmp.le.s32.totalorder 2, %s9
    // Predicated region
    $region37: #{transformer_forward.35} parent=5 // pred_check
      %p269 = pneg %p268
    $region38: #{transformer_forward.35} parent=5 // pred_check_branch
      %271 = sbr.rel (%p269) target = $region40
    $region39: #{transformer_forward.35} parent=5 // pred_region
      %s272 = ssub.s32 %s9, 2
      // Predicated region
      $region41: #{transformer_forward.35} parent=39 // pred_check
        %p273 = pneg %p130
      $region42: #{transformer_forward.35} parent=39 // pred_check_branch
        %275 = sbr.rel (%p273) target = $region44
      $region43: #{transformer_forward.35} parent=39 // pred_region
        %p276 = scmp.lt.s32.totalorder %s20, 1
        %s277 = scalar_select %p276, %s20, 1
        %p278 = scmp.lt.s32.totalorder %s21, 0
        %s279 = scalar_select %p278, %s21, 0
        %s280 = sadd.s32 %s279, %s277
        %s281 = smul.addr %s280, 8
        %s282 = scalar_lea.vmem %s3, %s281
      $region44: #{transformer_forward.35} parent=39 // pred_fallthru
        _
    $region40: #{transformer_forward.35} parent=5 // pred_fallthru
      _
  $region6: #{transformer_forward.35} parent=0 // loop_footer
    %s13 = sadd.s32 1, %s9
  $region7: #{transformer_forward.35} parent=0 // loop_footer_branch
    %8 = sbr.rel target = $region3
  $region8: #{transformer_forward.35} parent=0 // loop_exit
    _

</llo_original>
